<compile_context>
chip_gen: v7x
topology: tpu7x:2x2x1
jax: 0.10.0
libtpu: 0.0.40
codegen_flags: <defaults>
</compile_context>

<pallas_src>
import functools

import jax
import jax.numpy as jnp
from jax.experimental import pallas as pl
from jax.experimental.pallas import tpu as pltpu

EPS = 1e-5
VMEM_LIMIT_BYTES = 56 * 1024 * 1024  # < 64 MiB physical on v7x


def _compiler_params():
    return pltpu.CompilerParams(
        dimension_semantics=("parallel",),
        vmem_limit_bytes=VMEM_LIMIT_BYTES,
    )


# ----------------------------------------------------------------------------
# Kernel helpers
# ----------------------------------------------------------------------------
def _accumulate_taps(xt, w_ref, *, wp, lout):
    """3x3 conv of one image as 9 accumulated MXU dots.

    xt:    (Cin, Lin)  flat padded image slab (zero halo ring)
    w_ref: (9, Cout, Cin) weights, tap index t = 3*dh + dw
    Returns (Cout, lout) f32, lout = H*wp; the last two columns of each output
    row read halo data (garbage) and are masked downstream.
    """
    acc = None
    for dh in range(3):
        for dw in range(3):
            off = dh * wp + dw
            rhs = xt[:, off:off + lout]                       # static lane slice
            part = jnp.dot(w_ref[3 * dh + dw], rhs,
                           preferred_element_type=jnp.float32)
            acc = part if acc is None else acc + part
    return acc


def _store_shifted(y_ref, acc, *, wp):
    """Write acc into the output slab at lane offset wp+1 (halo ring = 0)."""
    edge = jnp.zeros((acc.shape[0], wp + 1), jnp.float32)
    y_ref[0] = jnp.concatenate([edge, acc, edge], axis=1).astype(y_ref.dtype)


def _partial_stats(stats_ref, acc, vmask):
    """Packed per-channel (sum, sum-of-squares) over the valid output columns."""
    s = jnp.sum(acc * vmask, axis=1, keepdims=True)           # (Cout, 1)
    ss = jnp.sum(acc * acc * vmask, axis=1, keepdims=True)    # (Cout, 1)
    stats_ref[0] = jnp.concatenate([s, ss], axis=1)           # (Cout, 2)


# ----------------------------------------------------------------------------
# Kernels
# ----------------------------------------------------------------------------
def conv_stats_kernel(x_ref, w_ref, vmask_ref, y_ref, stats_ref, *, wp, lout):
    """Stage 1: Conv2d(3x3) of one image + packed BN partial stats."""
    acc = _accumulate_taps(x_ref[0], w_ref, wp=wp, lout=lout)
    _partial_stats(stats_ref, acc, vmask_ref[...])
    _store_shifted(y_ref, acc, wp=wp)


def bn_relu_conv_stats_kernel(x_ref, w_ref, vmask_ref, bn_ref, imask_ref,
                              y_ref, stats_ref, *, wp, lout):
    """Stage 2: fused BN1+ReLU on the loaded slab, then Conv2d(3x3) + stats."""
    x = x_ref[0].astype(jnp.float32)                          # (Cin, Lin)
    scale = bn_ref[:, 0:1]                                    # (Cin, 1)
    shift = bn_ref[:, 1:2]
    act = jnp.maximum(x * scale + shift, 0.0)
    # Re-zero halo ring / garbage columns so the conv sees true zero padding.
    act = jnp.where(imask_ref[...] > 0.0, act, 0.0)
    acc = _accumulate_taps(act.astype(x_ref.dtype), w_ref, wp=wp, lout=lout)
    _partial_stats(stats_ref, acc, vmask_ref[...])
    _store_shifted(y_ref, acc, wp=wp)


def bn_relu_kernel(y_ref, bn_ref, o_ref):
    """Final BN2 + ReLU over the lane-dense flat slab (in place when aliased)."""
    y = y_ref[0].astype(jnp.float32)
    o_ref[0] = jnp.maximum(y * bn_ref[:, 0:1] + bn_ref[:, 1:2], 0.0
                           ).astype(o_ref.dtype)


# ----------------------------------------------------------------------------
# Wrapper glue
# ----------------------------------------------------------------------------
def _conv_pass(x_slab, w9, vmask, bn_prev, imask, *, wp, lout, out_dtype):
    n, cin, lin = x_slab.shape
    cout = w9.shape[1]
    out_shape = (jax.ShapeDtypeStruct((n, cout, lin), out_dtype),
                 jax.ShapeDtypeStruct((n, cout, 2), jnp.float32))
    out_specs = (pl.BlockSpec((1, cout, lin), lambda i: (i, 0, 0)),
                 pl.BlockSpec((1, cout, 2), lambda i: (i, 0, 0)))
    if bn_prev is None:
        kernel = functools.partial(conv_stats_kernel, wp=wp, lout=lout)
        in_specs = [pl.BlockSpec((1, cin, lin), lambda i: (i, 0, 0)),
                    pl.BlockSpec((9, cout, cin), lambda i: (0, 0, 0)),
                    pl.BlockSpec((1, lout), lambda i: (0, 0))]
        args = (x_slab, w9, vmask)
    else:
        kernel = functools.partial(bn_relu_conv_stats_kernel, wp=wp, lout=lout)
        in_specs = [pl.BlockSpec((1, cin, lin), lambda i: (i, 0, 0)),
                    pl.BlockSpec((9, cout, cin), lambda i: (0, 0, 0)),
                    pl.BlockSpec((1, lout), lambda i: (0, 0)),
                    pl.BlockSpec((cin, 2), lambda i: (0, 0)),
                    pl.BlockSpec((1, lin), lambda i: (0, 0))]
        args = (x_slab, w9, vmask, bn_prev, imask)
    return pl.pallas_call(
        kernel,
        grid=(n,),
        in_specs=in_specs,
        out_specs=out_specs,
        out_shape=out_shape,
        compiler_params=_compiler_params(),
    )(*args)


def _bn_relu_pass(y_slab, bn, *, out_dtype):
    n, c, lin = y_slab.shape
    aliases = {0: 0} if y_slab.dtype == jnp.dtype(out_dtype) else {}
    return pl.pallas_call(
        bn_relu_kernel,
        grid=(n,),
        in_specs=[pl.BlockSpec((1, c, lin), lambda i: (i, 0, 0)),
                  pl.BlockSpec((c, 2), lambda i: (0, 0))],
        out_specs=pl.BlockSpec((1, c, lin), lambda i: (i, 0, 0)),
        out_shape=jax.ShapeDtypeStruct((n, c, lin), out_dtype),
        input_output_aliases=aliases,
        compiler_params=_compiler_params(),
    )(y_slab, bn)


def _fold_bn(stats, gamma, beta, count):
    """Combine per-image partial stats -> folded BN scale/shift, packed (C, 2)."""
    s = jnp.sum(stats[:, :, 0], axis=0)
    ss = jnp.sum(stats[:, :, 1], axis=0)
    mean = s / count
    var = jnp.maximum(ss / count - mean * mean, 0.0)           # biased variance
    scale = gamma.astype(jnp.float32) * jax.lax.rsqrt(var + EPS)
    shift = beta.astype(jnp.float32) - mean * scale
    return jnp.stack([scale, shift], axis=1)                   # (C, 2)


def _fold_weights(w_oihw, compute_dtype):
    """(Cout, Cin, 3, 3) -> (9, Cout, Cin), tap index t = 3*dh + dw."""
    co, ci = w_oihw.shape[0], w_oihw.shape[1]
    return jnp.transpose(w_oihw, (2, 3, 0, 1)).reshape(9, co, ci).astype(compute_dtype)


def double_conv(x_nchw, params, *, compute_dtype=jnp.bfloat16):
    """DoubleConv.forward.  x_nchw: (N, Cin, H, W) -> (N, Cout, H, W) float32."""
    w1, g1, b1, w2, g2, b2 = params
    n, cin, h, w = x_nchw.shape
    cout = w1.shape[0]
    hp, wp = h + 2, w + 2
    lout = h * wp                 # conv-output lane length per image
    lin = hp * wp + 2             # padded-slab lane length per image
    count = n * h * w

    # NCHW -> flat zero-padded channel-major slab (single pad, no transposes).
    x_slab = jnp.pad(x_nchw, ((0, 0), (0, 0), (1, 1), (1, 1)))
    x_slab = x_slab.reshape(n, cin, hp * wp)
    x_slab = jnp.pad(x_slab, ((0, 0), (0, 0), (0, 2))).astype(compute_dtype)

    # Valid-column mask (excludes the 2 garbage columns per output row) and
    # interior mask (excludes the halo ring of the slab) -- tiny trace-time consts.
    m = jnp.arange(lout)
    vmask = ((m % wp) < w).astype(jnp.float32).reshape(1, lout)
    q = jnp.arange(lin)
    qi, qj = q // wp, q % wp
    imask = ((qi >= 1) & (qi <= h) & (qj >= 1) & (qj <= w)
             ).astype(jnp.float32).reshape(1, lin)

    # Stage 1: conv1 + BN1 partial stats.
    y1, st1 = _conv_pass(x_slab, _fold_weights(w1, compute_dtype), vmask,
                         None, None, wp=wp, lout=lout, out_dtype=compute_dtype)
    bn1 = _fold_bn(st1, g1, b1, count)

    # Stage 2: fused BN1+ReLU (on the loaded slab) -> conv2 + BN2 partial stats.
    y2, st2 = _conv_pass(y1, _fold_weights(w2, compute_dtype), vmask,
                         bn1, imask, wp=wp, lout=lout, out_dtype=compute_dtype)
    bn2 = _fold_bn(st2, g2, b2, count)

    # Final BN2 + ReLU (lane-dense elementwise pass; in place in the f32 path).
    out_slab = _bn_relu_pass(y2, bn2, out_dtype=jnp.float32)

    # Slab -> NCHW: one strided slice, no transpose.
    out = out_slab[:, :, :hp * wp].reshape(n, cout, hp, wp)
    return out[:, :, 1:1 + h, 1:1 + w]


# ----------------------------------------------------------------------------
# Pure-JAX reference (lax conv) for correctness check
# ----------------------------------------------------------------------------
def _reference_double_conv(x_nchw, params):
    w1, g1, b1, w2, g2, b2 = params

    def stage(x, wt, g, b):
        y = jax.lax.conv_general_dilated(
            x.astype(jnp.float32), wt.astype(jnp.float32),
            window_strides=(1, 1), padding=((1, 1), (1, 1)),
            dimension_numbers=("NCHW", "OIHW", "NCHW"))
        mean = jnp.mean(y, axis=(0, 2, 3), keepdims=True)
        var = jnp.mean((y - mean) ** 2, axis=(0, 2, 3), keepdims=True)
        y = (y - mean) * jax.lax.rsqrt(var + EPS)
        y = y * g.reshape(1, -1, 1, 1) + b.reshape(1, -1, 1, 1)
        return jnp.maximum(y, 0.0)

    return stage(stage(x_nchw, w1, g1, b1), w2, g2, b2)


if __name__ == "__main__":
    N, Cin, Cout, H, W = 2, 4, 8, 16, 16

    key = jax.random.PRNGKey(0)
    kx, kw1, kw2, kg1, kb1, kg2, kb2 = jax.random.split(key, 7)

    x = jax.random.normal(kx, (N, Cin, H, W), dtype=jnp.float32)
    w1 = 0.1 * jax.random.normal(kw1, (Cout, Cin, 3, 3), dtype=jnp.float32)
    w2 = 0.1 * jax.random.normal(kw2, (Cout, Cout, 3, 3), dtype=jnp.float32)
    g1 = 1.0 + 0.1 * jax.random.normal(kg1, (Cout,), dtype=jnp.float32)
    b1 = 0.1 * jax.random.normal(kb1, (Cout,), dtype=jnp.float32)
    g2 = 1.0 + 0.1 * jax.random.normal(kg2, (Cout,), dtype=jnp.float32)
    b2 = 0.1 * jax.random.normal(kb2, (Cout,), dtype=jnp.float32)
    params = (w1, g1, b1, w2, g2, b2)

    ref = jax.block_until_ready(_reference_double_conv(x, params))

    # f32 path: tight parity with the PyTorch f32 forward.
    run_f32 = jax.jit(functools.partial(double_conv, compute_dtype=jnp.float32))
    out_f32 = jax.block_until_ready(run_f32(x, params))
    assert out_f32.shape == (N, Cout, H, W), out_f32.shape
    err32 = float(jnp.max(jnp.abs(out_f32 - ref)))
    assert err32 < 1e-4, err32

    # Default bf16 MXU-input / bf16 inter-stage path: loose tolerance.
    run_bf16 = jax.jit(double_conv)
    out_bf16 = jax.block_until_ready(run_bf16(x, params))
    assert out_bf16.shape == (N, Cout, H, W), out_bf16.shape
    errbf = float(jnp.max(jnp.abs(out_bf16 - ref)))
    assert errbf < 0.25, errbf

    print("KERNEL_OK")
</pallas_src>

<mosaic_0001>
module attributes {stable_mosaic.version = 11 : i64} {
  func.func @bn_relu_conv_stats_kernel(%arg0: i32, %arg1: memref<1x8x326xf32, #tpu.memory_space<vmem>>, %arg2: memref<9x8x8xf32, #tpu.memory_space<vmem>>, %arg3: memref<1x288xf32, #tpu.memory_space<vmem>>, %arg4: memref<8x2xf32, #tpu.memory_space<vmem>>, %arg5: memref<1x326xf32, #tpu.memory_space<vmem>>, %arg6: memref<1x8x326xf32, #tpu.memory_space<vmem>>, %arg7: memref<1x8x2xf32, #tpu.memory_space<vmem>>) attributes {dimension_semantics = [#tpu.dimension_semantics<parallel>], iteration_bounds = array<i64: 2>, scalar_prefetch = 0 : i64, scratch_operands = 0 : i64, tpu.core_type = #tpu.core_type<tc>, window_params = [{transform_indices = @transform_0, window_bounds = array<i64: 1, 8, 326>}, {pipeline_mode = #tpu.pipeline_mode<synchronous>, transform_indices = @transform_1, window_bounds = array<i64: 9, 8, 8>}, {pipeline_mode = #tpu.pipeline_mode<synchronous>, transform_indices = @transform_2, window_bounds = array<i64: 1, 288>}, {pipeline_mode = #tpu.pipeline_mode<synchronous>, transform_indices = @transform_3, window_bounds = array<i64: 8, 2>}, {pipeline_mode = #tpu.pipeline_mode<synchronous>, transform_indices = @transform_4, window_bounds = array<i64: 1, 326>}, {transform_indices = @transform_5, window_bounds = array<i64: 1, 8, 326>}, {transform_indices = @transform_6, window_bounds = array<i64: 1, 8, 2>}]} {
    %c0 = arith.constant 0 : index
    %c0_0 = arith.constant 0 : index
    %c0_1 = arith.constant 0 : index
    %0 = vector.load %arg1[%c0, %c0_0, %c0_1] : memref<1x8x326xf32, #tpu.memory_space<vmem>>, vector<1x8x326xf32>
    %1 = vector.shape_cast %0 : vector<1x8x326xf32> to vector<8x326xf32>
    %c0_2 = arith.constant 0 : index
    %c0_3 = arith.constant 0 : index
    %2 = vector.load %arg4[%c0_2, %c0_3] : memref<8x2xf32, #tpu.memory_space<vmem>>, vector<8x1xf32>
    %c0_4 = arith.constant 0 : index
    %c1 = arith.constant 1 : index
    %3 = vector.load %arg4[%c0_4, %c1] : memref<8x2xf32, #tpu.memory_space<vmem>>, vector<8x1xf32>
    %4 = vector.broadcast %2 : vector<8x1xf32> to vector<8x326xf32>
    %5 = arith.mulf %1, %4 : vector<8x326xf32>
    %6 = vector.broadcast %3 : vector<8x1xf32> to vector<8x326xf32>
    %7 = arith.addf %5, %6 : vector<8x326xf32>
    %cst = arith.constant 0.000000e+00 : f32
    %8 = vector.broadcast %cst : f32 to vector<8x326xf32>
    %9 = arith.maximumf %7, %8 : vector<8x326xf32>
    %c0_5 = arith.constant 0 : index
    %c0_6 = arith.constant 0 : index
    %10 = vector.load %arg5[%c0_5, %c0_6] : memref<1x326xf32, #tpu.memory_space<vmem>>, vector<1x326xf32>
    %cst_7 = arith.constant 0.000000e+00 : f32
    %11 = vector.broadcast %cst_7 : f32 to vector<1x326xf32>
    %12 = arith.cmpf ogt, %10, %11 : vector<1x326xf32>
    %cst_8 = arith.constant 0.000000e+00 : f32
    %13 = vector.shape_cast %12 : vector<1x326xi1> to vector<1x326xi1>
    %14 = vector.broadcast %13 : vector<1x326xi1> to vector<8x326xi1>
    %15 = vector.broadcast %cst_8 : f32 to vector<8x326xf32>
    %16 = arith.select %14, %9, %15 : vector<8x326xi1>, vector<8x326xf32>
    %17 = vector.extract_strided_slice %16 {offsets = [0, 0], sizes = [8, 288], strides = [1, 1]} : vector<8x326xf32> to vector<8x288xf32>
    %c0_9 = arith.constant 0 : index
    %c0_10 = arith.constant 0 : index
    %c0_11 = arith.constant 0 : index
    %18 = vector.load %arg2[%c0_9, %c0_10, %c0_11] : memref<9x8x8xf32, #tpu.memory_space<vmem>>, vector<1x8x8xf32>
    %19 = vector.shape_cast %18 : vector<1x8x8xf32> to vector<8x8xf32>
    %cst_12 = arith.constant dense<0.000000e+00> : vector<8x288xf32>
    %20 = tpu.matmul %19, %17, %cst_12 {dimension_numbers = #tpu.dot_dimension_numbers<[1], [0], [0], [1], [0, 0, 1, 1], [], []>} : vector<8x8xf32>, vector<8x288xf32>, vector<8x288xf32> -> vector<8x288xf32>
    %21 = vector.extract_strided_slice %16 {offsets = [0, 1], sizes = [8, 288], strides = [1, 1]} : vector<8x326xf32> to vector<8x288xf32>
    %c1_13 = arith.constant 1 : index
    %c0_14 = arith.constant 0 : index
    %c0_15 = arith.constant 0 : index
    %22 = vector.load %arg2[%c1_13, %c0_14, %c0_15] : memref<9x8x8xf32, #tpu.memory_space<vmem>>, vector<1x8x8xf32>
    %23 = vector.shape_cast %22 : vector<1x8x8xf32> to vector<8x8xf32>
    %cst_16 = arith.constant dense<0.000000e+00> : vector<8x288xf32>
    %24 = tpu.matmul %23, %21, %cst_16 {dimension_numbers = #tpu.dot_dimension_numbers<[1], [0], [0], [1], [0, 0, 1, 1], [], []>} : vector<8x8xf32>, vector<8x288xf32>, vector<8x288xf32> -> vector<8x288xf32>
    %25 = arith.addf %20, %24 : vector<8x288xf32>
    %26 = vector.extract_strided_slice %16 {offsets = [0, 2], sizes = [8, 288], strides = [1, 1]} : vector<8x326xf32> to vector<8x288xf32>
    %c2 = arith.constant 2 : index
    %c0_17 = arith.constant 0 : index
    %c0_18 = arith.constant 0 : index
    %27 = vector.load %arg2[%c2, %c0_17, %c0_18] : memref<9x8x8xf32, #tpu.memory_space<vmem>>, vector<1x8x8xf32>
    %28 = vector.shape_cast %27 : vector<1x8x8xf32> to vector<8x8xf32>
    %cst_19 = arith.constant dense<0.000000e+00> : vector<8x288xf32>
    %29 = tpu.matmul %28, %26, %cst_19 {dimension_numbers = #tpu.dot_dimension_numbers<[1], [0], [0], [1], [0, 0, 1, 1], [], []>} : vector<8x8xf32>, vector<8x288xf32>, vector<8x288xf32> -> vector<8x288xf32>
    %30 = arith.addf %25, %29 : vector<8x288xf32>
    %31 = vector.extract_strided_slice %16 {offsets = [0, 18], sizes = [8, 288], strides = [1, 1]} : vector<8x326xf32> to vector<8x288xf32>
    %c3 = arith.constant 3 : index
    %c0_20 = arith.constant 0 : index
    %c0_21 = arith.constant 0 : index
    %32 = vector.load %arg2[%c3, %c0_20, %c0_21] : memref<9x8x8xf32, #tpu.memory_space<vmem>>, vector<1x8x8xf32>
    %33 = vector.shape_cast %32 : vector<1x8x8xf32> to vector<8x8xf32>
    %cst_22 = arith.constant dense<0.000000e+00> : vector<8x288xf32>
    %34 = tpu.matmul %33, %31, %cst_22 {dimension_numbers = #tpu.dot_dimension_numbers<[1], [0], [0], [1], [0, 0, 1, 1], [], []>} : vector<8x8xf32>, vector<8x288xf32>, vector<8x288xf32> -> vector<8x288xf32>
    %35 = arith.addf %30, %34 : vector<8x288xf32>
    %36 = vector.extract_strided_slice %16 {offsets = [0, 19], sizes = [8, 288], strides = [1, 1]} : vector<8x326xf32> to vector<8x288xf32>
    %c4 = arith.constant 4 : index
    %c0_23 = arith.constant 0 : index
    %c0_24 = arith.constant 0 : index
    %37 = vector.load %arg2[%c4, %c0_23, %c0_24] : memref<9x8x8xf32, #tpu.memory_space<vmem>>, vector<1x8x8xf32>
    %38 = vector.shape_cast %37 : vector<1x8x8xf32> to vector<8x8xf32>
    %cst_25 = arith.constant dense<0.000000e+00> : vector<8x288xf32>
    %39 = tpu.matmul %38, %36, %cst_25 {dimension_numbers = #tpu.dot_dimension_numbers<[1], [0], [0], [1], [0, 0, 1, 1], [], []>} : vector<8x8xf32>, vector<8x288xf32>, vector<8x288xf32> -> vector<8x288xf32>
    %40 = arith.addf %35, %39 : vector<8x288xf32>
    %41 = vector.extract_strided_slice %16 {offsets = [0, 20], sizes = [8, 288], strides = [1, 1]} : vector<8x326xf32> to vector<8x288xf32>
    %c5 = arith.constant 5 : index
    %c0_26 = arith.constant 0 : index
    %c0_27 = arith.constant 0 : index
    %42 = vector.load %arg2[%c5, %c0_26, %c0_27] : memref<9x8x8xf32, #tpu.memory_space<vmem>>, vector<1x8x8xf32>
    %43 = vector.shape_cast %42 : vector<1x8x8xf32> to vector<8x8xf32>
    %cst_28 = arith.constant dense<0.000000e+00> : vector<8x288xf32>
    %44 = tpu.matmul %43, %41, %cst_28 {dimension_numbers = #tpu.dot_dimension_numbers<[1], [0], [0], [1], [0, 0, 1, 1], [], []>} : vector<8x8xf32>, vector<8x288xf32>, vector<8x288xf32> -> vector<8x288xf32>
    %45 = arith.addf %40, %44 : vector<8x288xf32>
    %46 = vector.extract_strided_slice %16 {offsets = [0, 36], sizes = [8, 288], strides = [1, 1]} : vector<8x326xf32> to vector<8x288xf32>
    %c6 = arith.constant 6 : index
    %c0_29 = arith.constant 0 : index
    %c0_30 = arith.constant 0 : index
    %47 = vector.load %arg2[%c6, %c0_29, %c0_30] : memref<9x8x8xf32, #tpu.memory_space<vmem>>, vector<1x8x8xf32>
    %48 = vector.shape_cast %47 : vector<1x8x8xf32> to vector<8x8xf32>
    %cst_31 = arith.constant dense<0.000000e+00> : vector<8x288xf32>
    %49 = tpu.matmul %48, %46, %cst_31 {dimension_numbers = #tpu.dot_dimension_numbers<[1], [0], [0], [1], [0, 0, 1, 1], [], []>} : vector<8x8xf32>, vector<8x288xf32>, vector<8x288xf32> -> vector<8x288xf32>
    %50 = arith.addf %45, %49 : vector<8x288xf32>
    %51 = vector.extract_strided_slice %16 {offsets = [0, 37], sizes = [8, 288], strides = [1, 1]} : vector<8x326xf32> to vector<8x288xf32>
    %c7 = arith.constant 7 : index
    %c0_32 = arith.constant 0 : index
    %c0_33 = arith.constant 0 : index
    %52 = vector.load %arg2[%c7, %c0_32, %c0_33] : memref<9x8x8xf32, #tpu.memory_space<vmem>>, vector<1x8x8xf32>
    %53 = vector.shape_cast %52 : vector<1x8x8xf32> to vector<8x8xf32>
    %cst_34 = arith.constant dense<0.000000e+00> : vector<8x288xf32>
    %54 = tpu.matmul %53, %51, %cst_34 {dimension_numbers = #tpu.dot_dimension_numbers<[1], [0], [0], [1], [0, 0, 1, 1], [], []>} : vector<8x8xf32>, vector<8x288xf32>, vector<8x288xf32> -> vector<8x288xf32>
    %55 = arith.addf %50, %54 : vector<8x288xf32>
    %56 = vector.extract_strided_slice %16 {offsets = [0, 38], sizes = [8, 288], strides = [1, 1]} : vector<8x326xf32> to vector<8x288xf32>
    %c8 = arith.constant 8 : index
    %c0_35 = arith.constant 0 : index
    %c0_36 = arith.constant 0 : index
    %57 = vector.load %arg2[%c8, %c0_35, %c0_36] : memref<9x8x8xf32, #tpu.memory_space<vmem>>, vector<1x8x8xf32>
    %58 = vector.shape_cast %57 : vector<1x8x8xf32> to vector<8x8xf32>
    %cst_37 = arith.constant dense<0.000000e+00> : vector<8x288xf32>
    %59 = tpu.matmul %58, %56, %cst_37 {dimension_numbers = #tpu.dot_dimension_numbers<[1], [0], [0], [1], [0, 0, 1, 1], [], []>} : vector<8x8xf32>, vector<8x288xf32>, vector<8x288xf32> -> vector<8x288xf32>
    %60 = arith.addf %55, %59 : vector<8x288xf32>
    %c0_38 = arith.constant 0 : index
    %c0_39 = arith.constant 0 : index
    %61 = vector.load %arg3[%c0_38, %c0_39] : memref<1x288xf32, #tpu.memory_space<vmem>>, vector<1x288xf32>
    %62 = vector.broadcast %61 : vector<1x288xf32> to vector<8x288xf32>
    %63 = arith.mulf %60, %62 : vector<8x288xf32>
    %cst_40 = arith.constant dense<0.000000e+00> : vector<8xf32>
    %64 = vector.multi_reduction <add>, %63, %cst_40 [1] : vector<8x288xf32> to vector<8xf32>
    %65 = vector.shape_cast %64 : vector<8xf32> to vector<8x1xf32>
    %66 = arith.mulf %60, %60 : vector<8x288xf32>
    %67 = vector.broadcast %61 : vector<1x288xf32> to vector<8x288xf32>
    %68 = arith.mulf %66, %67 : vector<8x288xf32>
    %cst_41 = arith.constant dense<0.000000e+00> : vector<8xf32>
    %69 = vector.multi_reduction <add>, %68, %cst_41 [1] : vector<8x288xf32> to vector<8xf32>
    %70 = vector.shape_cast %69 : vector<8xf32> to vector<8x1xf32>
    %71 = tpu.concatenate %65, %70 in 1 : vector<8x1xf32>, vector<8x1xf32> -> vector<8x2xf32>
    %c0_42 = arith.constant 0 : index
    %c0_43 = arith.constant 0 : index
    %c0_44 = arith.constant 0 : index
    %72 = vector.load %arg7[%c0_42, %c0_43, %c0_44] : memref<1x8x2xf32, #tpu.memory_space<vmem>>, vector<1x8x2xf32>
    %73 = vector.shape_cast %72 : vector<1x8x2xf32> to vector<8x2xf32>
    %74 = vector.shape_cast %71 : vector<8x2xf32> to vector<1x8x2xf32>
    tpu.vector_store %arg7[%c0_42, %c0_43, %c0_44], %74 {strides = array<i32>} : memref<1x8x2xf32, #tpu.memory_space<vmem>>, vector<1x8x2xf32>,
    %cst_45 = arith.constant 0.000000e+00 : f32
    %75 = vector.broadcast %cst_45 : f32 to vector<8x19xf32>
    %76 = tpu.concatenate %75, %60, %75 in 1 : vector<8x19xf32>, vector<8x288xf32>, vector<8x19xf32> -> vector<8x326xf32>
    %c0_46 = arith.constant 0 : index
    %c0_47 = arith.constant 0 : index
    %c0_48 = arith.constant 0 : index
    %77 = vector.load %arg6[%c0_46, %c0_47, %c0_48] : memref<1x8x326xf32, #tpu.memory_space<vmem>>, vector<1x8x326xf32>
    %78 = vector.shape_cast %77 : vector<1x8x326xf32> to vector<8x326xf32>
    %79 = vector.shape_cast %76 : vector<8x326xf32> to vector<1x8x326xf32>
    tpu.vector_store %arg6[%c0_46, %c0_47, %c0_48], %79 {strides = array<i32>} : memref<1x8x326xf32, #tpu.memory_space<vmem>>, vector<1x8x326xf32>,
    return
  }
  func.func @transform_0(%arg0: i32) -> (i32, i32, i32) {
    %c0_i32 = arith.constant 0 : i32
    %c0_i32_0 = arith.constant 0 : i32
    %c0_i32_1 = arith.constant 0 : i32
    return %arg0, %c0_i32, %c0_i32_0 : i32, i32, i32
  }
  func.func @transform_1(%arg0: i32) -> (i32, i32, i32) {
    %c0_i32 = arith.constant 0 : i32
    %c0_i32_0 = arith.constant 0 : i32
    %c0_i32_1 = arith.constant 0 : i32
    %c0_i32_2 = arith.constant 0 : i32
    return %c0_i32, %c0_i32_0, %c0_i32_1 : i32, i32, i32
  }
  func.func @transform_2(%arg0: i32) -> (i32, i32) {
    %c0_i32 = arith.constant 0 : i32
    %c0_i32_0 = arith.constant 0 : i32
    %c0_i32_1 = arith.constant 0 : i32
    return %c0_i32, %c0_i32_0 : i32, i32
  }
  func.func @transform_3(%arg0: i32) -> (i32, i32) {
    %c0_i32 = arith.constant 0 : i32
    %c0_i32_0 = arith.constant 0 : i32
    %c0_i32_1 = arith.constant 0 : i32
    return %c0_i32, %c0_i32_0 : i32, i32
  }
  func.func @transform_4(%arg0: i32) -> (i32, i32) {
    %c0_i32 = arith.constant 0 : i32
    %c0_i32_0 = arith.constant 0 : i32
    %c0_i32_1 = arith.constant 0 : i32
    return %c0_i32, %c0_i32_0 : i32, i32
  }
  func.func @transform_5(%arg0: i32) -> (i32, i32, i32) {
    %c0_i32 = arith.constant 0 : i32
    %c0_i32_0 = arith.constant 0 : i32
    %c0_i32_1 = arith.constant 0 : i32
    return %arg0, %c0_i32, %c0_i32_0 : i32, i32, i32
  }
  func.func @transform_6(%arg0: i32) -> (i32, i32, i32) {
    %c0_i32 = arith.constant 0 : i32
    %c0_i32_0 = arith.constant 0 : i32
    %c0_i32_1 = arith.constant 0 : i32
    return %arg0, %c0_i32, %c0_i32_0 : i32, i32, i32
  }
}

module attributes {stable_mosaic.version = 11 : i64} {
  func.func @conv_stats_kernel(%arg0: i32, %arg1: memref<1x4x326xf32, #tpu.memory_space<vmem>>, %arg2: memref<9x8x4xf32, #tpu.memory_space<vmem>>, %arg3: memref<1x288xf32, #tpu.memory_space<vmem>>, %arg4: memref<1x8x326xf32, #tpu.memory_space<vmem>>, %arg5: memref<1x8x2xf32, #tpu.memory_space<vmem>>) attributes {dimension_semantics = [#tpu.dimension_semantics<parallel>], iteration_bounds = array<i64: 2>, scalar_prefetch = 0 : i64, scratch_operands = 0 : i64, tpu.core_type = #tpu.core_type<tc>, window_params = [{transform_indices = @transform_0, window_bounds = array<i64: 1, 4, 326>}, {pipeline_mode = #tpu.pipeline_mode<synchronous>, transform_indices = @transform_1, window_bounds = array<i64: 9, 8, 4>}, {pipeline_mode = #tpu.pipeline_mode<synchronous>, transform_indices = @transform_2, window_bounds = array<i64: 1, 288>}, {transform_indices = @transform_3, window_bounds = array<i64: 1, 8, 326>}, {transform_indices = @transform_4, window_bounds = array<i64: 1, 8, 2>}]} {
    %c0 = arith.constant 0 : index
    %c0_0 = arith.constant 0 : index
    %c0_1 = arith.constant 0 : index
    %0 = vector.load %arg1[%c0, %c0_0, %c0_1] : memref<1x4x326xf32, #tpu.memory_space<vmem>>, vector<1x4x326xf32>
    %1 = vector.shape_cast %0 : vector<1x4x326xf32> to vector<4x326xf32>
    %2 = vector.extract_strided_slice %1 {offsets = [0, 0], sizes = [4, 288], strides = [1, 1]} : vector<4x326xf32> to vector<4x288xf32>
    %c0_2 = arith.constant 0 : index
    %c0_3 = arith.constant 0 : index
    %c0_4 = arith.constant 0 : index
    %3 = vector.load %arg2[%c0_2, %c0_3, %c0_4] : memref<9x8x4xf32, #tpu.memory_space<vmem>>, vector<1x8x4xf32>
    %4 = vector.shape_cast %3 : vector<1x8x4xf32> to vector<8x4xf32>
    %cst = arith.constant dense<0.000000e+00> : vector<8x288xf32>
    %5 = tpu.matmul %4, %2, %cst {dimension_numbers = #tpu.dot_dimension_numbers<[1], [0], [0], [1], [0, 0, 1, 1], [], []>} : vector<8x4xf32>, vector<4x288xf32>, vector<8x288xf32> -> vector<8x288xf32>
    %6 = vector.extract_strided_slice %1 {offsets = [0, 1], sizes = [4, 288], strides = [1, 1]} : vector<4x326xf32> to vector<4x288xf32>
    %c1 = arith.constant 1 : index
    %c0_5 = arith.constant 0 : index
    %c0_6 = arith.constant 0 : index
    %7 = vector.load %arg2[%c1, %c0_5, %c0_6] : memref<9x8x4xf32, #tpu.memory_space<vmem>>, vector<1x8x4xf32>
    %8 = vector.shape_cast %7 : vector<1x8x4xf32> to vector<8x4xf32>
    %cst_7 = arith.constant dense<0.000000e+00> : vector<8x288xf32>
    %9 = tpu.matmul %8, %6, %cst_7 {dimension_numbers = #tpu.dot_dimension_numbers<[1], [0], [0], [1], [0, 0, 1, 1], [], []>} : vector<8x4xf32>, vector<4x288xf32>, vector<8x288xf32> -> vector<8x288xf32>
    %10 = arith.addf %5, %9 : vector<8x288xf32>
    %11 = vector.extract_strided_slice %1 {offsets = [0, 2], sizes = [4, 288], strides = [1, 1]} : vector<4x326xf32> to vector<4x288xf32>
    %c2 = arith.constant 2 : index
    %c0_8 = arith.constant 0 : index
    %c0_9 = arith.constant 0 : index
    %12 = vector.load %arg2[%c2, %c0_8, %c0_9] : memref<9x8x4xf32, #tpu.memory_space<vmem>>, vector<1x8x4xf32>
    %13 = vector.shape_cast %12 : vector<1x8x4xf32> to vector<8x4xf32>
    %cst_10 = arith.constant dense<0.000000e+00> : vector<8x288xf32>
    %14 = tpu.matmul %13, %11, %cst_10 {dimension_numbers = #tpu.dot_dimension_numbers<[1], [0], [0], [1], [0, 0, 1, 1], [], []>} : vector<8x4xf32>, vector<4x288xf32>, vector<8x288xf32> -> vector<8x288xf32>
    %15 = arith.addf %10, %14 : vector<8x288xf32>
    %16 = vector.extract_strided_slice %1 {offsets = [0, 18], sizes = [4, 288], strides = [1, 1]} : vector<4x326xf32> to vector<4x288xf32>
    %c3 = arith.constant 3 : index
    %c0_11 = arith.constant 0 : index
    %c0_12 = arith.constant 0 : index
    %17 = vector.load %arg2[%c3, %c0_11, %c0_12] : memref<9x8x4xf32, #tpu.memory_space<vmem>>, vector<1x8x4xf32>
    %18 = vector.shape_cast %17 : vector<1x8x4xf32> to vector<8x4xf32>
    %cst_13 = arith.constant dense<0.000000e+00> : vector<8x288xf32>
    %19 = tpu.matmul %18, %16, %cst_13 {dimension_numbers = #tpu.dot_dimension_numbers<[1], [0], [0], [1], [0, 0, 1, 1], [], []>} : vector<8x4xf32>, vector<4x288xf32>, vector<8x288xf32> -> vector<8x288xf32>
    %20 = arith.addf %15, %19 : vector<8x288xf32>
    %21 = vector.extract_strided_slice %1 {offsets = [0, 19], sizes = [4, 288], strides = [1, 1]} : vector<4x326xf32> to vector<4x288xf32>
    %c4 = arith.constant 4 : index
    %c0_14 = arith.constant 0 : index
    %c0_15 = arith.constant 0 : index
    %22 = vector.load %arg2[%c4, %c0_14, %c0_15] : memref<9x8x4xf32, #tpu.memory_space<vmem>>, vector<1x8x4xf32>
    %23 = vector.shape_cast %22 : vector<1x8x4xf32> to vector<8x4xf32>
    %cst_16 = arith.constant dense<0.000000e+00> : vector<8x288xf32>
    %24 = tpu.matmul %23, %21, %cst_16 {dimension_numbers = #tpu.dot_dimension_numbers<[1], [0], [0], [1], [0, 0, 1, 1], [], []>} : vector<8x4xf32>, vector<4x288xf32>, vector<8x288xf32> -> vector<8x288xf32>
    %25 = arith.addf %20, %24 : vector<8x288xf32>
    %26 = vector.extract_strided_slice %1 {offsets = [0, 20], sizes = [4, 288], strides = [1, 1]} : vector<4x326xf32> to vector<4x288xf32>
    %c5 = arith.constant 5 : index
    %c0_17 = arith.constant 0 : index
    %c0_18 = arith.constant 0 : index
    %27 = vector.load %arg2[%c5, %c0_17, %c0_18] : memref<9x8x4xf32, #tpu.memory_space<vmem>>, vector<1x8x4xf32>
    %28 = vector.shape_cast %27 : vector<1x8x4xf32> to vector<8x4xf32>
    %cst_19 = arith.constant dense<0.000000e+00> : vector<8x288xf32>
    %29 = tpu.matmul %28, %26, %cst_19 {dimension_numbers = #tpu.dot_dimension_numbers<[1], [0], [0], [1], [0, 0, 1, 1], [], []>} : vector<8x4xf32>, vector<4x288xf32>, vector<8x288xf32> -> vector<8x288xf32>
    %30 = arith.addf %25, %29 : vector<8x288xf32>
    %31 = vector.extract_strided_slice %1 {offsets = [0, 36], sizes = [4, 288], strides = [1, 1]} : vector<4x326xf32> to vector<4x288xf32>
    %c6 = arith.constant 6 : index
    %c0_20 = arith.constant 0 : index
    %c0_21 = arith.constant 0 : index
    %32 = vector.load %arg2[%c6, %c0_20, %c0_21] : memref<9x8x4xf32, #tpu.memory_space<vmem>>, vector<1x8x4xf32>
    %33 = vector.shape_cast %32 : vector<1x8x4xf32> to vector<8x4xf32>
    %cst_22 = arith.constant dense<0.000000e+00> : vector<8x288xf32>
    %34 = tpu.matmul %33, %31, %cst_22 {dimension_numbers = #tpu.dot_dimension_numbers<[1], [0], [0], [1], [0, 0, 1, 1], [], []>} : vector<8x4xf32>, vector<4x288xf32>, vector<8x288xf32> -> vector<8x288xf32>
    %35 = arith.addf %30, %34 : vector<8x288xf32>
    %36 = vector.extract_strided_slice %1 {offsets = [0, 37], sizes = [4, 288], strides = [1, 1]} : vector<4x326xf32> to vector<4x288xf32>
    %c7 = arith.constant 7 : index
    %c0_23 = arith.constant 0 : index
    %c0_24 = arith.constant 0 : index
    %37 = vector.load %arg2[%c7, %c0_23, %c0_24] : memref<9x8x4xf32, #tpu.memory_space<vmem>>, vector<1x8x4xf32>
    %38 = vector.shape_cast %37 : vector<1x8x4xf32> to vector<8x4xf32>
    %cst_25 = arith.constant dense<0.000000e+00> : vector<8x288xf32>
    %39 = tpu.matmul %38, %36, %cst_25 {dimension_numbers = #tpu.dot_dimension_numbers<[1], [0], [0], [1], [0, 0, 1, 1], [], []>} : vector<8x4xf32>, vector<4x288xf32>, vector<8x288xf32> -> vector<8x288xf32>
    %40 = arith.addf %35, %39 : vector<8x288xf32>
    %41 = vector.extract_strided_slice %1 {offsets = [0, 38], sizes = [4, 288], strides = [1, 1]} : vector<4x326xf32> to vector<4x288xf32>
    %c8 = arith.constant 8 : index
    %c0_26 = arith.constant 0 : index
    %c0_27 = arith.constant 0 : index
    %42 = vector.load %arg2[%c8, %c0_26, %c0_27] : memref<9x8x4xf32, #tpu.memory_space<vmem>>, vector<1x8x4xf32>
    %43 = vector.shape_cast %42 : vector<1x8x4xf32> to vector<8x4xf32>
    %cst_28 = arith.constant dense<0.000000e+00> : vector<8x288xf32>
    %44 = tpu.matmul %43, %41, %cst_28 {dimension_numbers = #tpu.dot_dimension_numbers<[1], [0], [0], [1], [0, 0, 1, 1], [], []>} : vector<8x4xf32>, vector<4x288xf32>, vector<8x288xf32> -> vector<8x288xf32>
    %45 = arith.addf %40, %44 : vector<8x288xf32>
    %c0_29 = arith.constant 0 : index
    %c0_30 = arith.constant 0 : index
    %46 = vector.load %arg3[%c0_29, %c0_30] : memref<1x288xf32, #tpu.memory_space<vmem>>, vector<1x288xf32>
    %47 = vector.broadcast %46 : vector<1x288xf32> to vector<8x288xf32>
    %48 = arith.mulf %45, %47 : vector<8x288xf32>
    %cst_31 = arith.constant dense<0.000000e+00> : vector<8xf32>
    %49 = vector.multi_reduction <add>, %48, %cst_31 [1] : vector<8x288xf32> to vector<8xf32>
    %50 = vector.shape_cast %49 : vector<8xf32> to vector<8x1xf32>
    %51 = arith.mulf %45, %45 : vector<8x288xf32>
    %52 = vector.broadcast %46 : vector<1x288xf32> to vector<8x288xf32>
    %53 = arith.mulf %51, %52 : vector<8x288xf32>
    %cst_32 = arith.constant dense<0.000000e+00> : vector<8xf32>
    %54 = vector.multi_reduction <add>, %53, %cst_32 [1] : vector<8x288xf32> to vector<8xf32>
    %55 = vector.shape_cast %54 : vector<8xf32> to vector<8x1xf32>
    %56 = tpu.concatenate %50, %55 in 1 : vector<8x1xf32>, vector<8x1xf32> -> vector<8x2xf32>
    %c0_33 = arith.constant 0 : index
    %c0_34 = arith.constant 0 : index
    %c0_35 = arith.constant 0 : index
    %57 = vector.load %arg5[%c0_33, %c0_34, %c0_35] : memref<1x8x2xf32, #tpu.memory_space<vmem>>, vector<1x8x2xf32>
    %58 = vector.shape_cast %57 : vector<1x8x2xf32> to vector<8x2xf32>
    %59 = vector.shape_cast %56 : vector<8x2xf32> to vector<1x8x2xf32>
    tpu.vector_store %arg5[%c0_33, %c0_34, %c0_35], %59 {strides = array<i32>} : memref<1x8x2xf32, #tpu.memory_space<vmem>>, vector<1x8x2xf32>,
    %cst_36 = arith.constant 0.000000e+00 : f32
    %60 = vector.broadcast %cst_36 : f32 to vector<8x19xf32>
    %61 = tpu.concatenate %60, %45, %60 in 1 : vector<8x19xf32>, vector<8x288xf32>, vector<8x19xf32> -> vector<8x326xf32>
    %c0_37 = arith.constant 0 : index
    %c0_38 = arith.constant 0 : index
    %c0_39 = arith.constant 0 : index
    %62 = vector.load %arg4[%c0_37, %c0_38, %c0_39] : memref<1x8x326xf32, #tpu.memory_space<vmem>>, vector<1x8x326xf32>
    %63 = vector.shape_cast %62 : vector<1x8x326xf32> to vector<8x326xf32>
    %64 = vector.shape_cast %61 : vector<8x326xf32> to vector<1x8x326xf32>
    tpu.vector_store %arg4[%c0_37, %c0_38, %c0_39], %64 {strides = array<i32>} : memref<1x8x326xf32, #tpu.memory_space<vmem>>, vector<1x8x326xf32>,
    return
  }
  func.func @transform_0(%arg0: i32) -> (i32, i32, i32) {
    %c0_i32 = arith.constant 0 : i32
    %c0_i32_0 = arith.constant 0 : i32
    %c0_i32_1 = arith.constant 0 : i32
    return %arg0, %c0_i32, %c0_i32_0 : i32, i32, i32
  }
  func.func @transform_1(%arg0: i32) -> (i32, i32, i32) {
    %c0_i32 = arith.constant 0 : i32
    %c0_i32_0 = arith.constant 0 : i32
    %c0_i32_1 = arith.constant 0 : i32
    %c0_i32_2 = arith.constant 0 : i32
    return %c0_i32, %c0_i32_0, %c0_i32_1 : i32, i32, i32
  }
  func.func @transform_2(%arg0: i32) -> (i32, i32) {
    %c0_i32 = arith.constant 0 : i32
    %c0_i32_0 = arith.constant 0 : i32
    %c0_i32_1 = arith.constant 0 : i32
    return %c0_i32, %c0_i32_0 : i32, i32
  }
  func.func @transform_3(%arg0: i32) -> (i32, i32, i32) {
    %c0_i32 = arith.constant 0 : i32
    %c0_i32_0 = arith.constant 0 : i32
    %c0_i32_1 = arith.constant 0 : i32
    return %arg0, %c0_i32, %c0_i32_0 : i32, i32, i32
  }
  func.func @transform_4(%arg0: i32) -> (i32, i32, i32) {
    %c0_i32 = arith.constant 0 : i32
    %c0_i32_0 = arith.constant 0 : i32
    %c0_i32_1 = arith.constant 0 : i32
    return %arg0, %c0_i32, %c0_i32_0 : i32, i32, i32
  }
}

module attributes {stable_mosaic.version = 11 : i64} {
  func.func @bn_relu_kernel(%arg0: i32, %arg1: memref<1x8x326xf32, #tpu.memory_space<vmem>>, %arg2: memref<8x2xf32, #tpu.memory_space<vmem>>, %arg3: memref<1x8x326xf32, #tpu.memory_space<vmem>>) attributes {dimension_semantics = [#tpu.dimension_semantics<parallel>], iteration_bounds = array<i64: 2>, scalar_prefetch = 0 : i64, scratch_operands = 0 : i64, tpu.core_type = #tpu.core_type<tc>, window_params = [{transform_indices = @transform_0, window_bounds = array<i64: 1, 8, 326>}, {pipeline_mode = #tpu.pipeline_mode<synchronous>, transform_indices = @transform_1, window_bounds = array<i64: 8, 2>}, {transform_indices = @transform_2, window_bounds = array<i64: 1, 8, 326>}]} {
    %c0 = arith.constant 0 : index
    %c0_0 = arith.constant 0 : index
    %c0_1 = arith.constant 0 : index
    %0 = vector.load %arg1[%c0, %c0_0, %c0_1] : memref<1x8x326xf32, #tpu.memory_space<vmem>>, vector<1x8x326xf32>
    %1 = vector.shape_cast %0 : vector<1x8x326xf32> to vector<8x326xf32>
    %c0_2 = arith.constant 0 : index
    %c0_3 = arith.constant 0 : index
    %2 = vector.load %arg2[%c0_2, %c0_3] : memref<8x2xf32, #tpu.memory_space<vmem>>, vector<8x1xf32>
    %3 = vector.broadcast %2 : vector<8x1xf32> to vector<8x326xf32>
    %4 = arith.mulf %1, %3 : vector<8x326xf32>
    %c0_4 = arith.constant 0 : index
    %c1 = arith.constant 1 : index
    %5 = vector.load %arg2[%c0_4, %c1] : memref<8x2xf32, #tpu.memory_space<vmem>>, vector<8x1xf32>
    %6 = vector.broadcast %5 : vector<8x1xf32> to vector<8x326xf32>
    %7 = arith.addf %4, %6 : vector<8x326xf32>
    %cst = arith.constant 0.000000e+00 : f32
    %8 = vector.broadcast %cst : f32 to vector<8x326xf32>
    %9 = arith.maximumf %7, %8 : vector<8x326xf32>
    %c0_5 = arith.constant 0 : index
    %c0_6 = arith.constant 0 : index
    %c0_7 = arith.constant 0 : index
    %10 = vector.load %arg3[%c0_5, %c0_6, %c0_7] : memref<1x8x326xf32, #tpu.memory_space<vmem>>, vector<1x8x326xf32>
    %11 = vector.shape_cast %10 : vector<1x8x326xf32> to vector<8x326xf32>
    %12 = vector.shape_cast %9 : vector<8x326xf32> to vector<1x8x326xf32>
    tpu.vector_store %arg3[%c0_5, %c0_6, %c0_7], %12 {strides = array<i32>} : memref<1x8x326xf32, #tpu.memory_space<vmem>>, vector<1x8x326xf32>,
    return
  }
  func.func @transform_0(%arg0: i32) -> (i32, i32, i32) {
    %c0_i32 = arith.constant 0 : i32
    %c0_i32_0 = arith.constant 0 : i32
    %c0_i32_1 = arith.constant 0 : i32
    return %arg0, %c0_i32, %c0_i32_0 : i32, i32, i32
  }
  func.func @transform_1(%arg0: i32) -> (i32, i32) {
    %c0_i32 = arith.constant 0 : i32
    %c0_i32_0 = arith.constant 0 : i32
    %c0_i32_1 = arith.constant 0 : i32
    return %c0_i32, %c0_i32_0 : i32, i32
  }
  func.func @transform_2(%arg0: i32) -> (i32, i32, i32) {
    %c0_i32 = arith.constant 0 : i32
    %c0_i32_0 = arith.constant 0 : i32
    %c0_i32_1 = arith.constant 0 : i32
    return %arg0, %c0_i32, %c0_i32_0 : i32, i32, i32
  }
}

</mosaic_0001>

<llo_original>
// kernel: double_conv.5
$region0: #{double_conv.5}
  #allocation0 [shape = 'u32[]', space=smem, size = 0x4, offset = 0x4, fixed_abs, tag = 'smem constant byte address 0x4 - core index']
  #allocation1 [shape = 'u32[144,128]{1,0:T(1,128)}', space=vmem, size = 0x12000, scoped, tag = 'internal scratch']
  %s0 = inlined_call_operand.vmem [shape: f32[2,8,326], index: 0, kind: input, shape index: {}, may-alias: {0,2}]
  %s1 = inlined_call_operand.vmem [shape: f32[8,2], index: 1, kind: input, shape index: {}]
  %s2 = inlined_call_operand.vmem [shape: f32[2,8,326], index: 2, kind: output, shape index: {}, may-alias: {0,2}]
  %s3 = sld [smem:[#allocation0]]
  $region41: #{double_conv.5} parent=0
    _
  %s5 = ssub.s32 1, %s3
  %s6 = scalar_select 0, %s5, %s3
  loop: start=0, step=1, limit=4
  $region2: #{double_conv.5} parent=0 // loop_pre_header
    _
  $region3: #{double_conv.5} parent=0 // loop_header
    %s8 = sphi 0, %s12
    %p9 = scmp.ge.s32.totalorder %s8, 4
    %s18 = sphi 0, %s20
    %s21 = sphi 0, %s18
    %s22 = sphi 0, %s21
    %s38 = sphi 0, %s22
    %s42 = sphi 0, %s42
    %s44 = sphi 0, %s42
    %s45 = sphi 0, %s44
    %s59 = sphi 0, %s45
    %s65 = sphi 0, %s67
    %s68 = sphi 0, %s65
    %s69 = sphi 0, %s68
    %s85 = sphi 0, %s69
  $region4: #{double_conv.5} parent=0 // loop_header_branch
    %11 = sbr.rel (%p9) target = $region8
  $region5: #{double_conv.5} parent=0 // loop_body
    %s13 = ssub.s32 %s8, 1
    %s14 = ssub.s32 %s8, 2
    %s15 = sadd.s32 %s8, 1
    %s16 = ssub.s32 %s8, %s15
    %p17 = scmp.eq.s32.totalorder %s16, 0
    %s19 = sadd.s32 %s18, 1
    %s20 = scalar_select %p17, %s18, %s19
    %p23 = pneg %p17
    %p24 = scmp.eq.s32.totalorder %s8, 1
    %p25 = por %p23, %p24
    %p26 = scmp.ne.s32.totalorder %s18, %s21
    %p27 = scmp.eq.s32.totalorder %s8, 0
    %p28 = por %p26, %p27
    %p29 = scmp.ne.s32.totalorder %s18, %s21
    %p30 = scmp.eq.s32.totalorder %s13, 1
    %p31 = por %p29, %p30
    %p32 = scmp.ne.s32.totalorder %s21, %s22
    %p33 = scmp.eq.s32.totalorder %s13, 0
    %p34 = por %p32, %p33
    %p35 = scmp.ne.s32.totalorder %s21, %s22
    %p36 = scmp.eq.s32.totalorder %s14, 1
    %p37 = por %p35, %p36
    %p39 = scmp.ne.s32.totalorder %s22, %s38
    %p40 = scmp.eq.s32.totalorder %s14, 0
    %p41 = por %p39, %p40
    %s43 = sadd.s32 %s42, 1
    %p46 = scmp.eq.s32.totalorder %s8, 1
    %p47 = scmp.ne.s32.totalorder %s42, %s44
    %p48 = scmp.eq.s32.totalorder %s8, 0
    %p49 = por %p47, %p48
    %p50 = scmp.ne.s32.totalorder %s42, %s44
    %p51 = scmp.eq.s32.totalorder %s13, 1
    %p52 = por %p50, %p51
    %p53 = scmp.ne.s32.totalorder %s44, %s45
    %p54 = scmp.eq.s32.totalorder %s13, 0
    %p55 = por %p53, %p54
    %p56 = scmp.ne.s32.totalorder %s44, %s45
    %p57 = scmp.eq.s32.totalorder %s14, 1
    %p58 = por %p56, %p57
    %p60 = scmp.ne.s32.totalorder %s45, %s59
    %p61 = scmp.eq.s32.totalorder %s14, 0
    %p62 = por %p60, %p61
    %s63 = ssub.s32 %s8, %s15
    %p64 = scmp.eq.s32.totalorder %s63, 0
    %s66 = sadd.s32 %s65, 1
    %s67 = scalar_select %p64, %s65, %s66
    %p70 = pneg %p64
    %p71 = scmp.eq.s32.totalorder %s8, 1
    %p72 = por %p70, %p71
    %p73 = scmp.ne.s32.totalorder %s65, %s68
    %p74 = scmp.eq.s32.totalorder %s8, 0
    %p75 = por %p73, %p74
    %p76 = scmp.ne.s32.totalorder %s65, %s68
    %p77 = scmp.eq.s32.totalorder %s13, 1
    %p78 = por %p76, %p77
    %p79 = scmp.ne.s32.totalorder %s68, %s69
    %p80 = scmp.eq.s32.totalorder %s13, 0
    %p81 = por %p79, %p80
    %p82 = scmp.ne.s32.totalorder %s68, %s69
    %p83 = scmp.eq.s32.totalorder %s14, 1
    %p84 = por %p82, %p83
    %p86 = scmp.ne.s32.totalorder %s69, %s85
    %p87 = scmp.eq.s32.totalorder %s14, 0
    %p88 = por %p86, %p87
    %p89 = scmp.le.s32.totalorder 1, %s8
    %p90 = scmp.lt.s32.totalorder %s8, 3
    %p91 = pnand %p89, %p90
    %p92 = pneg %p91
    // Predicated region
    $region9: #{double_conv.5} parent=5 // pred_check
      _
    $region10: #{double_conv.5} parent=5 // pred_check_branch
      %94 = sbr.rel (%p91) target = $region12
    $region11: #{double_conv.5} parent=5 // pred_region
      %s95 = ssub.s32 %s8, 1
      // Predicated region
      $region13: #{double_conv.5} parent=11 // pred_check
        %p96 = pneg %p55
      $region14: #{double_conv.5} parent=11 // pred_check_branch
        %98 = sbr.rel (%p96) target = $region16
      $region15: #{double_conv.5} parent=11 // pred_region
        _
      $region16: #{double_conv.5} parent=11 // pred_fallthru
        _
    $region12: #{double_conv.5} parent=5 // pred_fallthru
      _
    %p99 = scmp.lt.s32.totalorder %s8, 2
    // Predicated region
    $region17: #{double_conv.5} parent=5 // pred_check
      %p100 = pneg %p99
    $region18: #{double_conv.5} parent=5 // pred_check_branch
      %102 = sbr.rel (%p100) target = $region20
    $region19: #{double_conv.5} parent=5 // pred_region
      // Predicated region
      $region21: #{double_conv.5} parent=19 // pred_check
        %p103 = pneg %p28
      $region22: #{double_conv.5} parent=19 // pred_check_branch
        %105 = sbr.rel (%p103) target = $region24
      $region23: #{double_conv.5} parent=19 // pred_region
        %p106 = scmp.lt.s32.totalorder %s8, 1
        %s107 = scalar_select %p106, %s8, 1
        %s108 = smul.addr %s107, 3
        %s109 = smul.addr %s108, 8
        %s110 = scalar_lea.vmem %s0, %s109
      $region24: #{double_conv.5} parent=19 // pred_fallthru
        _
    $region20: #{double_conv.5} parent=5 // pred_fallthru
      _
    %p111 = scmp.le.s32.totalorder 1, %s8
    %p112 = scmp.lt.s32.totalorder %s8, 3
    %p113 = pnand %p111, %p112
    %p114 = pneg %p113
    // Predicated region
    $region25: #{double_conv.5} parent=5 // pred_check
      _
    $region26: #{double_conv.5} parent=5 // pred_check_branch
      %116 = sbr.rel (%p113) target = $region28
    $region27: #{double_conv.5} parent=5 // pred_region
      %s117 = ssub.s32 %s8, 1
      %p118 = scmp.lt.s32.totalorder %s13, 1
      %s119 = scalar_select %p118, %s13, 1
      %s120 = smul.addr %s119, 3
      %s121 = smul.addr %s120, 8
      %s122 = scalar_lea.vmem %s0, %s121
      %p123 = pneg %p34
      %p124 = pneg %p31
      %p125 = pneg %p55
      %p126 = pneg %p52
      %p127 = pneg %p81
      %p128 = pneg %p78
      %p129 = scmp.lt.s32.totalorder %s13, 1
      %s130 = scalar_select %p129, %s13, 1
      %s131 = smul.addr %s130, 3
      %s132 = smul.addr %s131, 8
      %s133 = scalar_lea.vmem %s2, %s132
      %p134 = scmp.lt.s32.totalorder %s13, 1
      %s135 = scalar_select %p134, %s13, 1
      %s136 = smul.addr %s135, 3
      %s137 = smul.addr %s136, 8
      %s138 = scalar_lea.vmem %s0, %s137
      %p139 = scmp.lt.s32.totalorder %s13, 1
      %s140 = scalar_select %p139, %s13, 1
      %s141 = smul.addr %s140, 3
      %s142 = smul.addr %s141, 8
      %s143 = scalar_lea.vmem %s2, %s142
      %v144 = vld [vmem:[%s138] sm:$0xff]
      %v145 = vld [vmem:[%s138 + $0x8] sm:$0xff]
      %v146 = vld [vmem:[%s138 + $0x10] sm:$0xff]
      %v147 = vld [vmem:[%s1] sm:$0xff]
      %149 = vset.pattern.permute.xlu0 0
      %150 = vperm.xlu0 %149, %v147
      %v151 = vpop.permute.xlu0 %150
      %v153 = vmul.f32 %v144, %v151
      %v154 = vmul.f32 %v145, %v151
      %v155 = vmul.f32 %v146, %v151
      %156 = vset.pattern.permute.xlu0 1
      %157 = vperm.xlu0 %156, %v147
      %v158 = vpop.permute.xlu0 %157
      %v160 = vadd.f32 %v153, %v158
      %v161 = vadd.f32 %v154, %v158
      %v162 = vadd.f32 %v155, %v158
      %v163 = vmax.f32 %v160, 0.0
      %v164 = vmax.f32 %v161, 0.0
      %v165 = vmax.f32 %v162, 0.0
      %166 = vst [vmem:[%s143] sm:$0xff] %v163
      %167 = vst [vmem:[%s143 + $0x8] sm:$0xff] %v164
      %vm168 = vcmask 572416
      %169 = vst.msk [vmem:[%s143 + $0x10] sm:$0xff] %vm168, %v165
      %p170 = scmp.lt.s32.totalorder %s13, 1
      %s171 = scalar_select %p170, %s13, 1
      %s172 = smul.addr %s171, 3
      %s173 = smul.addr %s172, 8
      %s174 = scalar_lea.vmem %s2, %s173
      // Predicated region
      $region29: #{double_conv.5} parent=27 // pred_check
        %p175 = pneg %p78
      $region30: #{double_conv.5} parent=27 // pred_check_branch
        %177 = sbr.rel (%p175) target = $region32
      $region31: #{double_conv.5} parent=27 // pred_region
        _
      $region32: #{double_conv.5} parent=27 // pred_fallthru
        _
    $region28: #{double_conv.5} parent=5 // pred_fallthru
      _
    %p178 = scmp.le.s32.totalorder 2, %s8
    // Predicated region
    $region33: #{double_conv.5} parent=5 // pred_check
      %p179 = pneg %p178
    $region34: #{double_conv.5} parent=5 // pred_check_branch
      %181 = sbr.rel (%p179) target = $region36
    $region35: #{double_conv.5} parent=5 // pred_region
      %s182 = ssub.s32 %s8, 2
      // Predicated region
      $region37: #{double_conv.5} parent=35 // pred_check
        %p183 = pneg %p84
      $region38: #{double_conv.5} parent=35 // pred_check_branch
        %185 = sbr.rel (%p183) target = $region40
      $region39: #{double_conv.5} parent=35 // pred_region
        %p186 = scmp.lt.s32.totalorder %s14, 1
        %s187 = scalar_select %p186, %s14, 1
        %s188 = smul.addr %s187, 3
        %s189 = smul.addr %s188, 8
        %s190 = scalar_lea.vmem %s2, %s189
      $region40: #{double_conv.5} parent=35 // pred_fallthru
        _
    $region36: #{double_conv.5} parent=5 // pred_fallthru
      _
  $region6: #{double_conv.5} parent=0 // loop_footer
    %s12 = sadd.s32 1, %s8
  $region7: #{double_conv.5} parent=0 // loop_footer_branch
    %7 = sbr.rel target = $region3
  $region8: #{double_conv.5} parent=0 // loop_exit
    _

// kernel: double_conv.3
$region0: #{double_conv.3}
  #allocation0 [shape = 'u32[]', space=smem, size = 0x4, offset = 0x4, fixed_abs, tag = 'smem constant byte address 0x4 - core index']
  #allocation1 [shape = 'u32[144,128]{1,0:T(1,128)}', space=vmem, size = 0x12000, scoped, tag = 'internal scratch']
  %s0 = inlined_call_operand.vmem [shape: f32[2,4,326], index: 0, kind: input, shape index: {}]
  %s1 = inlined_call_operand.vmem [shape: f32[9,8,4], index: 1, kind: input, shape index: {}]
  %s2 = inlined_call_operand.vmem [shape: f32[1,288], index: 2, kind: input, shape index: {}]
  %s3 = inlined_call_operand.vmem [shape: f32[2,8,326], index: 3, kind: output, shape index: {0}]
  %s4 = inlined_call_operand.vmem [shape: f32[2,8,2], index: 4, kind: output, shape index: {1}]
  %5 = xla_tuple %s3, %s4
  %s6 = sld [smem:[#allocation0]]
  $region53: #{double_conv.3} parent=0
    _
  %s8 = ssub.s32 1, %s6
  %s9 = scalar_select 0, %s8, %s6
  loop: start=0, step=1, limit=4
  $region2: #{double_conv.3} parent=0 // loop_pre_header
    _
  $region3: #{double_conv.3} parent=0 // loop_header
    %s11 = sphi 0, %s15
    %p12 = scmp.ge.s32.totalorder %s11, 4
    %s21 = sphi 0, %s23
    %s24 = sphi 0, %s21
    %s25 = sphi 0, %s24
    %s41 = sphi 0, %s25
    %s45 = sphi 0, %s45
    %s47 = sphi 0, %s45
    %s48 = sphi 0, %s47
    %s62 = sphi 0, %s48
    %s66 = sphi 0, %s66
    %s68 = sphi 0, %s66
    %s69 = sphi 0, %s68
    %s83 = sphi 0, %s69
    %s89 = sphi 0, %s91
    %s92 = sphi 0, %s89
    %s93 = sphi 0, %s92
    %s109 = sphi 0, %s93
    %s115 = sphi 0, %s117
    %s118 = sphi 0, %s115
    %s119 = sphi 0, %s118
    %s135 = sphi 0, %s119
  $region4: #{double_conv.3} parent=0 // loop_header_branch
    %14 = sbr.rel (%p12) target = $region8
  $region5: #{double_conv.3} parent=0 // loop_body
    %s16 = ssub.s32 %s11, 1
    %s17 = ssub.s32 %s11, 2
    %s18 = sadd.s32 %s11, 1
    %s19 = ssub.s32 %s11, %s18
    %p20 = scmp.eq.s32.totalorder %s19, 0
    %s22 = sadd.s32 %s21, 1
    %s23 = scalar_select %p20, %s21, %s22
    %p26 = pneg %p20
    %p27 = scmp.eq.s32.totalorder %s11, 1
    %p28 = por %p26, %p27
    %p29 = scmp.ne.s32.totalorder %s21, %s24
    %p30 = scmp.eq.s32.totalorder %s11, 0
    %p31 = por %p29, %p30
    %p32 = scmp.ne.s32.totalorder %s21, %s24
    %p33 = scmp.eq.s32.totalorder %s16, 1
    %p34 = por %p32, %p33
    %p35 = scmp.ne.s32.totalorder %s24, %s25
    %p36 = scmp.eq.s32.totalorder %s16, 0
    %p37 = por %p35, %p36
    %p38 = scmp.ne.s32.totalorder %s24, %s25
    %p39 = scmp.eq.s32.totalorder %s17, 1
    %p40 = por %p38, %p39
    %p42 = scmp.ne.s32.totalorder %s25, %s41
    %p43 = scmp.eq.s32.totalorder %s17, 0
    %p44 = por %p42, %p43
    %s46 = sadd.s32 %s45, 1
    %p49 = scmp.eq.s32.totalorder %s11, 1
    %p50 = scmp.ne.s32.totalorder %s45, %s47
    %p51 = scmp.eq.s32.totalorder %s11, 0
    %p52 = por %p50, %p51
    %p53 = scmp.ne.s32.totalorder %s45, %s47
    %p54 = scmp.eq.s32.totalorder %s16, 1
    %p55 = por %p53, %p54
    %p56 = scmp.ne.s32.totalorder %s47, %s48
    %p57 = scmp.eq.s32.totalorder %s16, 0
    %p58 = por %p56, %p57
    %p59 = scmp.ne.s32.totalorder %s47, %s48
    %p60 = scmp.eq.s32.totalorder %s17, 1
    %p61 = por %p59, %p60
    %p63 = scmp.ne.s32.totalorder %s48, %s62
    %p64 = scmp.eq.s32.totalorder %s17, 0
    %p65 = por %p63, %p64
    %s67 = sadd.s32 %s66, 1
    %p70 = scmp.eq.s32.totalorder %s11, 1
    %p71 = scmp.ne.s32.totalorder %s66, %s68
    %p72 = scmp.eq.s32.totalorder %s11, 0
    %p73 = por %p71, %p72
    %p74 = scmp.ne.s32.totalorder %s66, %s68
    %p75 = scmp.eq.s32.totalorder %s16, 1
    %p76 = por %p74, %p75
    %p77 = scmp.ne.s32.totalorder %s68, %s69
    %p78 = scmp.eq.s32.totalorder %s16, 0
    %p79 = por %p77, %p78
    %p80 = scmp.ne.s32.totalorder %s68, %s69
    %p81 = scmp.eq.s32.totalorder %s17, 1
    %p82 = por %p80, %p81
    %p84 = scmp.ne.s32.totalorder %s69, %s83
    %p85 = scmp.eq.s32.totalorder %s17, 0
    %p86 = por %p84, %p85
    %s87 = ssub.s32 %s11, %s18
    %p88 = scmp.eq.s32.totalorder %s87, 0
    %s90 = sadd.s32 %s89, 1
    %s91 = scalar_select %p88, %s89, %s90
    %p94 = pneg %p88
    %p95 = scmp.eq.s32.totalorder %s11, 1
    %p96 = por %p94, %p95
    %p97 = scmp.ne.s32.totalorder %s89, %s92
    %p98 = scmp.eq.s32.totalorder %s11, 0
    %p99 = por %p97, %p98
    %p100 = scmp.ne.s32.totalorder %s89, %s92
    %p101 = scmp.eq.s32.totalorder %s16, 1
    %p102 = por %p100, %p101
    %p103 = scmp.ne.s32.totalorder %s92, %s93
    %p104 = scmp.eq.s32.totalorder %s16, 0
    %p105 = por %p103, %p104
    %p106 = scmp.ne.s32.totalorder %s92, %s93
    %p107 = scmp.eq.s32.totalorder %s17, 1
    %p108 = por %p106, %p107
    %p110 = scmp.ne.s32.totalorder %s93, %s109
    %p111 = scmp.eq.s32.totalorder %s17, 0
    %p112 = por %p110, %p111
    %s113 = ssub.s32 %s11, %s18
    %p114 = scmp.eq.s32.totalorder %s113, 0
    %s116 = sadd.s32 %s115, 1
    %s117 = scalar_select %p114, %s115, %s116
    %p120 = pneg %p114
    %p121 = scmp.eq.s32.totalorder %s11, 1
    %p122 = por %p120, %p121
    %p123 = scmp.ne.s32.totalorder %s115, %s118
    %p124 = scmp.eq.s32.totalorder %s11, 0
    %p125 = por %p123, %p124
    %p126 = scmp.ne.s32.totalorder %s115, %s118
    %p127 = scmp.eq.s32.totalorder %s16, 1
    %p128 = por %p126, %p127
    %p129 = scmp.ne.s32.totalorder %s118, %s119
    %p130 = scmp.eq.s32.totalorder %s16, 0
    %p131 = por %p129, %p130
    %p132 = scmp.ne.s32.totalorder %s118, %s119
    %p133 = scmp.eq.s32.totalorder %s17, 1
    %p134 = por %p132, %p133
    %p136 = scmp.ne.s32.totalorder %s119, %s135
    %p137 = scmp.eq.s32.totalorder %s17, 0
    %p138 = por %p136, %p137
    %p139 = scmp.le.s32.totalorder 1, %s11
    %p140 = scmp.lt.s32.totalorder %s11, 3
    %p141 = pnand %p139, %p140
    %p142 = pneg %p141
    // Predicated region
    $region9: #{double_conv.3} parent=5 // pred_check
      _
    $region10: #{double_conv.3} parent=5 // pred_check_branch
      %144 = sbr.rel (%p141) target = $region12
    $region11: #{double_conv.3} parent=5 // pred_region
      %s145 = ssub.s32 %s11, 1
      // Predicated region
      $region13: #{double_conv.3} parent=11 // pred_check
        %p146 = pneg %p58
      $region14: #{double_conv.3} parent=11 // pred_check_branch
        %148 = sbr.rel (%p146) target = $region16
      $region15: #{double_conv.3} parent=11 // pred_region
        _
      $region16: #{double_conv.3} parent=11 // pred_fallthru
        _
      // Predicated region
      $region17: #{double_conv.3} parent=11 // pred_check
        %p149 = pneg %p79
      $region18: #{double_conv.3} parent=11 // pred_check_branch
        %151 = sbr.rel (%p149) target = $region20
      $region19: #{double_conv.3} parent=11 // pred_region
        _
      $region20: #{double_conv.3} parent=11 // pred_fallthru
        _
    $region12: #{double_conv.3} parent=5 // pred_fallthru
      _
    %p152 = scmp.lt.s32.totalorder %s11, 2
    // Predicated region
    $region21: #{double_conv.3} parent=5 // pred_check
      %p153 = pneg %p152
    $region22: #{double_conv.3} parent=5 // pred_check_branch
      %155 = sbr.rel (%p153) target = $region24
    $region23: #{double_conv.3} parent=5 // pred_region
      // Predicated region
      $region25: #{double_conv.3} parent=23 // pred_check
        %p156 = pneg %p31
      $region26: #{double_conv.3} parent=23 // pred_check_branch
        %158 = sbr.rel (%p156) target = $region28
      $region27: #{double_conv.3} parent=23 // pred_region
        %p159 = scmp.lt.s32.totalorder %s11, 1
        %s160 = scalar_select %p159, %s11, 1
        %s161 = smul.addr %s160, 3
        %s162 = smul.addr %s161, 4
        %s163 = scalar_lea.vmem %s0, %s162
      $region28: #{double_conv.3} parent=23 // pred_fallthru
        _
    $region24: #{double_conv.3} parent=5 // pred_fallthru
      _
    %p164 = scmp.le.s32.totalorder 1, %s11
    %p165 = scmp.lt.s32.totalorder %s11, 3
    %p166 = pnand %p164, %p165
    %p167 = pneg %p166
    // Predicated region
    $region29: #{double_conv.3} parent=5 // pred_check
      _
    $region30: #{double_conv.3} parent=5 // pred_check_branch
      %169 = sbr.rel (%p166) target = $region32
    $region31: #{double_conv.3} parent=5 // pred_region
      %s170 = ssub.s32 %s11, 1
      %p171 = scmp.lt.s32.totalorder %s16, 1
      %s172 = scalar_select %p171, %s16, 1
      %s173 = smul.addr %s172, 3
      %s174 = smul.addr %s173, 4
      %s175 = scalar_lea.vmem %s0, %s174
      %p176 = pneg %p37
      %p177 = pneg %p34
      %p178 = pneg %p58
      %p179 = pneg %p55
      %p180 = pneg %p79
      %p181 = pneg %p76
      %p182 = pneg %p105
      %p183 = pneg %p102
      %p184 = scmp.lt.s32.totalorder %s16, 1
      %s185 = scalar_select %p184, %s16, 1
      %s186 = smul.addr %s185, 3
      %s187 = smul.addr %s186, 8
      %s188 = scalar_lea.vmem %s3, %s187
      %p189 = pneg %p131
      %p190 = pneg %p128
      %p191 = scmp.lt.s32.totalorder %s16, 1
      %s192 = scalar_select %p191, %s16, 1
      %s193 = smul.addr %s192, 8
      %s194 = scalar_lea.vmem %s4, %s193
      %p195 = scmp.lt.s32.totalorder %s16, 1
      %s196 = scalar_select %p195, %s16, 1
      %s197 = smul.addr %s196, 3
      %s198 = smul.addr %s197, 4
      %s199 = scalar_lea.vmem %s0, %s198
      %p200 = scmp.lt.s32.totalorder %s16, 1
      %s201 = scalar_select %p200, %s16, 1
      %s202 = smul.addr %s201, 3
      %s203 = smul.addr %s202, 8
      %s204 = scalar_lea.vmem %s3, %s203
      %p205 = scmp.lt.s32.totalorder %s16, 1
      %s206 = scalar_select %p205, %s16, 1
      %s207 = smul.addr %s206, 8
      %s208 = scalar_lea.vmem %s4, %s207
      %v209 = vld [vmem:[%s199] sm:$0xff]
      %v210 = vld [vmem:[%s199 + $0x8] sm:$0xf]
      %v211 = vld [vmem:[%s1] sm:$0xff]
      %s212 = scalar_lea.vmem %s1, 8
      %v213 = vld [vmem:[%s212] sm:$0xff]
      %v216 = vcombine.high %v209, %v209
      %217 = vrot.lane.b32.xlu0 %v209, 127
      %v218 = vpop.permute.xlu0 %217
      %219 = vrot.lane.b32.xlu0 %v216, 127
      %v220 = vpop.permute.xlu0 %219
      %221 = vrot.lane.b32.xlu0 %v210, 127
      %v222 = vpop.permute.xlu0 %221
      %vm223 = vcmask 1039360
      %v224 = vsel %vm223, %v218, %v220
      %v225 = vsel %vm223, %v220, %v222
      %vm226 = vcmask 31744
      %v228 = vsel %vm226, %v213, 0
      %vm230 = vcmask 1043456
      %v231 = vsel %vm230, %v224, 0
      %v233 = vsel %vm230, %v225, 0
      %v235 = vsel %vm230, %v222, 0
      %237 = vmatprep.subr.mxu0 %v233
      %238 = vmatpush1.msra.mxu0 %v231
      %239 = vmatprep.subr.mxu0 0.0
      %240 = vmatpush1.msra.mxu0 0.0
      %241 = vmatprep.subr.mxu0 0.0
      %242 = vmatpush1.msra.mxu0 0.0
      %243 = vmatprep.subr.mxu0 0.0
      %244 = vmatpush1.msra.mxu0 0.0
      %245 = vmatprep.subr.mxu0 0.0
      %246 = vmatpush1.msra.mxu0 0.0
      %247 = vmatprep.subr.mxu0 0.0
      %248 = vmatpush1.msra.mxu0 0.0
      %249 = vmatprep.subr.mxu0 0.0
      %250 = vmatpush1.msra.mxu0 0.0
      %251 = vmatprep.subr.mxu0 0.0
      %252 = vmatpush1.msra.mxu0 0.0
      %253 = vmatprep.subr.mxu0 0.0
      %254 = vmatpush1.msra.mxu0 0.0
      %255 = vmatprep.subr.mxu0 0.0
      %256 = vmatpush1.msra.mxu0 0.0
      %257 = vmatprep.subr.mxu0 0.0
      %258 = vmatpush1.msra.mxu0 0.0
      %259 = vmatprep.subr.mxu0 0.0
      %260 = vmatpush1.msra.mxu0 0.0
      %261 = vmatprep.subr.mxu0 0.0
      %262 = vmatpush1.msra.mxu0 0.0
      %263 = vmatprep.subr.mxu0 0.0
      %264 = vmatpush1.msra.mxu0 0.0
      %265 = vmatprep.subr.mxu0 0.0
      %266 = vmatpush1.msra.mxu0 0.0
      %267 = vmatprep.subr.mxu0 0.0
      %268 = vmatpush1.msra.mxu0 0.0
      %269 = vmatprep.subr.mxu0 0.0
      %270 = vmatpush1.msra.mxu0 0.0
      %271 = vmatprep.subr.mxu0 0.0
      %272 = vmatpush1.msra.mxu0 0.0
      %273 = vmatprep.subr.mxu0 0.0
      %274 = vmatpush1.msra.mxu0 0.0
      %275 = vmatprep.subr.mxu0 0.0
      %276 = vmatpush1.msra.mxu0 0.0
      %277 = vmatprep.subr.mxu0 0.0
      %278 = vmatpush1.msra.mxu0 0.0
      %279 = vmatprep.subr.mxu0 0.0
      %280 = vmatpush1.msra.mxu0 0.0
      %281 = vmatprep.subr.mxu0 0.0
      %282 = vmatpush1.msra.mxu0 0.0
      %283 = vmatprep.subr.mxu0 0.0
      %284 = vmatpush1.msra.mxu0 0.0
      %285 = vmatprep.subr.mxu0 0.0
      %286 = vmatpush1.msra.mxu0 0.0
      %287 = vmatprep.subr.mxu0 0.0
      %288 = vmatpush1.msra.mxu0 0.0
      %289 = vmatprep.subr.mxu0 0.0
      %290 = vmatpush1.msra.mxu0 0.0
      %291 = vmatprep.subr.mxu0 0.0
      %292 = vmatpush1.msra.mxu0 0.0
      %293 = vmatprep.subr.mxu0 0.0
      %294 = vmatpush1.msra.mxu0 0.0
      %295 = vmatprep.subr.mxu0 0.0
      %296 = vmatpush1.msra.mxu0 0.0
      %297 = vmatprep.subr.mxu0 0.0
      %298 = vmatpush1.msra.mxu0 0.0
      %299 = vmatprep.subr.mxu0 0.0
      %300 = vmatpush1.msra.mxu0 0.0
      %301 = vmatprep.mubr.f32.mxu0 0.0
      %302 = vmatmul.mubr.f32.gmra.mrb[0].mxu0 %v228
      %v303 = vpop.f32.mrb[0].mxu0
      %v304 = vadd.f32 0.0, %v303
      %v305 = vpop.f32.mrb[0].mxu0
      %v306 = vadd.f32 0.0, %v305
      %307 = vdwg.mxu0
      %308 = vmatprep.subr.mxu0 0.0
      %309 = vmatpush1.msra.mxu0 %v235
      %310 = vmatprep.subr.mxu0 0.0
      %311 = vmatpush1.msra.mxu0 0.0
      %312 = vmatprep.subr.mxu0 0.0
      %313 = vmatpush1.msra.mxu0 0.0
      %314 = vmatprep.subr.mxu0 0.0
      %315 = vmatpush1.msra.mxu0 0.0
      %316 = vmatprep.subr.mxu0 0.0
      %317 = vmatpush1.msra.mxu0 0.0
      %318 = vmatprep.subr.mxu0 0.0
      %319 = vmatpush1.msra.mxu0 0.0
      %320 = vmatprep.subr.mxu0 0.0
      %321 = vmatpush1.msra.mxu0 0.0
      %322 = vmatprep.subr.mxu0 0.0
      %323 = vmatpush1.msra.mxu0 0.0
      %324 = vmatprep.subr.mxu0 0.0
      %325 = vmatpush1.msra.mxu0 0.0
      %326 = vmatprep.subr.mxu0 0.0
      %327 = vmatpush1.msra.mxu0 0.0
      %328 = vmatprep.subr.mxu0 0.0
      %329 = vmatpush1.msra.mxu0 0.0
      %330 = vmatprep.subr.mxu0 0.0
      %331 = vmatpush1.msra.mxu0 0.0
      %332 = vmatprep.subr.mxu0 0.0
      %333 = vmatpush1.msra.mxu0 0.0
      %334 = vmatprep.subr.mxu0 0.0
      %335 = vmatpush1.msra.mxu0 0.0
      %336 = vmatprep.subr.mxu0 0.0
      %337 = vmatpush1.msra.mxu0 0.0
      %338 = vmatprep.subr.mxu0 0.0
      %339 = vmatpush1.msra.mxu0 0.0
      %340 = vmatprep.subr.mxu0 0.0
      %341 = vmatpush1.msra.mxu0 0.0
      %342 = vmatprep.subr.mxu0 0.0
      %343 = vmatpush1.msra.mxu0 0.0
      %344 = vmatprep.subr.mxu0 0.0
      %345 = vmatpush1.msra.mxu0 0.0
      %346 = vmatprep.subr.mxu0 0.0
      %347 = vmatpush1.msra.mxu0 0.0
      %348 = vmatprep.subr.mxu0 0.0
      %349 = vmatpush1.msra.mxu0 0.0
      %350 = vmatprep.subr.mxu0 0.0
      %351 = vmatpush1.msra.mxu0 0.0
      %352 = vmatprep.subr.mxu0 0.0
      %353 = vmatpush1.msra.mxu0 0.0
      %354 = vmatprep.subr.mxu0 0.0
      %355 = vmatpush1.msra.mxu0 0.0
      %356 = vmatprep.subr.mxu0 0.0
      %357 = vmatpush1.msra.mxu0 0.0
      %358 = vmatprep.subr.mxu0 0.0
      %359 = vmatpush1.msra.mxu0 0.0
      %360 = vmatprep.subr.mxu0 0.0
      %361 = vmatpush1.msra.mxu0 0.0
      %362 = vmatprep.subr.mxu0 0.0
      %363 = vmatpush1.msra.mxu0 0.0
      %364 = vmatprep.subr.mxu0 0.0
      %365 = vmatpush1.msra.mxu0 0.0
      %366 = vmatprep.subr.mxu0 0.0
      %367 = vmatpush1.msra.mxu0 0.0
      %368 = vmatprep.subr.mxu0 0.0
      %369 = vmatpush1.msra.mxu0 0.0
      %370 = vmatprep.subr.mxu0 0.0
      %371 = vmatpush1.msra.mxu0 0.0
      %372 = vmatprep.mubr.f32.mxu0 0.0
      %373 = vmatmul.mubr.f32.gmra.mrb[0].mxu0 %v228
      %v374 = vpop.f32.mrb[0].mxu0
      %v375 = vadd.f32 0.0, %v374
      %v376 = vpop.f32.mrb[0].mxu0
      %377 = vdwg.mxu0
      %v379 = vsel %vm226, %v211, 0
      %v381 = vsel %vm230, %v209, 0
      %v383 = vsel %vm230, %v216, 0
      %v385 = vsel %vm230, %v210, 0
      %387 = vmatprep.subr.mxu0 %v383
      %388 = vmatpush1.msra.mxu0 %v381
      %389 = vmatprep.subr.mxu0 0.0
      %390 = vmatpush1.msra.mxu0 0.0
      %391 = vmatprep.subr.mxu0 0.0
      %392 = vmatpush1.msra.mxu0 0.0
      %393 = vmatprep.subr.mxu0 0.0
      %394 = vmatpush1.msra.mxu0 0.0
      %395 = vmatprep.subr.mxu0 0.0
      %396 = vmatpush1.msra.mxu0 0.0
      %397 = vmatprep.subr.mxu0 0.0
      %398 = vmatpush1.msra.mxu0 0.0
      %399 = vmatprep.subr.mxu0 0.0
      %400 = vmatpush1.msra.mxu0 0.0
      %401 = vmatprep.subr.mxu0 0.0
      %402 = vmatpush1.msra.mxu0 0.0
      %403 = vmatprep.subr.mxu0 0.0
      %404 = vmatpush1.msra.mxu0 0.0
      %405 = vmatprep.subr.mxu0 0.0
      %406 = vmatpush1.msra.mxu0 0.0
      %407 = vmatprep.subr.mxu0 0.0
      %408 = vmatpush1.msra.mxu0 0.0
      %409 = vmatprep.subr.mxu0 0.0
      %410 = vmatpush1.msra.mxu0 0.0
      %411 = vmatprep.subr.mxu0 0.0
      %412 = vmatpush1.msra.mxu0 0.0
      %413 = vmatprep.subr.mxu0 0.0
      %414 = vmatpush1.msra.mxu0 0.0
      %415 = vmatprep.subr.mxu0 0.0
      %416 = vmatpush1.msra.mxu0 0.0
      %417 = vmatprep.subr.mxu0 0.0
      %418 = vmatpush1.msra.mxu0 0.0
      %419 = vmatprep.subr.mxu0 0.0
      %420 = vmatpush1.msra.mxu0 0.0
      %421 = vmatprep.subr.mxu0 0.0
      %422 = vmatpush1.msra.mxu0 0.0
      %423 = vmatprep.subr.mxu0 0.0
      %424 = vmatpush1.msra.mxu0 0.0
      %425 = vmatprep.subr.mxu0 0.0
      %426 = vmatpush1.msra.mxu0 0.0
      %427 = vmatprep.subr.mxu0 0.0
      %428 = vmatpush1.msra.mxu0 0.0
      %429 = vmatprep.subr.mxu0 0.0
      %430 = vmatpush1.msra.mxu0 0.0
      %431 = vmatprep.subr.mxu0 0.0
      %432 = vmatpush1.msra.mxu0 0.0
      %433 = vmatprep.subr.mxu0 0.0
      %434 = vmatpush1.msra.mxu0 0.0
      %435 = vmatprep.subr.mxu0 0.0
      %436 = vmatpush1.msra.mxu0 0.0
      %437 = vmatprep.subr.mxu0 0.0
      %438 = vmatpush1.msra.mxu0 0.0
      %439 = vmatprep.subr.mxu0 0.0
      %440 = vmatpush1.msra.mxu0 0.0
      %441 = vmatprep.subr.mxu0 0.0
      %442 = vmatpush1.msra.mxu0 0.0
      %443 = vmatprep.subr.mxu0 0.0
      %444 = vmatpush1.msra.mxu0 0.0
      %445 = vmatprep.subr.mxu0 0.0
      %446 = vmatpush1.msra.mxu0 0.0
      %447 = vmatprep.subr.mxu0 0.0
      %448 = vmatpush1.msra.mxu0 0.0
      %449 = vmatprep.subr.mxu0 0.0
      %450 = vmatpush1.msra.mxu0 0.0
      %451 = vmatprep.mubr.f32.mxu0 0.0
      %452 = vmatmul.mubr.f32.gmra.mrb[0].mxu0 %v379
      %v453 = vpop.f32.mrb[0].mxu0
      %v454 = vadd.f32 %v304, %v453
      %v455 = vpop.f32.mrb[0].mxu0
      %v456 = vadd.f32 %v306, %v455
      %457 = vdwg.mxu0
      %458 = vmatprep.subr.mxu0 0.0
      %459 = vmatpush1.msra.mxu0 %v385
      %460 = vmatprep.subr.mxu0 0.0
      %461 = vmatpush1.msra.mxu0 0.0
      %462 = vmatprep.subr.mxu0 0.0
      %463 = vmatpush1.msra.mxu0 0.0
      %464 = vmatprep.subr.mxu0 0.0
      %465 = vmatpush1.msra.mxu0 0.0
      %466 = vmatprep.subr.mxu0 0.0
      %467 = vmatpush1.msra.mxu0 0.0
      %468 = vmatprep.subr.mxu0 0.0
      %469 = vmatpush1.msra.mxu0 0.0
      %470 = vmatprep.subr.mxu0 0.0
      %471 = vmatpush1.msra.mxu0 0.0
      %472 = vmatprep.subr.mxu0 0.0
      %473 = vmatpush1.msra.mxu0 0.0
      %474 = vmatprep.subr.mxu0 0.0
      %475 = vmatpush1.msra.mxu0 0.0
      %476 = vmatprep.subr.mxu0 0.0
      %477 = vmatpush1.msra.mxu0 0.0
      %478 = vmatprep.subr.mxu0 0.0
      %479 = vmatpush1.msra.mxu0 0.0
      %480 = vmatprep.subr.mxu0 0.0
      %481 = vmatpush1.msra.mxu0 0.0
      %482 = vmatprep.subr.mxu0 0.0
      %483 = vmatpush1.msra.mxu0 0.0
      %484 = vmatprep.subr.mxu0 0.0
      %485 = vmatpush1.msra.mxu0 0.0
      %486 = vmatprep.subr.mxu0 0.0
      %487 = vmatpush1.msra.mxu0 0.0
      %488 = vmatprep.subr.mxu0 0.0
      %489 = vmatpush1.msra.mxu0 0.0
      %490 = vmatprep.subr.mxu0 0.0
      %491 = vmatpush1.msra.mxu0 0.0
      %492 = vmatprep.subr.mxu0 0.0
      %493 = vmatpush1.msra.mxu0 0.0
      %494 = vmatprep.subr.mxu0 0.0
      %495 = vmatpush1.msra.mxu0 0.0
      %496 = vmatprep.subr.mxu0 0.0
      %497 = vmatpush1.msra.mxu0 0.0
      %498 = vmatprep.subr.mxu0 0.0
      %499 = vmatpush1.msra.mxu0 0.0
      %500 = vmatprep.subr.mxu0 0.0
      %501 = vmatpush1.msra.mxu0 0.0
      %502 = vmatprep.subr.mxu0 0.0
      %503 = vmatpush1.msra.mxu0 0.0
      %504 = vmatprep.subr.mxu0 0.0
      %505 = vmatpush1.msra.mxu0 0.0
      %506 = vmatprep.subr.mxu0 0.0
      %507 = vmatpush1.msra.mxu0 0.0
      %508 = vmatprep.subr.mxu0 0.0
      %509 = vmatpush1.msra.mxu0 0.0
      %510 = vmatprep.subr.mxu0 0.0
      %511 = vmatpush1.msra.mxu0 0.0
      %512 = vmatprep.subr.mxu0 0.0
      %513 = vmatpush1.msra.mxu0 0.0
      %514 = vmatprep.subr.mxu0 0.0
      %515 = vmatpush1.msra.mxu0 0.0
      %516 = vmatprep.subr.mxu0 0.0
      %517 = vmatpush1.msra.mxu0 0.0
      %518 = vmatprep.subr.mxu0 0.0
      %519 = vmatpush1.msra.mxu0 0.0
      %520 = vmatprep.subr.mxu0 0.0
      %521 = vmatpush1.msra.mxu0 0.0
      %522 = vmatprep.mubr.f32.mxu0 0.0
      %523 = vmatmul.mubr.f32.gmra.mrb[0].mxu0 %v379
      %v524 = vpop.f32.mrb[0].mxu0
      %v525 = vadd.f32 %v375, %v524
      %v526 = vpop.f32.mrb[0].mxu0
      %527 = vdwg.mxu0
      %s528 = scalar_lea.vmem %s1, 16
      %v529 = vld [vmem:[%s528] sm:$0xff]
      %530 = vrot.lane.b32.xlu0 %v209, 126
      %v531 = vpop.permute.xlu0 %530
      %532 = vrot.lane.b32.xlu0 %v216, 126
      %v533 = vpop.permute.xlu0 %532
      %534 = vrot.lane.b32.xlu0 %v210, 126
      %v535 = vpop.permute.xlu0 %534
      %vm536 = vcmask 1031168
      %v537 = vsel %vm536, %v531, %v533
      %v538 = vsel %vm536, %v533, %v535
      %v540 = vsel %vm226, %v529, 0
      %v542 = vsel %vm230, %v537, 0
      %v544 = vsel %vm230, %v538, 0
      %v546 = vsel %vm230, %v535, 0
      %548 = vmatprep.subr.mxu0 %v544
      %549 = vmatpush1.msra.mxu0 %v542
      %550 = vmatprep.subr.mxu0 0.0
      %551 = vmatpush1.msra.mxu0 0.0
      %552 = vmatprep.subr.mxu0 0.0
      %553 = vmatpush1.msra.mxu0 0.0
      %554 = vmatprep.subr.mxu0 0.0
      %555 = vmatpush1.msra.mxu0 0.0
      %556 = vmatprep.subr.mxu0 0.0
      %557 = vmatpush1.msra.mxu0 0.0
      %558 = vmatprep.subr.mxu0 0.0
      %559 = vmatpush1.msra.mxu0 0.0
      %560 = vmatprep.subr.mxu0 0.0
      %561 = vmatpush1.msra.mxu0 0.0
      %562 = vmatprep.subr.mxu0 0.0
      %563 = vmatpush1.msra.mxu0 0.0
      %564 = vmatprep.subr.mxu0 0.0
      %565 = vmatpush1.msra.mxu0 0.0
      %566 = vmatprep.subr.mxu0 0.0
      %567 = vmatpush1.msra.mxu0 0.0
      %568 = vmatprep.subr.mxu0 0.0
      %569 = vmatpush1.msra.mxu0 0.0
      %570 = vmatprep.subr.mxu0 0.0
      %571 = vmatpush1.msra.mxu0 0.0
      %572 = vmatprep.subr.mxu0 0.0
      %573 = vmatpush1.msra.mxu0 0.0
      %574 = vmatprep.subr.mxu0 0.0
      %575 = vmatpush1.msra.mxu0 0.0
      %576 = vmatprep.subr.mxu0 0.0
      %577 = vmatpush1.msra.mxu0 0.0
      %578 = vmatprep.subr.mxu0 0.0
      %579 = vmatpush1.msra.mxu0 0.0
      %580 = vmatprep.subr.mxu0 0.0
      %581 = vmatpush1.msra.mxu0 0.0
      %582 = vmatprep.subr.mxu0 0.0
      %583 = vmatpush1.msra.mxu0 0.0
      %584 = vmatprep.subr.mxu0 0.0
      %585 = vmatpush1.msra.mxu0 0.0
      %586 = vmatprep.subr.mxu0 0.0
      %587 = vmatpush1.msra.mxu0 0.0
      %588 = vmatprep.subr.mxu0 0.0
      %589 = vmatpush1.msra.mxu0 0.0
      %590 = vmatprep.subr.mxu0 0.0
      %591 = vmatpush1.msra.mxu0 0.0
      %592 = vmatprep.subr.mxu0 0.0
      %593 = vmatpush1.msra.mxu0 0.0
      %594 = vmatprep.subr.mxu0 0.0
      %595 = vmatpush1.msra.mxu0 0.0
      %596 = vmatprep.subr.mxu0 0.0
      %597 = vmatpush1.msra.mxu0 0.0
      %598 = vmatprep.subr.mxu0 0.0
      %599 = vmatpush1.msra.mxu0 0.0
      %600 = vmatprep.subr.mxu0 0.0
      %601 = vmatpush1.msra.mxu0 0.0
      %602 = vmatprep.subr.mxu0 0.0
      %603 = vmatpush1.msra.mxu0 0.0
      %604 = vmatprep.subr.mxu0 0.0
      %605 = vmatpush1.msra.mxu0 0.0
      %606 = vmatprep.subr.mxu0 0.0
      %607 = vmatpush1.msra.mxu0 0.0
      %608 = vmatprep.subr.mxu0 0.0
      %609 = vmatpush1.msra.mxu0 0.0
      %610 = vmatprep.subr.mxu0 0.0
      %611 = vmatpush1.msra.mxu0 0.0
      %612 = vmatprep.mubr.f32.mxu0 0.0
      %613 = vmatmul.mubr.f32.gmra.mrb[0].mxu0 %v540
      %v614 = vpop.f32.mrb[0].mxu0
      %v615 = vadd.f32 0.0, %v614
      %v616 = vpop.f32.mrb[0].mxu0
      %v617 = vadd.f32 0.0, %v616
      %618 = vdwg.mxu0
      %619 = vmatprep.subr.mxu0 0.0
      %620 = vmatpush1.msra.mxu0 %v546
      %621 = vmatprep.subr.mxu0 0.0
      %622 = vmatpush1.msra.mxu0 0.0
      %623 = vmatprep.subr.mxu0 0.0
      %624 = vmatpush1.msra.mxu0 0.0
      %625 = vmatprep.subr.mxu0 0.0
      %626 = vmatpush1.msra.mxu0 0.0
      %627 = vmatprep.subr.mxu0 0.0
      %628 = vmatpush1.msra.mxu0 0.0
      %629 = vmatprep.subr.mxu0 0.0
      %630 = vmatpush1.msra.mxu0 0.0
      %631 = vmatprep.subr.mxu0 0.0
      %632 = vmatpush1.msra.mxu0 0.0
      %633 = vmatprep.subr.mxu0 0.0
      %634 = vmatpush1.msra.mxu0 0.0
      %635 = vmatprep.subr.mxu0 0.0
      %636 = vmatpush1.msra.mxu0 0.0
      %637 = vmatprep.subr.mxu0 0.0
      %638 = vmatpush1.msra.mxu0 0.0
      %639 = vmatprep.subr.mxu0 0.0
      %640 = vmatpush1.msra.mxu0 0.0
      %641 = vmatprep.subr.mxu0 0.0
      %642 = vmatpush1.msra.mxu0 0.0
      %643 = vmatprep.subr.mxu0 0.0
      %644 = vmatpush1.msra.mxu0 0.0
      %645 = vmatprep.subr.mxu0 0.0
      %646 = vmatpush1.msra.mxu0 0.0
      %647 = vmatprep.subr.mxu0 0.0
      %648 = vmatpush1.msra.mxu0 0.0
      %649 = vmatprep.subr.mxu0 0.0
      %650 = vmatpush1.msra.mxu0 0.0
      %651 = vmatprep.subr.mxu0 0.0
      %652 = vmatpush1.msra.mxu0 0.0
      %653 = vmatprep.subr.mxu0 0.0
      %654 = vmatpush1.msra.mxu0 0.0
      %655 = vmatprep.subr.mxu0 0.0
      %656 = vmatpush1.msra.mxu0 0.0
      %657 = vmatprep.subr.mxu0 0.0
      %658 = vmatpush1.msra.mxu0 0.0
      %659 = vmatprep.subr.mxu0 0.0
      %660 = vmatpush1.msra.mxu0 0.0
      %661 = vmatprep.subr.mxu0 0.0
      %662 = vmatpush1.msra.mxu0 0.0
      %663 = vmatprep.subr.mxu0 0.0
      %664 = vmatpush1.msra.mxu0 0.0
      %665 = vmatprep.subr.mxu0 0.0
      %666 = vmatpush1.msra.mxu0 0.0
      %667 = vmatprep.subr.mxu0 0.0
      %668 = vmatpush1.msra.mxu0 0.0
      %669 = vmatprep.subr.mxu0 0.0
      %670 = vmatpush1.msra.mxu0 0.0
      %671 = vmatprep.subr.mxu0 0.0
      %672 = vmatpush1.msra.mxu0 0.0
      %673 = vmatprep.subr.mxu0 0.0
      %674 = vmatpush1.msra.mxu0 0.0
      %675 = vmatprep.subr.mxu0 0.0
      %676 = vmatpush1.msra.mxu0 0.0
      %677 = vmatprep.subr.mxu0 0.0
      %678 = vmatpush1.msra.mxu0 0.0
      %679 = vmatprep.subr.mxu0 0.0
      %680 = vmatpush1.msra.mxu0 0.0
      %681 = vmatprep.subr.mxu0 0.0
      %682 = vmatpush1.msra.mxu0 0.0
      %683 = vmatprep.mubr.f32.mxu0 0.0
      %684 = vmatmul.mubr.f32.gmra.mrb[0].mxu0 %v540
      %v685 = vpop.f32.mrb[0].mxu0
      %v686 = vadd.f32 0.0, %v685
      %v687 = vpop.f32.mrb[0].mxu0
      %688 = vdwg.mxu0
      %v689 = vadd.f32 %v454, %v615
      %v690 = vadd.f32 %v456, %v617
      %v691 = vadd.f32 %v525, %v686
      %s692 = scalar_lea.vmem %s1, 24
      %v693 = vld [vmem:[%s692] sm:$0xff]
      %694 = vrot.lane.b32.xlu0 %v209, 110
      %v695 = vpop.permute.xlu0 %694
      %696 = vrot.lane.b32.xlu0 %v216, 110
      %v697 = vpop.permute.xlu0 %696
      %698 = vrot.lane.b32.xlu0 %v210, 110
      %v699 = vpop.permute.xlu0 %698
      %vm700 = vcmask 900096
      %v701 = vsel %vm700, %v695, %v697
      %v702 = vsel %vm700, %v697, %v699
      %v704 = vsel %vm226, %v693, 0
      %v706 = vsel %vm230, %v701, 0
      %v708 = vsel %vm230, %v702, 0
      %v710 = vsel %vm230, %v699, 0
      %712 = vmatprep.subr.mxu0 %v708
      %713 = vmatpush1.msra.mxu0 %v706
      %714 = vmatprep.subr.mxu0 0.0
      %715 = vmatpush1.msra.mxu0 0.0
      %716 = vmatprep.subr.mxu0 0.0
      %717 = vmatpush1.msra.mxu0 0.0
      %718 = vmatprep.subr.mxu0 0.0
      %719 = vmatpush1.msra.mxu0 0.0
      %720 = vmatprep.subr.mxu0 0.0
      %721 = vmatpush1.msra.mxu0 0.0
      %722 = vmatprep.subr.mxu0 0.0
      %723 = vmatpush1.msra.mxu0 0.0
      %724 = vmatprep.subr.mxu0 0.0
      %725 = vmatpush1.msra.mxu0 0.0
      %726 = vmatprep.subr.mxu0 0.0
      %727 = vmatpush1.msra.mxu0 0.0
      %728 = vmatprep.subr.mxu0 0.0
      %729 = vmatpush1.msra.mxu0 0.0
      %730 = vmatprep.subr.mxu0 0.0
      %731 = vmatpush1.msra.mxu0 0.0
      %732 = vmatprep.subr.mxu0 0.0
      %733 = vmatpush1.msra.mxu0 0.0
      %734 = vmatprep.subr.mxu0 0.0
      %735 = vmatpush1.msra.mxu0 0.0
      %736 = vmatprep.subr.mxu0 0.0
      %737 = vmatpush1.msra.mxu0 0.0
      %738 = vmatprep.subr.mxu0 0.0
      %739 = vmatpush1.msra.mxu0 0.0
      %740 = vmatprep.subr.mxu0 0.0
      %741 = vmatpush1.msra.mxu0 0.0
      %742 = vmatprep.subr.mxu0 0.0
      %743 = vmatpush1.msra.mxu0 0.0
      %744 = vmatprep.subr.mxu0 0.0
      %745 = vmatpush1.msra.mxu0 0.0
      %746 = vmatprep.subr.mxu0 0.0
      %747 = vmatpush1.msra.mxu0 0.0
      %748 = vmatprep.subr.mxu0 0.0
      %749 = vmatpush1.msra.mxu0 0.0
      %750 = vmatprep.subr.mxu0 0.0
      %751 = vmatpush1.msra.mxu0 0.0
      %752 = vmatprep.subr.mxu0 0.0
      %753 = vmatpush1.msra.mxu0 0.0
      %754 = vmatprep.subr.mxu0 0.0
      %755 = vmatpush1.msra.mxu0 0.0
      %756 = vmatprep.subr.mxu0 0.0
      %757 = vmatpush1.msra.mxu0 0.0
      %758 = vmatprep.subr.mxu0 0.0
      %759 = vmatpush1.msra.mxu0 0.0
      %760 = vmatprep.subr.mxu0 0.0
      %761 = vmatpush1.msra.mxu0 0.0
      %762 = vmatprep.subr.mxu0 0.0
      %763 = vmatpush1.msra.mxu0 0.0
      %764 = vmatprep.subr.mxu0 0.0
      %765 = vmatpush1.msra.mxu0 0.0
      %766 = vmatprep.subr.mxu0 0.0
      %767 = vmatpush1.msra.mxu0 0.0
      %768 = vmatprep.subr.mxu0 0.0
      %769 = vmatpush1.msra.mxu0 0.0
      %770 = vmatprep.subr.mxu0 0.0
      %771 = vmatpush1.msra.mxu0 0.0
      %772 = vmatprep.subr.mxu0 0.0
      %773 = vmatpush1.msra.mxu0 0.0
      %774 = vmatprep.subr.mxu0 0.0
      %775 = vmatpush1.msra.mxu0 0.0
      %776 = vmatprep.mubr.f32.mxu0 0.0
      %777 = vmatmul.mubr.f32.gmra.mrb[0].mxu0 %v704
      %v778 = vpop.f32.mrb[0].mxu0
      %v779 = vadd.f32 0.0, %v778
      %v780 = vpop.f32.mrb[0].mxu0
      %v781 = vadd.f32 0.0, %v780
      %782 = vdwg.mxu0
      %783 = vmatprep.subr.mxu0 0.0
      %784 = vmatpush1.msra.mxu0 %v710
      %785 = vmatprep.subr.mxu0 0.0
      %786 = vmatpush1.msra.mxu0 0.0
      %787 = vmatprep.subr.mxu0 0.0
      %788 = vmatpush1.msra.mxu0 0.0
      %789 = vmatprep.subr.mxu0 0.0
      %790 = vmatpush1.msra.mxu0 0.0
      %791 = vmatprep.subr.mxu0 0.0
      %792 = vmatpush1.msra.mxu0 0.0
      %793 = vmatprep.subr.mxu0 0.0
      %794 = vmatpush1.msra.mxu0 0.0
      %795 = vmatprep.subr.mxu0 0.0
      %796 = vmatpush1.msra.mxu0 0.0
      %797 = vmatprep.subr.mxu0 0.0
      %798 = vmatpush1.msra.mxu0 0.0
      %799 = vmatprep.subr.mxu0 0.0
      %800 = vmatpush1.msra.mxu0 0.0
      %801 = vmatprep.subr.mxu0 0.0
      %802 = vmatpush1.msra.mxu0 0.0
      %803 = vmatprep.subr.mxu0 0.0
      %804 = vmatpush1.msra.mxu0 0.0
      %805 = vmatprep.subr.mxu0 0.0
      %806 = vmatpush1.msra.mxu0 0.0
      %807 = vmatprep.subr.mxu0 0.0
      %808 = vmatpush1.msra.mxu0 0.0
      %809 = vmatprep.subr.mxu0 0.0
      %810 = vmatpush1.msra.mxu0 0.0
      %811 = vmatprep.subr.mxu0 0.0
      %812 = vmatpush1.msra.mxu0 0.0
      %813 = vmatprep.subr.mxu0 0.0
      %814 = vmatpush1.msra.mxu0 0.0
      %815 = vmatprep.subr.mxu0 0.0
      %816 = vmatpush1.msra.mxu0 0.0
      %817 = vmatprep.subr.mxu0 0.0
      %818 = vmatpush1.msra.mxu0 0.0
      %819 = vmatprep.subr.mxu0 0.0
      %820 = vmatpush1.msra.mxu0 0.0
      %821 = vmatprep.subr.mxu0 0.0
      %822 = vmatpush1.msra.mxu0 0.0
      %823 = vmatprep.subr.mxu0 0.0
      %824 = vmatpush1.msra.mxu0 0.0
      %825 = vmatprep.subr.mxu0 0.0
      %826 = vmatpush1.msra.mxu0 0.0
      %827 = vmatprep.subr.mxu0 0.0
      %828 = vmatpush1.msra.mxu0 0.0
      %829 = vmatprep.subr.mxu0 0.0
      %830 = vmatpush1.msra.mxu0 0.0
      %831 = vmatprep.subr.mxu0 0.0
      %832 = vmatpush1.msra.mxu0 0.0
      %833 = vmatprep.subr.mxu0 0.0
      %834 = vmatpush1.msra.mxu0 0.0
      %835 = vmatprep.subr.mxu0 0.0
      %836 = vmatpush1.msra.mxu0 0.0
      %837 = vmatprep.subr.mxu0 0.0
      %838 = vmatpush1.msra.mxu0 0.0
      %839 = vmatprep.subr.mxu0 0.0
      %840 = vmatpush1.msra.mxu0 0.0
      %841 = vmatprep.subr.mxu0 0.0
      %842 = vmatpush1.msra.mxu0 0.0
      %843 = vmatprep.subr.mxu0 0.0
      %844 = vmatpush1.msra.mxu0 0.0
      %845 = vmatprep.subr.mxu0 0.0
      %846 = vmatpush1.msra.mxu0 0.0
      %847 = vmatprep.mubr.f32.mxu0 0.0
      %848 = vmatmul.mubr.f32.gmra.mrb[0].mxu0 %v704
      %v849 = vpop.f32.mrb[0].mxu0
      %v850 = vadd.f32 0.0, %v849
      %v851 = vpop.f32.mrb[0].mxu0
      %852 = vdwg.mxu0
      %v853 = vadd.f32 %v689, %v779
      %v854 = vadd.f32 %v690, %v781
      %v855 = vadd.f32 %v691, %v850
      %s856 = scalar_lea.vmem %s1, 32
      %v857 = vld [vmem:[%s856] sm:$0xff]
      %858 = vrot.lane.b32.xlu0 %v209, 109
      %v859 = vpop.permute.xlu0 %858
      %860 = vrot.lane.b32.xlu0 %v216, 109
      %v861 = vpop.permute.xlu0 %860
      %862 = vrot.lane.b32.xlu0 %v210, 109
      %v863 = vpop.permute.xlu0 %862
      %vm864 = vcmask 891904
      %v865 = vsel %vm864, %v859, %v861
      %v866 = vsel %vm864, %v861, %v863
      %v868 = vsel %vm226, %v857, 0
      %v870 = vsel %vm230, %v865, 0
      %v872 = vsel %vm230, %v866, 0
      %v874 = vsel %vm230, %v863, 0
      %876 = vmatprep.subr.mxu0 %v872
      %877 = vmatpush1.msra.mxu0 %v870
      %878 = vmatprep.subr.mxu0 0.0
      %879 = vmatpush1.msra.mxu0 0.0
      %880 = vmatprep.subr.mxu0 0.0
      %881 = vmatpush1.msra.mxu0 0.0
      %882 = vmatprep.subr.mxu0 0.0
      %883 = vmatpush1.msra.mxu0 0.0
      %884 = vmatprep.subr.mxu0 0.0
      %885 = vmatpush1.msra.mxu0 0.0
      %886 = vmatprep.subr.mxu0 0.0
      %887 = vmatpush1.msra.mxu0 0.0
      %888 = vmatprep.subr.mxu0 0.0
      %889 = vmatpush1.msra.mxu0 0.0
      %890 = vmatprep.subr.mxu0 0.0
      %891 = vmatpush1.msra.mxu0 0.0
      %892 = vmatprep.subr.mxu0 0.0
      %893 = vmatpush1.msra.mxu0 0.0
      %894 = vmatprep.subr.mxu0 0.0
      %895 = vmatpush1.msra.mxu0 0.0
      %896 = vmatprep.subr.mxu0 0.0
      %897 = vmatpush1.msra.mxu0 0.0
      %898 = vmatprep.subr.mxu0 0.0
      %899 = vmatpush1.msra.mxu0 0.0
      %900 = vmatprep.subr.mxu0 0.0
      %901 = vmatpush1.msra.mxu0 0.0
      %902 = vmatprep.subr.mxu0 0.0
      %903 = vmatpush1.msra.mxu0 0.0
      %904 = vmatprep.subr.mxu0 0.0
      %905 = vmatpush1.msra.mxu0 0.0
      %906 = vmatprep.subr.mxu0 0.0
      %907 = vmatpush1.msra.mxu0 0.0
      %908 = vmatprep.subr.mxu0 0.0
      %909 = vmatpush1.msra.mxu0 0.0
      %910 = vmatprep.subr.mxu0 0.0
      %911 = vmatpush1.msra.mxu0 0.0
      %912 = vmatprep.subr.mxu0 0.0
      %913 = vmatpush1.msra.mxu0 0.0
      %914 = vmatprep.subr.mxu0 0.0
      %915 = vmatpush1.msra.mxu0 0.0
      %916 = vmatprep.subr.mxu0 0.0
      %917 = vmatpush1.msra.mxu0 0.0
      %918 = vmatprep.subr.mxu0 0.0
      %919 = vmatpush1.msra.mxu0 0.0
      %920 = vmatprep.subr.mxu0 0.0
      %921 = vmatpush1.msra.mxu0 0.0
      %922 = vmatprep.subr.mxu0 0.0
      %923 = vmatpush1.msra.mxu0 0.0
      %924 = vmatprep.subr.mxu0 0.0
      %925 = vmatpush1.msra.mxu0 0.0
      %926 = vmatprep.subr.mxu0 0.0
      %927 = vmatpush1.msra.mxu0 0.0
      %928 = vmatprep.subr.mxu0 0.0
      %929 = vmatpush1.msra.mxu0 0.0
      %930 = vmatprep.subr.mxu0 0.0
      %931 = vmatpush1.msra.mxu0 0.0
      %932 = vmatprep.subr.mxu0 0.0
      %933 = vmatpush1.msra.mxu0 0.0
      %934 = vmatprep.subr.mxu0 0.0
      %935 = vmatpush1.msra.mxu0 0.0
      %936 = vmatprep.subr.mxu0 0.0
      %937 = vmatpush1.msra.mxu0 0.0
      %938 = vmatprep.subr.mxu0 0.0
      %939 = vmatpush1.msra.mxu0 0.0
      %940 = vmatprep.mubr.f32.mxu0 0.0
      %941 = vmatmul.mubr.f32.gmra.mrb[0].mxu0 %v868
      %v942 = vpop.f32.mrb[0].mxu0
      %v943 = vadd.f32 0.0, %v942
      %v944 = vpop.f32.mrb[0].mxu0
      %v945 = vadd.f32 0.0, %v944
      %946 = vdwg.mxu0
      %947 = vmatprep.subr.mxu0 0.0
      %948 = vmatpush1.msra.mxu0 %v874
      %949 = vmatprep.subr.mxu0 0.0
      %950 = vmatpush1.msra.mxu0 0.0
      %951 = vmatprep.subr.mxu0 0.0
      %952 = vmatpush1.msra.mxu0 0.0
      %953 = vmatprep.subr.mxu0 0.0
      %954 = vmatpush1.msra.mxu0 0.0
      %955 = vmatprep.subr.mxu0 0.0
      %956 = vmatpush1.msra.mxu0 0.0
      %957 = vmatprep.subr.mxu0 0.0
      %958 = vmatpush1.msra.mxu0 0.0
      %959 = vmatprep.subr.mxu0 0.0
      %960 = vmatpush1.msra.mxu0 0.0
      %961 = vmatprep.subr.mxu0 0.0
      %962 = vmatpush1.msra.mxu0 0.0
      %963 = vmatprep.subr.mxu0 0.0
      %964 = vmatpush1.msra.mxu0 0.0
      %965 = vmatprep.subr.mxu0 0.0
      %966 = vmatpush1.msra.mxu0 0.0
      %967 = vmatprep.subr.mxu0 0.0
      %968 = vmatpush1.msra.mxu0 0.0
      %969 = vmatprep.subr.mxu0 0.0
      %970 = vmatpush1.msra.mxu0 0.0
      %971 = vmatprep.subr.mxu0 0.0
      %972 = vmatpush1.msra.mxu0 0.0
      %973 = vmatprep.subr.mxu0 0.0
      %974 = vmatpush1.msra.mxu0 0.0
      %975 = vmatprep.subr.mxu0 0.0
      %976 = vmatpush1.msra.mxu0 0.0
      %977 = vmatprep.subr.mxu0 0.0
      %978 = vmatpush1.msra.mxu0 0.0
      %979 = vmatprep.subr.mxu0 0.0
      %980 = vmatpush1.msra.mxu0 0.0
      %981 = vmatprep.subr.mxu0 0.0
      %982 = vmatpush1.msra.mxu0 0.0
      %983 = vmatprep.subr.mxu0 0.0
      %984 = vmatpush1.msra.mxu0 0.0
      %985 = vmatprep.subr.mxu0 0.0
      %986 = vmatpush1.msra.mxu0 0.0
      %987 = vmatprep.subr.mxu0 0.0
      %988 = vmatpush1.msra.mxu0 0.0
      %989 = vmatprep.subr.mxu0 0.0
      %990 = vmatpush1.msra.mxu0 0.0
      %991 = vmatprep.subr.mxu0 0.0
      %992 = vmatpush1.msra.mxu0 0.0
      %993 = vmatprep.subr.mxu0 0.0
      %994 = vmatpush1.msra.mxu0 0.0
      %995 = vmatprep.subr.mxu0 0.0
      %996 = vmatpush1.msra.mxu0 0.0
      %997 = vmatprep.subr.mxu0 0.0
      %998 = vmatpush1.msra.mxu0 0.0
      %999 = vmatprep.subr.mxu0 0.0
      %1000 = vmatpush1.msra.mxu0 0.0
      %1001 = vmatprep.subr.mxu0 0.0
      %1002 = vmatpush1.msra.mxu0 0.0
      %1003 = vmatprep.subr.mxu0 0.0
      %1004 = vmatpush1.msra.mxu0 0.0
      %1005 = vmatprep.subr.mxu0 0.0
      %1006 = vmatpush1.msra.mxu0 0.0
      %1007 = vmatprep.subr.mxu0 0.0
      %1008 = vmatpush1.msra.mxu0 0.0
      %1009 = vmatprep.subr.mxu0 0.0
      %1010 = vmatpush1.msra.mxu0 0.0
      %1011 = vmatprep.mubr.f32.mxu0 0.0
      %1012 = vmatmul.mubr.f32.gmra.mrb[0].mxu0 %v868
      %v1013 = vpop.f32.mrb[0].mxu0
      %v1014 = vadd.f32 0.0, %v1013
      %v1015 = vpop.f32.mrb[0].mxu0
      %1016 = vdwg.mxu0
      %v1017 = vadd.f32 %v853, %v943
      %v1018 = vadd.f32 %v854, %v945
      %v1019 = vadd.f32 %v855, %v1014
      %s1020 = scalar_lea.vmem %s1, 40
      %v1021 = vld [vmem:[%s1020] sm:$0xff]
      %1022 = vrot.lane.b32.xlu0 %v209, 108
      %v1023 = vpop.permute.xlu0 %1022
      %1024 = vrot.lane.b32.xlu0 %v216, 108
      %v1025 = vpop.permute.xlu0 %1024
      %1026 = vrot.lane.b32.xlu0 %v210, 108
      %v1027 = vpop.permute.xlu0 %1026
      %vm1028 = vcmask 883712
      %v1029 = vsel %vm1028, %v1023, %v1025
      %v1030 = vsel %vm1028, %v1025, %v1027
      %v1032 = vsel %vm226, %v1021, 0
      %v1034 = vsel %vm230, %v1029, 0
      %v1036 = vsel %vm230, %v1030, 0
      %v1038 = vsel %vm230, %v1027, 0
      %1040 = vmatprep.subr.mxu0 %v1036
      %1041 = vmatpush1.msra.mxu0 %v1034
      %1042 = vmatprep.subr.mxu0 0.0
      %1043 = vmatpush1.msra.mxu0 0.0
      %1044 = vmatprep.subr.mxu0 0.0
      %1045 = vmatpush1.msra.mxu0 0.0
      %1046 = vmatprep.subr.mxu0 0.0
      %1047 = vmatpush1.msra.mxu0 0.0
      %1048 = vmatprep.subr.mxu0 0.0
      %1049 = vmatpush1.msra.mxu0 0.0
      %1050 = vmatprep.subr.mxu0 0.0
      %1051 = vmatpush1.msra.mxu0 0.0
      %1052 = vmatprep.subr.mxu0 0.0
      %1053 = vmatpush1.msra.mxu0 0.0
      %1054 = vmatprep.subr.mxu0 0.0
      %1055 = vmatpush1.msra.mxu0 0.0
      %1056 = vmatprep.subr.mxu0 0.0
      %1057 = vmatpush1.msra.mxu0 0.0
      %1058 = vmatprep.subr.mxu0 0.0
      %1059 = vmatpush1.msra.mxu0 0.0
      %1060 = vmatprep.subr.mxu0 0.0
      %1061 = vmatpush1.msra.mxu0 0.0
      %1062 = vmatprep.subr.mxu0 0.0
      %1063 = vmatpush1.msra.mxu0 0.0
      %1064 = vmatprep.subr.mxu0 0.0
      %1065 = vmatpush1.msra.mxu0 0.0
      %1066 = vmatprep.subr.mxu0 0.0
      %1067 = vmatpush1.msra.mxu0 0.0
      %1068 = vmatprep.subr.mxu0 0.0
      %1069 = vmatpush1.msra.mxu0 0.0
      %1070 = vmatprep.subr.mxu0 0.0
      %1071 = vmatpush1.msra.mxu0 0.0
      %1072 = vmatprep.subr.mxu0 0.0
      %1073 = vmatpush1.msra.mxu0 0.0
      %1074 = vmatprep.subr.mxu0 0.0
      %1075 = vmatpush1.msra.mxu0 0.0
      %1076 = vmatprep.subr.mxu0 0.0
      %1077 = vmatpush1.msra.mxu0 0.0
      %1078 = vmatprep.subr.mxu0 0.0
      %1079 = vmatpush1.msra.mxu0 0.0
      %1080 = vmatprep.subr.mxu0 0.0
      %1081 = vmatpush1.msra.mxu0 0.0
      %1082 = vmatprep.subr.mxu0 0.0
      %1083 = vmatpush1.msra.mxu0 0.0
      %1084 = vmatprep.subr.mxu0 0.0
      %1085 = vmatpush1.msra.mxu0 0.0
      %1086 = vmatprep.subr.mxu0 0.0
      %1087 = vmatpush1.msra.mxu0 0.0
      %1088 = vmatprep.subr.mxu0 0.0
      %1089 = vmatpush1.msra.mxu0 0.0
      %1090 = vmatprep.subr.mxu0 0.0
      %1091 = vmatpush1.msra.mxu0 0.0
      %1092 = vmatprep.subr.mxu0 0.0
      %1093 = vmatpush1.msra.mxu0 0.0
      %1094 = vmatprep.subr.mxu0 0.0
      %1095 = vmatpush1.msra.mxu0 0.0
      %1096 = vmatprep.subr.mxu0 0.0
      %1097 = vmatpush1.msra.mxu0 0.0
      %1098 = vmatprep.subr.mxu0 0.0
      %1099 = vmatpush1.msra.mxu0 0.0
      %1100 = vmatprep.subr.mxu0 0.0
      %1101 = vmatpush1.msra.mxu0 0.0
      %1102 = vmatprep.subr.mxu0 0.0
      %1103 = vmatpush1.msra.mxu0 0.0
      %1104 = vmatprep.mubr.f32.mxu0 0.0
      %1105 = vmatmul.mubr.f32.gmra.mrb[0].mxu0 %v1032
      %v1106 = vpop.f32.mrb[0].mxu0
      %v1107 = vadd.f32 0.0, %v1106
      %v1108 = vpop.f32.mrb[0].mxu0
      %v1109 = vadd.f32 0.0, %v1108
      %1110 = vdwg.mxu0
      %1111 = vmatprep.subr.mxu0 0.0
      %1112 = vmatpush1.msra.mxu0 %v1038
      %1113 = vmatprep.subr.mxu0 0.0
      %1114 = vmatpush1.msra.mxu0 0.0
      %1115 = vmatprep.subr.mxu0 0.0
      %1116 = vmatpush1.msra.mxu0 0.0
      %1117 = vmatprep.subr.mxu0 0.0
      %1118 = vmatpush1.msra.mxu0 0.0
      %1119 = vmatprep.subr.mxu0 0.0
      %1120 = vmatpush1.msra.mxu0 0.0
      %1121 = vmatprep.subr.mxu0 0.0
      %1122 = vmatpush1.msra.mxu0 0.0
      %1123 = vmatprep.subr.mxu0 0.0
      %1124 = vmatpush1.msra.mxu0 0.0
      %1125 = vmatprep.subr.mxu0 0.0
      %1126 = vmatpush1.msra.mxu0 0.0
      %1127 = vmatprep.subr.mxu0 0.0
      %1128 = vmatpush1.msra.mxu0 0.0
      %1129 = vmatprep.subr.mxu0 0.0
      %1130 = vmatpush1.msra.mxu0 0.0
      %1131 = vmatprep.subr.mxu0 0.0
      %1132 = vmatpush1.msra.mxu0 0.0
      %1133 = vmatprep.subr.mxu0 0.0
      %1134 = vmatpush1.msra.mxu0 0.0
      %1135 = vmatprep.subr.mxu0 0.0
      %1136 = vmatpush1.msra.mxu0 0.0
      %1137 = vmatprep.subr.mxu0 0.0
      %1138 = vmatpush1.msra.mxu0 0.0
      %1139 = vmatprep.subr.mxu0 0.0
      %1140 = vmatpush1.msra.mxu0 0.0
      %1141 = vmatprep.subr.mxu0 0.0
      %1142 = vmatpush1.msra.mxu0 0.0
      %1143 = vmatprep.subr.mxu0 0.0
      %1144 = vmatpush1.msra.mxu0 0.0
      %1145 = vmatprep.subr.mxu0 0.0
      %1146 = vmatpush1.msra.mxu0 0.0
      %1147 = vmatprep.subr.mxu0 0.0
      %1148 = vmatpush1.msra.mxu0 0.0
      %1149 = vmatprep.subr.mxu0 0.0
      %1150 = vmatpush1.msra.mxu0 0.0
      %1151 = vmatprep.subr.mxu0 0.0
      %1152 = vmatpush1.msra.mxu0 0.0
      %1153 = vmatprep.subr.mxu0 0.0
      %1154 = vmatpush1.msra.mxu0 0.0
      %1155 = vmatprep.subr.mxu0 0.0
      %1156 = vmatpush1.msra.mxu0 0.0
      %1157 = vmatprep.subr.mxu0 0.0
      %1158 = vmatpush1.msra.mxu0 0.0
      %1159 = vmatprep.subr.mxu0 0.0
      %1160 = vmatpush1.msra.mxu0 0.0
      %1161 = vmatprep.subr.mxu0 0.0
      %1162 = vmatpush1.msra.mxu0 0.0
      %1163 = vmatprep.subr.mxu0 0.0
      %1164 = vmatpush1.msra.mxu0 0.0
      %1165 = vmatprep.subr.mxu0 0.0
      %1166 = vmatpush1.msra.mxu0 0.0
      %1167 = vmatprep.subr.mxu0 0.0
      %1168 = vmatpush1.msra.mxu0 0.0
      %1169 = vmatprep.subr.mxu0 0.0
      %1170 = vmatpush1.msra.mxu0 0.0
      %1171 = vmatprep.subr.mxu0 0.0
      %1172 = vmatpush1.msra.mxu0 0.0
      %1173 = vmatprep.subr.mxu0 0.0
      %1174 = vmatpush1.msra.mxu0 0.0
      %1175 = vmatprep.mubr.f32.mxu0 0.0
      %1176 = vmatmul.mubr.f32.gmra.mrb[0].mxu0 %v1032
      %v1177 = vpop.f32.mrb[0].mxu0
      %v1178 = vadd.f32 0.0, %v1177
      %v1179 = vpop.f32.mrb[0].mxu0
      %1180 = vdwg.mxu0
      %v1181 = vadd.f32 %v1017, %v1107
      %v1182 = vadd.f32 %v1018, %v1109
      %v1183 = vadd.f32 %v1019, %v1178
      %s1184 = scalar_lea.vmem %s1, 48
      %v1185 = vld [vmem:[%s1184] sm:$0xff]
      %1186 = vrot.lane.b32.xlu0 %v209, 92
      %v1187 = vpop.permute.xlu0 %1186
      %1188 = vrot.lane.b32.xlu0 %v216, 92
      %v1189 = vpop.permute.xlu0 %1188
      %1190 = vrot.lane.b32.xlu0 %v210, 92
      %v1191 = vpop.permute.xlu0 %1190
      %vm1192 = vcmask 752640
      %v1193 = vsel %vm1192, %v1187, %v1189
      %v1194 = vsel %vm1192, %v1189, %v1191
      %v1196 = vsel %vm226, %v1185, 0
      %v1198 = vsel %vm230, %v1193, 0
      %v1200 = vsel %vm230, %v1194, 0
      %v1202 = vsel %vm230, %v1191, 0
      %1204 = vmatprep.subr.mxu0 %v1200
      %1205 = vmatpush1.msra.mxu0 %v1198
      %1206 = vmatprep.subr.mxu0 0.0
      %1207 = vmatpush1.msra.mxu0 0.0
      %1208 = vmatprep.subr.mxu0 0.0
      %1209 = vmatpush1.msra.mxu0 0.0
      %1210 = vmatprep.subr.mxu0 0.0
      %1211 = vmatpush1.msra.mxu0 0.0
      %1212 = vmatprep.subr.mxu0 0.0
      %1213 = vmatpush1.msra.mxu0 0.0
      %1214 = vmatprep.subr.mxu0 0.0
      %1215 = vmatpush1.msra.mxu0 0.0
      %1216 = vmatprep.subr.mxu0 0.0
      %1217 = vmatpush1.msra.mxu0 0.0
      %1218 = vmatprep.subr.mxu0 0.0
      %1219 = vmatpush1.msra.mxu0 0.0
      %1220 = vmatprep.subr.mxu0 0.0
      %1221 = vmatpush1.msra.mxu0 0.0
      %1222 = vmatprep.subr.mxu0 0.0
      %1223 = vmatpush1.msra.mxu0 0.0
      %1224 = vmatprep.subr.mxu0 0.0
      %1225 = vmatpush1.msra.mxu0 0.0
      %1226 = vmatprep.subr.mxu0 0.0
      %1227 = vmatpush1.msra.mxu0 0.0
      %1228 = vmatprep.subr.mxu0 0.0
      %1229 = vmatpush1.msra.mxu0 0.0
      %1230 = vmatprep.subr.mxu0 0.0
      %1231 = vmatpush1.msra.mxu0 0.0
      %1232 = vmatprep.subr.mxu0 0.0
      %1233 = vmatpush1.msra.mxu0 0.0
      %1234 = vmatprep.subr.mxu0 0.0
      %1235 = vmatpush1.msra.mxu0 0.0
      %1236 = vmatprep.subr.mxu0 0.0
      %1237 = vmatpush1.msra.mxu0 0.0
      %1238 = vmatprep.subr.mxu0 0.0
      %1239 = vmatpush1.msra.mxu0 0.0
      %1240 = vmatprep.subr.mxu0 0.0
      %1241 = vmatpush1.msra.mxu0 0.0
      %1242 = vmatprep.subr.mxu0 0.0
      %1243 = vmatpush1.msra.mxu0 0.0
      %1244 = vmatprep.subr.mxu0 0.0
      %1245 = vmatpush1.msra.mxu0 0.0
      %1246 = vmatprep.subr.mxu0 0.0
      %1247 = vmatpush1.msra.mxu0 0.0
      %1248 = vmatprep.subr.mxu0 0.0
      %1249 = vmatpush1.msra.mxu0 0.0
      %1250 = vmatprep.subr.mxu0 0.0
      %1251 = vmatpush1.msra.mxu0 0.0
      %1252 = vmatprep.subr.mxu0 0.0
      %1253 = vmatpush1.msra.mxu0 0.0
      %1254 = vmatprep.subr.mxu0 0.0
      %1255 = vmatpush1.msra.mxu0 0.0
      %1256 = vmatprep.subr.mxu0 0.0
      %1257 = vmatpush1.msra.mxu0 0.0
      %1258 = vmatprep.subr.mxu0 0.0
      %1259 = vmatpush1.msra.mxu0 0.0
      %1260 = vmatprep.subr.mxu0 0.0
      %1261 = vmatpush1.msra.mxu0 0.0
      %1262 = vmatprep.subr.mxu0 0.0
      %1263 = vmatpush1.msra.mxu0 0.0
      %1264 = vmatprep.subr.mxu0 0.0
      %1265 = vmatpush1.msra.mxu0 0.0
      %1266 = vmatprep.subr.mxu0 0.0
      %1267 = vmatpush1.msra.mxu0 0.0
      %1268 = vmatprep.mubr.f32.mxu0 0.0
      %1269 = vmatmul.mubr.f32.gmra.mrb[0].mxu0 %v1196
      %v1270 = vpop.f32.mrb[0].mxu0
      %v1271 = vadd.f32 0.0, %v1270
      %v1272 = vpop.f32.mrb[0].mxu0
      %v1273 = vadd.f32 0.0, %v1272
      %1274 = vdwg.mxu0
      %1275 = vmatprep.subr.mxu0 0.0
      %1276 = vmatpush1.msra.mxu0 %v1202
      %1277 = vmatprep.subr.mxu0 0.0
      %1278 = vmatpush1.msra.mxu0 0.0
      %1279 = vmatprep.subr.mxu0 0.0
      %1280 = vmatpush1.msra.mxu0 0.0
      %1281 = vmatprep.subr.mxu0 0.0
      %1282 = vmatpush1.msra.mxu0 0.0
      %1283 = vmatprep.subr.mxu0 0.0
      %1284 = vmatpush1.msra.mxu0 0.0
      %1285 = vmatprep.subr.mxu0 0.0
      %1286 = vmatpush1.msra.mxu0 0.0
      %1287 = vmatprep.subr.mxu0 0.0
      %1288 = vmatpush1.msra.mxu0 0.0
      %1289 = vmatprep.subr.mxu0 0.0
      %1290 = vmatpush1.msra.mxu0 0.0
      %1291 = vmatprep.subr.mxu0 0.0
      %1292 = vmatpush1.msra.mxu0 0.0
      %1293 = vmatprep.subr.mxu0 0.0
      %1294 = vmatpush1.msra.mxu0 0.0
      %1295 = vmatprep.subr.mxu0 0.0
      %1296 = vmatpush1.msra.mxu0 0.0
      %1297 = vmatprep.subr.mxu0 0.0
      %1298 = vmatpush1.msra.mxu0 0.0
      %1299 = vmatprep.subr.mxu0 0.0
      %1300 = vmatpush1.msra.mxu0 0.0
      %1301 = vmatprep.subr.mxu0 0.0
      %1302 = vmatpush1.msra.mxu0 0.0
      %1303 = vmatprep.subr.mxu0 0.0
      %1304 = vmatpush1.msra.mxu0 0.0
      %1305 = vmatprep.subr.mxu0 0.0
      %1306 = vmatpush1.msra.mxu0 0.0
      %1307 = vmatprep.subr.mxu0 0.0
      %1308 = vmatpush1.msra.mxu0 0.0
      %1309 = vmatprep.subr.mxu0 0.0
      %1310 = vmatpush1.msra.mxu0 0.0
      %1311 = vmatprep.subr.mxu0 0.0
      %1312 = vmatpush1.msra.mxu0 0.0
      %1313 = vmatprep.subr.mxu0 0.0
      %1314 = vmatpush1.msra.mxu0 0.0
      %1315 = vmatprep.subr.mxu0 0.0
      %1316 = vmatpush1.msra.mxu0 0.0
      %1317 = vmatprep.subr.mxu0 0.0
      %1318 = vmatpush1.msra.mxu0 0.0
      %1319 = vmatprep.subr.mxu0 0.0
      %1320 = vmatpush1.msra.mxu0 0.0
      %1321 = vmatprep.subr.mxu0 0.0
      %1322 = vmatpush1.msra.mxu0 0.0
      %1323 = vmatprep.subr.mxu0 0.0
      %1324 = vmatpush1.msra.mxu0 0.0
      %1325 = vmatprep.subr.mxu0 0.0
      %1326 = vmatpush1.msra.mxu0 0.0
      %1327 = vmatprep.subr.mxu0 0.0
      %1328 = vmatpush1.msra.mxu0 0.0
      %1329 = vmatprep.subr.mxu0 0.0
      %1330 = vmatpush1.msra.mxu0 0.0
      %1331 = vmatprep.subr.mxu0 0.0
      %1332 = vmatpush1.msra.mxu0 0.0
      %1333 = vmatprep.subr.mxu0 0.0
      %1334 = vmatpush1.msra.mxu0 0.0
      %1335 = vmatprep.subr.mxu0 0.0
      %1336 = vmatpush1.msra.mxu0 0.0
      %1337 = vmatprep.subr.mxu0 0.0
      %1338 = vmatpush1.msra.mxu0 0.0
      %1339 = vmatprep.mubr.f32.mxu0 0.0
      %1340 = vmatmul.mubr.f32.gmra.mrb[0].mxu0 %v1196
      %v1341 = vpop.f32.mrb[0].mxu0
      %v1342 = vadd.f32 0.0, %v1341
      %v1343 = vpop.f32.mrb[0].mxu0
      %1344 = vdwg.mxu0
      %v1345 = vadd.f32 %v1181, %v1271
      %v1346 = vadd.f32 %v1182, %v1273
      %v1347 = vadd.f32 %v1183, %v1342
      %s1348 = scalar_lea.vmem %s1, 56
      %v1349 = vld [vmem:[%s1348] sm:$0xff]
      %1350 = vrot.lane.b32.xlu0 %v209, 91
      %v1351 = vpop.permute.xlu0 %1350
      %1352 = vrot.lane.b32.xlu0 %v216, 91
      %v1353 = vpop.permute.xlu0 %1352
      %1354 = vrot.lane.b32.xlu0 %v210, 91
      %v1355 = vpop.permute.xlu0 %1354
      %vm1356 = vcmask 744448
      %v1357 = vsel %vm1356, %v1351, %v1353
      %v1358 = vsel %vm1356, %v1353, %v1355
      %v1360 = vsel %vm226, %v1349, 0
      %v1362 = vsel %vm230, %v1357, 0
      %v1364 = vsel %vm230, %v1358, 0
      %v1366 = vsel %vm230, %v1355, 0
      %1368 = vmatprep.subr.mxu0 %v1364
      %1369 = vmatpush1.msra.mxu0 %v1362
      %1370 = vmatprep.subr.mxu0 0.0
      %1371 = vmatpush1.msra.mxu0 0.0
      %1372 = vmatprep.subr.mxu0 0.0
      %1373 = vmatpush1.msra.mxu0 0.0
      %1374 = vmatprep.subr.mxu0 0.0
      %1375 = vmatpush1.msra.mxu0 0.0
      %1376 = vmatprep.subr.mxu0 0.0
      %1377 = vmatpush1.msra.mxu0 0.0
      %1378 = vmatprep.subr.mxu0 0.0
      %1379 = vmatpush1.msra.mxu0 0.0
      %1380 = vmatprep.subr.mxu0 0.0
      %1381 = vmatpush1.msra.mxu0 0.0
      %1382 = vmatprep.subr.mxu0 0.0
      %1383 = vmatpush1.msra.mxu0 0.0
      %1384 = vmatprep.subr.mxu0 0.0
      %1385 = vmatpush1.msra.mxu0 0.0
      %1386 = vmatprep.subr.mxu0 0.0
      %1387 = vmatpush1.msra.mxu0 0.0
      %1388 = vmatprep.subr.mxu0 0.0
      %1389 = vmatpush1.msra.mxu0 0.0
      %1390 = vmatprep.subr.mxu0 0.0
      %1391 = vmatpush1.msra.mxu0 0.0
      %1392 = vmatprep.subr.mxu0 0.0
      %1393 = vmatpush1.msra.mxu0 0.0
      %1394 = vmatprep.subr.mxu0 0.0
      %1395 = vmatpush1.msra.mxu0 0.0
      %1396 = vmatprep.subr.mxu0 0.0
      %1397 = vmatpush1.msra.mxu0 0.0
      %1398 = vmatprep.subr.mxu0 0.0
      %1399 = vmatpush1.msra.mxu0 0.0
      %1400 = vmatprep.subr.mxu0 0.0
      %1401 = vmatpush1.msra.mxu0 0.0
      %1402 = vmatprep.subr.mxu0 0.0
      %1403 = vmatpush1.msra.mxu0 0.0
      %1404 = vmatprep.subr.mxu0 0.0
      %1405 = vmatpush1.msra.mxu0 0.0
      %1406 = vmatprep.subr.mxu0 0.0
      %1407 = vmatpush1.msra.mxu0 0.0
      %1408 = vmatprep.subr.mxu0 0.0
      %1409 = vmatpush1.msra.mxu0 0.0
      %1410 = vmatprep.subr.mxu0 0.0
      %1411 = vmatpush1.msra.mxu0 0.0
      %1412 = vmatprep.subr.mxu0 0.0
      %1413 = vmatpush1.msra.mxu0 0.0
      %1414 = vmatprep.subr.mxu0 0.0
      %1415 = vmatpush1.msra.mxu0 0.0
      %1416 = vmatprep.subr.mxu0 0.0
      %1417 = vmatpush1.msra.mxu0 0.0
      %1418 = vmatprep.subr.mxu0 0.0
      %1419 = vmatpush1.msra.mxu0 0.0
      %1420 = vmatprep.subr.mxu0 0.0
      %1421 = vmatpush1.msra.mxu0 0.0
      %1422 = vmatprep.subr.mxu0 0.0
      %1423 = vmatpush1.msra.mxu0 0.0
      %1424 = vmatprep.subr.mxu0 0.0
      %1425 = vmatpush1.msra.mxu0 0.0
      %1426 = vmatprep.subr.mxu0 0.0
      %1427 = vmatpush1.msra.mxu0 0.0
      %1428 = vmatprep.subr.mxu0 0.0
      %1429 = vmatpush1.msra.mxu0 0.0
      %1430 = vmatprep.subr.mxu0 0.0
      %1431 = vmatpush1.msra.mxu0 0.0
      %1432 = vmatprep.mubr.f32.mxu0 0.0
      %1433 = vmatmul.mubr.f32.gmra.mrb[0].mxu0 %v1360
      %v1434 = vpop.f32.mrb[0].mxu0
      %v1435 = vadd.f32 0.0, %v1434
      %v1436 = vpop.f32.mrb[0].mxu0
      %v1437 = vadd.f32 0.0, %v1436
      %1438 = vdwg.mxu0
      %1439 = vmatprep.subr.mxu0 0.0
      %1440 = vmatpush1.msra.mxu0 %v1366
      %1441 = vmatprep.subr.mxu0 0.0
      %1442 = vmatpush1.msra.mxu0 0.0
      %1443 = vmatprep.subr.mxu0 0.0
      %1444 = vmatpush1.msra.mxu0 0.0
      %1445 = vmatprep.subr.mxu0 0.0
      %1446 = vmatpush1.msra.mxu0 0.0
      %1447 = vmatprep.subr.mxu0 0.0
      %1448 = vmatpush1.msra.mxu0 0.0
      %1449 = vmatprep.subr.mxu0 0.0
      %1450 = vmatpush1.msra.mxu0 0.0
      %1451 = vmatprep.subr.mxu0 0.0
      %1452 = vmatpush1.msra.mxu0 0.0
      %1453 = vmatprep.subr.mxu0 0.0
      %1454 = vmatpush1.msra.mxu0 0.0
      %1455 = vmatprep.subr.mxu0 0.0
      %1456 = vmatpush1.msra.mxu0 0.0
      %1457 = vmatprep.subr.mxu0 0.0
      %1458 = vmatpush1.msra.mxu0 0.0
      %1459 = vmatprep.subr.mxu0 0.0
      %1460 = vmatpush1.msra.mxu0 0.0
      %1461 = vmatprep.subr.mxu0 0.0
      %1462 = vmatpush1.msra.mxu0 0.0
      %1463 = vmatprep.subr.mxu0 0.0
      %1464 = vmatpush1.msra.mxu0 0.0
      %1465 = vmatprep.subr.mxu0 0.0
      %1466 = vmatpush1.msra.mxu0 0.0
      %1467 = vmatprep.subr.mxu0 0.0
      %1468 = vmatpush1.msra.mxu0 0.0
      %1469 = vmatprep.subr.mxu0 0.0
      %1470 = vmatpush1.msra.mxu0 0.0
      %1471 = vmatprep.subr.mxu0 0.0
      %1472 = vmatpush1.msra.mxu0 0.0
      %1473 = vmatprep.subr.mxu0 0.0
      %1474 = vmatpush1.msra.mxu0 0.0
      %1475 = vmatprep.subr.mxu0 0.0
      %1476 = vmatpush1.msra.mxu0 0.0
      %1477 = vmatprep.subr.mxu0 0.0
      %1478 = vmatpush1.msra.mxu0 0.0
      %1479 = vmatprep.subr.mxu0 0.0
      %1480 = vmatpush1.msra.mxu0 0.0
      %1481 = vmatprep.subr.mxu0 0.0
      %1482 = vmatpush1.msra.mxu0 0.0
      %1483 = vmatprep.subr.mxu0 0.0
      %1484 = vmatpush1.msra.mxu0 0.0
      %1485 = vmatprep.subr.mxu0 0.0
      %1486 = vmatpush1.msra.mxu0 0.0
      %1487 = vmatprep.subr.mxu0 0.0
      %1488 = vmatpush1.msra.mxu0 0.0
      %1489 = vmatprep.subr.mxu0 0.0
      %1490 = vmatpush1.msra.mxu0 0.0
      %1491 = vmatprep.subr.mxu0 0.0
      %1492 = vmatpush1.msra.mxu0 0.0
      %1493 = vmatprep.subr.mxu0 0.0
      %1494 = vmatpush1.msra.mxu0 0.0
      %1495 = vmatprep.subr.mxu0 0.0
      %1496 = vmatpush1.msra.mxu0 0.0
      %1497 = vmatprep.subr.mxu0 0.0
      %1498 = vmatpush1.msra.mxu0 0.0
      %1499 = vmatprep.subr.mxu0 0.0
      %1500 = vmatpush1.msra.mxu0 0.0
      %1501 = vmatprep.subr.mxu0 0.0
      %1502 = vmatpush1.msra.mxu0 0.0
      %1503 = vmatprep.mubr.f32.mxu0 0.0
      %1504 = vmatmul.mubr.f32.gmra.mrb[0].mxu0 %v1360
      %v1505 = vpop.f32.mrb[0].mxu0
      %v1506 = vadd.f32 0.0, %v1505
      %v1507 = vpop.f32.mrb[0].mxu0
      %1508 = vdwg.mxu0
      %v1509 = vadd.f32 %v1345, %v1435
      %v1510 = vadd.f32 %v1346, %v1437
      %v1511 = vadd.f32 %v1347, %v1506
      %s1512 = scalar_lea.vmem %s1, 64
      %v1513 = vld [vmem:[%s1512] sm:$0xff]
      %1514 = vrot.lane.b32.xlu0 %v209, 90
      %v1515 = vpop.permute.xlu0 %1514
      %1516 = vrot.lane.b32.xlu0 %v216, 90
      %v1517 = vpop.permute.xlu0 %1516
      %1518 = vrot.lane.b32.xlu0 %v210, 90
      %v1519 = vpop.permute.xlu0 %1518
      %vm1520 = vcmask 736256
      %v1521 = vsel %vm1520, %v1515, %v1517
      %v1522 = vsel %vm1520, %v1517, %v1519
      %v1524 = vsel %vm226, %v1513, 0
      %v1526 = vsel %vm230, %v1521, 0
      %v1528 = vsel %vm230, %v1522, 0
      %v1530 = vsel %vm230, %v1519, 0
      %1532 = vmatprep.subr.mxu0 %v1528
      %1533 = vmatpush1.msra.mxu0 %v1526
      %1534 = vmatprep.subr.mxu0 0.0
      %1535 = vmatpush1.msra.mxu0 0.0
      %1536 = vmatprep.subr.mxu0 0.0
      %1537 = vmatpush1.msra.mxu0 0.0
      %1538 = vmatprep.subr.mxu0 0.0
      %1539 = vmatpush1.msra.mxu0 0.0
      %1540 = vmatprep.subr.mxu0 0.0
      %1541 = vmatpush1.msra.mxu0 0.0
      %1542 = vmatprep.subr.mxu0 0.0
      %1543 = vmatpush1.msra.mxu0 0.0
      %1544 = vmatprep.subr.mxu0 0.0
      %1545 = vmatpush1.msra.mxu0 0.0
      %1546 = vmatprep.subr.mxu0 0.0
      %1547 = vmatpush1.msra.mxu0 0.0
      %1548 = vmatprep.subr.mxu0 0.0
      %1549 = vmatpush1.msra.mxu0 0.0
      %1550 = vmatprep.subr.mxu0 0.0
      %1551 = vmatpush1.msra.mxu0 0.0
      %1552 = vmatprep.subr.mxu0 0.0
      %1553 = vmatpush1.msra.mxu0 0.0
      %1554 = vmatprep.subr.mxu0 0.0
      %1555 = vmatpush1.msra.mxu0 0.0
      %1556 = vmatprep.subr.mxu0 0.0
      %1557 = vmatpush1.msra.mxu0 0.0
      %1558 = vmatprep.subr.mxu0 0.0
      %1559 = vmatpush1.msra.mxu0 0.0
      %1560 = vmatprep.subr.mxu0 0.0
      %1561 = vmatpush1.msra.mxu0 0.0
      %1562 = vmatprep.subr.mxu0 0.0
      %1563 = vmatpush1.msra.mxu0 0.0
      %1564 = vmatprep.subr.mxu0 0.0
      %1565 = vmatpush1.msra.mxu0 0.0
      %1566 = vmatprep.subr.mxu0 0.0
      %1567 = vmatpush1.msra.mxu0 0.0
      %1568 = vmatprep.subr.mxu0 0.0
      %1569 = vmatpush1.msra.mxu0 0.0
      %1570 = vmatprep.subr.mxu0 0.0
      %1571 = vmatpush1.msra.mxu0 0.0
      %1572 = vmatprep.subr.mxu0 0.0
      %1573 = vmatpush1.msra.mxu0 0.0
      %1574 = vmatprep.subr.mxu0 0.0
      %1575 = vmatpush1.msra.mxu0 0.0
      %1576 = vmatprep.subr.mxu0 0.0
      %1577 = vmatpush1.msra.mxu0 0.0
      %1578 = vmatprep.subr.mxu0 0.0
      %1579 = vmatpush1.msra.mxu0 0.0
      %1580 = vmatprep.subr.mxu0 0.0
      %1581 = vmatpush1.msra.mxu0 0.0
      %1582 = vmatprep.subr.mxu0 0.0
      %1583 = vmatpush1.msra.mxu0 0.0
      %1584 = vmatprep.subr.mxu0 0.0
      %1585 = vmatpush1.msra.mxu0 0.0
      %1586 = vmatprep.subr.mxu0 0.0
      %1587 = vmatpush1.msra.mxu0 0.0
      %1588 = vmatprep.subr.mxu0 0.0
      %1589 = vmatpush1.msra.mxu0 0.0
      %1590 = vmatprep.subr.mxu0 0.0
      %1591 = vmatpush1.msra.mxu0 0.0
      %1592 = vmatprep.subr.mxu0 0.0
      %1593 = vmatpush1.msra.mxu0 0.0
      %1594 = vmatprep.subr.mxu0 0.0
      %1595 = vmatpush1.msra.mxu0 0.0
      %1596 = vmatprep.mubr.f32.mxu0 0.0
      %1597 = vmatmul.mubr.f32.gmra.mrb[0].mxu0 %v1524
      %v1598 = vpop.f32.mrb[0].mxu0
      %v1599 = vadd.f32 0.0, %v1598
      %v1600 = vpop.f32.mrb[0].mxu0
      %v1601 = vadd.f32 0.0, %v1600
      %1602 = vdwg.mxu0
      %1603 = vmatprep.subr.mxu0 0.0
      %1604 = vmatpush1.msra.mxu0 %v1530
      %1605 = vmatprep.subr.mxu0 0.0
      %1606 = vmatpush1.msra.mxu0 0.0
      %1607 = vmatprep.subr.mxu0 0.0
      %1608 = vmatpush1.msra.mxu0 0.0
      %1609 = vmatprep.subr.mxu0 0.0
      %1610 = vmatpush1.msra.mxu0 0.0
      %1611 = vmatprep.subr.mxu0 0.0
      %1612 = vmatpush1.msra.mxu0 0.0
      %1613 = vmatprep.subr.mxu0 0.0
      %1614 = vmatpush1.msra.mxu0 0.0
      %1615 = vmatprep.subr.mxu0 0.0
      %1616 = vmatpush1.msra.mxu0 0.0
      %1617 = vmatprep.subr.mxu0 0.0
      %1618 = vmatpush1.msra.mxu0 0.0
      %1619 = vmatprep.subr.mxu0 0.0
      %1620 = vmatpush1.msra.mxu0 0.0
      %1621 = vmatprep.subr.mxu0 0.0
      %1622 = vmatpush1.msra.mxu0 0.0
      %1623 = vmatprep.subr.mxu0 0.0
      %1624 = vmatpush1.msra.mxu0 0.0
      %1625 = vmatprep.subr.mxu0 0.0
      %1626 = vmatpush1.msra.mxu0 0.0
      %1627 = vmatprep.subr.mxu0 0.0
      %1628 = vmatpush1.msra.mxu0 0.0
      %1629 = vmatprep.subr.mxu0 0.0
      %1630 = vmatpush1.msra.mxu0 0.0
      %1631 = vmatprep.subr.mxu0 0.0
      %1632 = vmatpush1.msra.mxu0 0.0
      %1633 = vmatprep.subr.mxu0 0.0
      %1634 = vmatpush1.msra.mxu0 0.0
      %1635 = vmatprep.subr.mxu0 0.0
      %1636 = vmatpush1.msra.mxu0 0.0
      %1637 = vmatprep.subr.mxu0 0.0
      %1638 = vmatpush1.msra.mxu0 0.0
      %1639 = vmatprep.subr.mxu0 0.0
      %1640 = vmatpush1.msra.mxu0 0.0
      %1641 = vmatprep.subr.mxu0 0.0
      %1642 = vmatpush1.msra.mxu0 0.0
      %1643 = vmatprep.subr.mxu0 0.0
      %1644 = vmatpush1.msra.mxu0 0.0
      %1645 = vmatprep.subr.mxu0 0.0
      %1646 = vmatpush1.msra.mxu0 0.0
      %1647 = vmatprep.subr.mxu0 0.0
      %1648 = vmatpush1.msra.mxu0 0.0
      %1649 = vmatprep.subr.mxu0 0.0
      %1650 = vmatpush1.msra.mxu0 0.0
      %1651 = vmatprep.subr.mxu0 0.0
      %1652 = vmatpush1.msra.mxu0 0.0
      %1653 = vmatprep.subr.mxu0 0.0
      %1654 = vmatpush1.msra.mxu0 0.0
      %1655 = vmatprep.subr.mxu0 0.0
      %1656 = vmatpush1.msra.mxu0 0.0
      %1657 = vmatprep.subr.mxu0 0.0
      %1658 = vmatpush1.msra.mxu0 0.0
      %1659 = vmatprep.subr.mxu0 0.0
      %1660 = vmatpush1.msra.mxu0 0.0
      %1661 = vmatprep.subr.mxu0 0.0
      %1662 = vmatpush1.msra.mxu0 0.0
      %1663 = vmatprep.subr.mxu0 0.0
      %1664 = vmatpush1.msra.mxu0 0.0
      %1665 = vmatprep.subr.mxu0 0.0
      %1666 = vmatpush1.msra.mxu0 0.0
      %1667 = vmatprep.mubr.f32.mxu0 0.0
      %1668 = vmatmul.mubr.f32.gmra.mrb[0].mxu0 %v1524
      %v1669 = vpop.f32.mrb[0].mxu0
      %v1670 = vadd.f32 0.0, %v1669
      %v1671 = vpop.f32.mrb[0].mxu0
      %1672 = vdwg.mxu0
      %v1673 = vadd.f32 %v1509, %v1599
      %v1674 = vadd.f32 %v1510, %v1601
      %v1675 = vadd.f32 %v1511, %v1670
      %v1676 = vld [vmem:[%s2] sm:$0x7]
      %v1678 = vlaneseq
      %v1679 = vshrl.u32 %v1678, 7
      %v1680 = vsub.s32 0, %v1679
      %v1681 = vrot.slane %v1676, %v1680
      %v1682 = vlaneseq
      %v1683 = vshrl.u32 %v1682, 7
      %v1684 = vsub.s32 1, %v1683
      %v1685 = vrot.slane %v1676, %v1684
      %v1686 = vlaneseq
      %v1687 = vshrl.u32 %v1686, 7
      %v1688 = vsub.s32 2, %v1687
      %v1689 = vrot.slane %v1676, %v1688
      %v1693 = vmul.f32 %v1673, %v1681
      %v1694 = vmul.f32 %v1674, %v1685
      %v1695 = vmul.f32 %v1675, %v1689
      %v1696 = vadd.f32 %v1693, %v1694
      %vm1697 = vcmask 261120
      %v1698 = vsel %vm1697, %v1695, 0.0
      %v1699 = vadd.f32 %v1696, %v1698
      %1700 = vadd.xlane.f32.xlu0 %v1699
      %v1701 = vpop.xlane.xlu0 %1700
      %v1702 = vmul.f32 %v1673, %v1673
      %v1703 = vmul.f32 %v1674, %v1674
      %v1704 = vmul.f32 %v1675, %v1675
      %v1705 = vmul.f32 %v1702, %v1681
      %v1706 = vmul.f32 %v1703, %v1685
      %v1707 = vmul.f32 %v1704, %v1689
      %v1708 = vadd.f32 %v1705, %v1706
      %v1709 = vsel %vm1697, %v1707, 0.0
      %v1710 = vadd.f32 %v1708, %v1709
      %1711 = vadd.xlane.f32.xlu0 %v1710
      %v1712 = vpop.xlane.xlu0 %1711
      %vm1713 = vcmask 7168
      %v1714 = vsel %vm1713, %v1701, %v1712
      %vm1715 = vcmask 15360
      %1716 = vst.msk [vmem:[%s208] sm:$0xff] %vm1715, %v1714
      %1720 = vrot.lane.b32.xlu0 %v1673, 19
      %v1721 = vpop.permute.xlu0 %1720
      %1722 = vrot.lane.b32.xlu0 %v1674, 19
      %v1723 = vpop.permute.xlu0 %1722
      %1724 = vrot.lane.b32.xlu0 %v1675, 19
      %v1725 = vpop.permute.xlu0 %1724
      %vm1726 = vcmask 154624
      %v1727 = vsel %vm1726, %v1721, %v1723
      %v1728 = vsel %vm1726, %v1723, %v1725
      %v1732 = vsel %vm1726, 0.0, %v1721
      %vm1733 = vcmask 416768
      %v1734 = vsel %vm1733, %v1728, 0.0
      %1735 = vst [vmem:[%s204] sm:$0xff] %v1732
      %1736 = vst [vmem:[%s204 + $0x8] sm:$0xff] %v1727
      %vm1737 = vcmask 572416
      %1738 = vst.msk [vmem:[%s204 + $0x10] sm:$0xff] %vm1737, %v1734
      %p1739 = scmp.lt.s32.totalorder %s16, 1
      %s1740 = scalar_select %p1739, %s16, 1
      %s1741 = smul.addr %s1740, 3
      %s1742 = smul.addr %s1741, 8
      %s1743 = scalar_lea.vmem %s3, %s1742
      %p1744 = scmp.lt.s32.totalorder %s16, 1
      %s1745 = scalar_select %p1744, %s16, 1
      %s1746 = smul.addr %s1745, 8
      %s1747 = scalar_lea.vmem %s4, %s1746
      // Predicated region
      $region33: #{double_conv.3} parent=31 // pred_check
        %p1748 = pneg %p102
      $region34: #{double_conv.3} parent=31 // pred_check_branch
        %1750 = sbr.rel (%p1748) target = $region36
      $region35: #{double_conv.3} parent=31 // pred_region
        _
      $region36: #{double_conv.3} parent=31 // pred_fallthru
        _
      // Predicated region
      $region37: #{double_conv.3} parent=31 // pred_check
        %p1751 = pneg %p128
      $region38: #{double_conv.3} parent=31 // pred_check_branch
        %1753 = sbr.rel (%p1751) target = $region40
      $region39: #{double_conv.3} parent=31 // pred_region
        _
      $region40: #{double_conv.3} parent=31 // pred_fallthru
        _
    $region32: #{double_conv.3} parent=5 // pred_fallthru
      _
    %p1754 = scmp.le.s32.totalorder 2, %s11
    // Predicated region
    $region41: #{double_conv.3} parent=5 // pred_check
      %p1755 = pneg %p1754
    $region42: #{double_conv.3} parent=5 // pred_check_branch
      %1757 = sbr.rel (%p1755) target = $region44
    $region43: #{double_conv.3} parent=5 // pred_region
      %s1758 = ssub.s32 %s11, 2
      // Predicated region
      $region45: #{double_conv.3} parent=43 // pred_check
        %p1759 = pneg %p108
      $region46: #{double_conv.3} parent=43 // pred_check_branch
        %1761 = sbr.rel (%p1759) target = $region48
      $region47: #{double_conv.3} parent=43 // pred_region
        %p1762 = scmp.lt.s32.totalorder %s17, 1
        %s1763 = scalar_select %p1762, %s17, 1
        %s1764 = smul.addr %s1763, 3
        %s1765 = smul.addr %s1764, 8
        %s1766 = scalar_lea.vmem %s3, %s1765
      $region48: #{double_conv.3} parent=43 // pred_fallthru
        _
      // Predicated region
      $region49: #{double_conv.3} parent=43 // pred_check
        %p1767 = pneg %p134
      $region50: #{double_conv.3} parent=43 // pred_check_branch
        %1769 = sbr.rel (%p1767) target = $region52
      $region51: #{double_conv.3} parent=43 // pred_region
        %p1770 = scmp.lt.s32.totalorder %s17, 1
        %s1771 = scalar_select %p1770, %s17, 1
        %s1772 = smul.addr %s1771, 8
        %s1773 = scalar_lea.vmem %s4, %s1772
      $region52: #{double_conv.3} parent=43 // pred_fallthru
        _
    $region44: #{double_conv.3} parent=5 // pred_fallthru
      _
  $region6: #{double_conv.3} parent=0 // loop_footer
    %s15 = sadd.s32 1, %s11
  $region7: #{double_conv.3} parent=0 // loop_footer_branch
    %10 = sbr.rel target = $region3
  $region8: #{double_conv.3} parent=0 // loop_exit
    _

// kernel: double_conv.4
$region0: #{double_conv.4}
  #allocation0 [shape = 'u32[]', space=smem, size = 0x4, offset = 0x4, fixed_abs, tag = 'smem constant byte address 0x4 - core index']
  #allocation1 [shape = 'u32[144,128]{1,0:T(1,128)}', space=vmem, size = 0x12000, scoped, tag = 'internal scratch']
  %s0 = inlined_call_operand.vmem [shape: f32[2,8,326], index: 0, kind: input, shape index: {}]
  %s1 = inlined_call_operand.vmem [shape: f32[9,8,8], index: 1, kind: input, shape index: {}]
  %s2 = inlined_call_operand.vmem [shape: f32[1,288], index: 2, kind: input, shape index: {}]
  %s3 = inlined_call_operand.vmem [shape: f32[8,2], index: 3, kind: input, shape index: {}]
  %s4 = inlined_call_operand.vmem [shape: f32[1,326], index: 4, kind: input, shape index: {}]
  %s5 = inlined_call_operand.vmem [shape: f32[2,8,326], index: 5, kind: output, shape index: {0}]
  %s6 = inlined_call_operand.vmem [shape: f32[2,8,2], index: 6, kind: output, shape index: {1}]
  %7 = xla_tuple %s5, %s6
  %s8 = sld [smem:[#allocation0]]
  $region61: #{double_conv.4} parent=0
    _
  %s10 = ssub.s32 1, %s8
  %s11 = scalar_select 0, %s10, %s8
  loop: start=0, step=1, limit=4
  $region2: #{double_conv.4} parent=0 // loop_pre_header
    _
  $region3: #{double_conv.4} parent=0 // loop_header
    %s13 = sphi 0, %s17
    %p14 = scmp.ge.s32.totalorder %s13, 4
    %s23 = sphi 0, %s25
    %s26 = sphi 0, %s23
    %s27 = sphi 0, %s26
    %s43 = sphi 0, %s27
    %s47 = sphi 0, %s47
    %s49 = sphi 0, %s47
    %s50 = sphi 0, %s49
    %s64 = sphi 0, %s50
    %s68 = sphi 0, %s68
    %s70 = sphi 0, %s68
    %s71 = sphi 0, %s70
    %s85 = sphi 0, %s71
    %s89 = sphi 0, %s89
    %s91 = sphi 0, %s89
    %s92 = sphi 0, %s91
    %s106 = sphi 0, %s92
    %s110 = sphi 0, %s110
    %s112 = sphi 0, %s110
    %s113 = sphi 0, %s112
    %s127 = sphi 0, %s113
    %s133 = sphi 0, %s135
    %s136 = sphi 0, %s133
    %s137 = sphi 0, %s136
    %s153 = sphi 0, %s137
    %s159 = sphi 0, %s161
    %s162 = sphi 0, %s159
    %s163 = sphi 0, %s162
    %s179 = sphi 0, %s163
  $region4: #{double_conv.4} parent=0 // loop_header_branch
    %16 = sbr.rel (%p14) target = $region8
  $region5: #{double_conv.4} parent=0 // loop_body
    %s18 = ssub.s32 %s13, 1
    %s19 = ssub.s32 %s13, 2
    %s20 = sadd.s32 %s13, 1
    %s21 = ssub.s32 %s13, %s20
    %p22 = scmp.eq.s32.totalorder %s21, 0
    %s24 = sadd.s32 %s23, 1
    %s25 = scalar_select %p22, %s23, %s24
    %p28 = pneg %p22
    %p29 = scmp.eq.s32.totalorder %s13, 1
    %p30 = por %p28, %p29
    %p31 = scmp.ne.s32.totalorder %s23, %s26
    %p32 = scmp.eq.s32.totalorder %s13, 0
    %p33 = por %p31, %p32
    %p34 = scmp.ne.s32.totalorder %s23, %s26
    %p35 = scmp.eq.s32.totalorder %s18, 1
    %p36 = por %p34, %p35
    %p37 = scmp.ne.s32.totalorder %s26, %s27
    %p38 = scmp.eq.s32.totalorder %s18, 0
    %p39 = por %p37, %p38
    %p40 = scmp.ne.s32.totalorder %s26, %s27
    %p41 = scmp.eq.s32.totalorder %s19, 1
    %p42 = por %p40, %p41
    %p44 = scmp.ne.s32.totalorder %s27, %s43
    %p45 = scmp.eq.s32.totalorder %s19, 0
    %p46 = por %p44, %p45
    %s48 = sadd.s32 %s47, 1
    %p51 = scmp.eq.s32.totalorder %s13, 1
    %p52 = scmp.ne.s32.totalorder %s47, %s49
    %p53 = scmp.eq.s32.totalorder %s13, 0
    %p54 = por %p52, %p53
    %p55 = scmp.ne.s32.totalorder %s47, %s49
    %p56 = scmp.eq.s32.totalorder %s18, 1
    %p57 = por %p55, %p56
    %p58 = scmp.ne.s32.totalorder %s49, %s50
    %p59 = scmp.eq.s32.totalorder %s18, 0
    %p60 = por %p58, %p59
    %p61 = scmp.ne.s32.totalorder %s49, %s50
    %p62 = scmp.eq.s32.totalorder %s19, 1
    %p63 = por %p61, %p62
    %p65 = scmp.ne.s32.totalorder %s50, %s64
    %p66 = scmp.eq.s32.totalorder %s19, 0
    %p67 = por %p65, %p66
    %s69 = sadd.s32 %s68, 1
    %p72 = scmp.eq.s32.totalorder %s13, 1
    %p73 = scmp.ne.s32.totalorder %s68, %s70
    %p74 = scmp.eq.s32.totalorder %s13, 0
    %p75 = por %p73, %p74
    %p76 = scmp.ne.s32.totalorder %s68, %s70
    %p77 = scmp.eq.s32.totalorder %s18, 1
    %p78 = por %p76, %p77
    %p79 = scmp.ne.s32.totalorder %s70, %s71
    %p80 = scmp.eq.s32.totalorder %s18, 0
    %p81 = por %p79, %p80
    %p82 = scmp.ne.s32.totalorder %s70, %s71
    %p83 = scmp.eq.s32.totalorder %s19, 1
    %p84 = por %p82, %p83
    %p86 = scmp.ne.s32.totalorder %s71, %s85
    %p87 = scmp.eq.s32.totalorder %s19, 0
    %p88 = por %p86, %p87
    %s90 = sadd.s32 %s89, 1
    %p93 = scmp.eq.s32.totalorder %s13, 1
    %p94 = scmp.ne.s32.totalorder %s89, %s91
    %p95 = scmp.eq.s32.totalorder %s13, 0
    %p96 = por %p94, %p95
    %p97 = scmp.ne.s32.totalorder %s89, %s91
    %p98 = scmp.eq.s32.totalorder %s18, 1
    %p99 = por %p97, %p98
    %p100 = scmp.ne.s32.totalorder %s91, %s92
    %p101 = scmp.eq.s32.totalorder %s18, 0
    %p102 = por %p100, %p101
    %p103 = scmp.ne.s32.totalorder %s91, %s92
    %p104 = scmp.eq.s32.totalorder %s19, 1
    %p105 = por %p103, %p104
    %p107 = scmp.ne.s32.totalorder %s92, %s106
    %p108 = scmp.eq.s32.totalorder %s19, 0
    %p109 = por %p107, %p108
    %s111 = sadd.s32 %s110, 1
    %p114 = scmp.eq.s32.totalorder %s13, 1
    %p115 = scmp.ne.s32.totalorder %s110, %s112
    %p116 = scmp.eq.s32.totalorder %s13, 0
    %p117 = por %p115, %p116
    %p118 = scmp.ne.s32.totalorder %s110, %s112
    %p119 = scmp.eq.s32.totalorder %s18, 1
    %p120 = por %p118, %p119
    %p121 = scmp.ne.s32.totalorder %s112, %s113
    %p122 = scmp.eq.s32.totalorder %s18, 0
    %p123 = por %p121, %p122
    %p124 = scmp.ne.s32.totalorder %s112, %s113
    %p125 = scmp.eq.s32.totalorder %s19, 1
    %p126 = por %p124, %p125
    %p128 = scmp.ne.s32.totalorder %s113, %s127
    %p129 = scmp.eq.s32.totalorder %s19, 0
    %p130 = por %p128, %p129
    %s131 = ssub.s32 %s13, %s20
    %p132 = scmp.eq.s32.totalorder %s131, 0
    %s134 = sadd.s32 %s133, 1
    %s135 = scalar_select %p132, %s133, %s134
    %p138 = pneg %p132
    %p139 = scmp.eq.s32.totalorder %s13, 1
    %p140 = por %p138, %p139
    %p141 = scmp.ne.s32.totalorder %s133, %s136
    %p142 = scmp.eq.s32.totalorder %s13, 0
    %p143 = por %p141, %p142
    %p144 = scmp.ne.s32.totalorder %s133, %s136
    %p145 = scmp.eq.s32.totalorder %s18, 1
    %p146 = por %p144, %p145
    %p147 = scmp.ne.s32.totalorder %s136, %s137
    %p148 = scmp.eq.s32.totalorder %s18, 0
    %p149 = por %p147, %p148
    %p150 = scmp.ne.s32.totalorder %s136, %s137
    %p151 = scmp.eq.s32.totalorder %s19, 1
    %p152 = por %p150, %p151
    %p154 = scmp.ne.s32.totalorder %s137, %s153
    %p155 = scmp.eq.s32.totalorder %s19, 0
    %p156 = por %p154, %p155
    %s157 = ssub.s32 %s13, %s20
    %p158 = scmp.eq.s32.totalorder %s157, 0
    %s160 = sadd.s32 %s159, 1
    %s161 = scalar_select %p158, %s159, %s160
    %p164 = pneg %p158
    %p165 = scmp.eq.s32.totalorder %s13, 1
    %p166 = por %p164, %p165
    %p167 = scmp.ne.s32.totalorder %s159, %s162
    %p168 = scmp.eq.s32.totalorder %s13, 0
    %p169 = por %p167, %p168
    %p170 = scmp.ne.s32.totalorder %s159, %s162
    %p171 = scmp.eq.s32.totalorder %s18, 1
    %p172 = por %p170, %p171
    %p173 = scmp.ne.s32.totalorder %s162, %s163
    %p174 = scmp.eq.s32.totalorder %s18, 0
    %p175 = por %p173, %p174
    %p176 = scmp.ne.s32.totalorder %s162, %s163
    %p177 = scmp.eq.s32.totalorder %s19, 1
    %p178 = por %p176, %p177
    %p180 = scmp.ne.s32.totalorder %s163, %s179
    %p181 = scmp.eq.s32.totalorder %s19, 0
    %p182 = por %p180, %p181
    %p183 = scmp.le.s32.totalorder 1, %s13
    %p184 = scmp.lt.s32.totalorder %s13, 3
    %p185 = pnand %p183, %p184
    %p186 = pneg %p185
    // Predicated region
    $region9: #{double_conv.4} parent=5 // pred_check
      _
    $region10: #{double_conv.4} parent=5 // pred_check_branch
      %188 = sbr.rel (%p185) target = $region12
    $region11: #{double_conv.4} parent=5 // pred_region
      %s189 = ssub.s32 %s13, 1
      // Predicated region
      $region13: #{double_conv.4} parent=11 // pred_check
        %p190 = pneg %p60
      $region14: #{double_conv.4} parent=11 // pred_check_branch
        %192 = sbr.rel (%p190) target = $region16
      $region15: #{double_conv.4} parent=11 // pred_region
        _
      $region16: #{double_conv.4} parent=11 // pred_fallthru
        _
      // Predicated region
      $region17: #{double_conv.4} parent=11 // pred_check
        %p193 = pneg %p81
      $region18: #{double_conv.4} parent=11 // pred_check_branch
        %195 = sbr.rel (%p193) target = $region20
      $region19: #{double_conv.4} parent=11 // pred_region
        _
      $region20: #{double_conv.4} parent=11 // pred_fallthru
        _
      // Predicated region
      $region21: #{double_conv.4} parent=11 // pred_check
        %p196 = pneg %p102
      $region22: #{double_conv.4} parent=11 // pred_check_branch
        %198 = sbr.rel (%p196) target = $region24
      $region23: #{double_conv.4} parent=11 // pred_region
        _
      $region24: #{double_conv.4} parent=11 // pred_fallthru
        _
      // Predicated region
      $region25: #{double_conv.4} parent=11 // pred_check
        %p199 = pneg %p123
      $region26: #{double_conv.4} parent=11 // pred_check_branch
        %201 = sbr.rel (%p199) target = $region28
      $region27: #{double_conv.4} parent=11 // pred_region
        _
      $region28: #{double_conv.4} parent=11 // pred_fallthru
        _
    $region12: #{double_conv.4} parent=5 // pred_fallthru
      _
    %p202 = scmp.lt.s32.totalorder %s13, 2
    // Predicated region
    $region29: #{double_conv.4} parent=5 // pred_check
      %p203 = pneg %p202
    $region30: #{double_conv.4} parent=5 // pred_check_branch
      %205 = sbr.rel (%p203) target = $region32
    $region31: #{double_conv.4} parent=5 // pred_region
      // Predicated region
      $region33: #{double_conv.4} parent=31 // pred_check
        %p206 = pneg %p33
      $region34: #{double_conv.4} parent=31 // pred_check_branch
        %208 = sbr.rel (%p206) target = $region36
      $region35: #{double_conv.4} parent=31 // pred_region
        %p209 = scmp.lt.s32.totalorder %s13, 1
        %s210 = scalar_select %p209, %s13, 1
        %s211 = smul.addr %s210, 3
        %s212 = smul.addr %s211, 8
        %s213 = scalar_lea.vmem %s0, %s212
      $region36: #{double_conv.4} parent=31 // pred_fallthru
        _
    $region32: #{double_conv.4} parent=5 // pred_fallthru
      _
    %p214 = scmp.le.s32.totalorder 1, %s13
    %p215 = scmp.lt.s32.totalorder %s13, 3
    %p216 = pnand %p214, %p215
    %p217 = pneg %p216
    // Predicated region
    $region37: #{double_conv.4} parent=5 // pred_check
      _
    $region38: #{double_conv.4} parent=5 // pred_check_branch
      %219 = sbr.rel (%p216) target = $region40
    $region39: #{double_conv.4} parent=5 // pred_region
      %s220 = ssub.s32 %s13, 1
      %p221 = scmp.lt.s32.totalorder %s18, 1
      %s222 = scalar_select %p221, %s18, 1
      %s223 = smul.addr %s222, 3
      %s224 = smul.addr %s223, 8
      %s225 = scalar_lea.vmem %s0, %s224
      %p226 = pneg %p39
      %p227 = pneg %p36
      %p228 = pneg %p60
      %p229 = pneg %p57
      %p230 = pneg %p81
      %p231 = pneg %p78
      %p232 = pneg %p102
      %p233 = pneg %p99
      %p234 = pneg %p123
      %p235 = pneg %p120
      %p236 = pneg %p149
      %p237 = pneg %p146
      %p238 = scmp.lt.s32.totalorder %s18, 1
      %s239 = scalar_select %p238, %s18, 1
      %s240 = smul.addr %s239, 3
      %s241 = smul.addr %s240, 8
      %s242 = scalar_lea.vmem %s5, %s241
      %p243 = pneg %p175
      %p244 = pneg %p172
      %p245 = scmp.lt.s32.totalorder %s18, 1
      %s246 = scalar_select %p245, %s18, 1
      %s247 = smul.addr %s246, 8
      %s248 = scalar_lea.vmem %s6, %s247
      %p249 = scmp.lt.s32.totalorder %s18, 1
      %s250 = scalar_select %p249, %s18, 1
      %s251 = smul.addr %s250, 3
      %s252 = smul.addr %s251, 8
      %s253 = scalar_lea.vmem %s0, %s252
      %p254 = scmp.lt.s32.totalorder %s18, 1
      %s255 = scalar_select %p254, %s18, 1
      %s256 = smul.addr %s255, 3
      %s257 = smul.addr %s256, 8
      %s258 = scalar_lea.vmem %s5, %s257
      %p259 = scmp.lt.s32.totalorder %s18, 1
      %s260 = scalar_select %p259, %s18, 1
      %s261 = smul.addr %s260, 8
      %s262 = scalar_lea.vmem %s6, %s261
      %v263 = vld [vmem:[%s253] sm:$0xff]
      %v264 = vld [vmem:[%s253 + $0x8] sm:$0xff]
      %v265 = vld [vmem:[%s253 + $0x10] sm:$0xff]
      %v266 = vld [vmem:[%s3] sm:$0xff]
      %268 = vset.pattern.permute.xlu0 0
      %269 = vperm.xlu0 %268, %v266
      %v270 = vpop.permute.xlu0 %269
      %v272 = vmul.f32 %v263, %v270
      %v273 = vmul.f32 %v264, %v270
      %v274 = vmul.f32 %v265, %v270
      %275 = vset.pattern.permute.xlu0 1
      %276 = vperm.xlu0 %275, %v266
      %v277 = vpop.permute.xlu0 %276
      %v279 = vadd.f32 %v272, %v277
      %v280 = vadd.f32 %v273, %v277
      %v281 = vadd.f32 %v274, %v277
      %v282 = vmax.f32 %v279, 0.0
      %v283 = vmax.f32 %v280, 0.0
      %v284 = vmax.f32 %v281, 0.0
      %v285 = vld [vmem:[%s4] sm:$0x7]
      %vm286 = vcmp.gt.f32.partialorder %v285, 0.0
      %v287 = vsel %vm286, 1, 0
      %v288 = vlaneseq
      %v289 = vshrl.u32 %v288, 7
      %v290 = vsub.s32 0, %v289
      %v291 = vrot.slane %v287, %v290
      %v292 = vlaneseq
      %v293 = vshrl.u32 %v292, 7
      %v294 = vsub.s32 1, %v293
      %v295 = vrot.slane %v287, %v294
      %v296 = vlaneseq
      %v297 = vshrl.u32 %v296, 7
      %v298 = vsub.s32 2, %v297
      %v299 = vrot.slane %v287, %v298
      %vm300 = vcmp.eq.s32.totalorder %v291, 1
      %vm301 = vcmp.eq.s32.totalorder %v295, 1
      %vm302 = vcmp.eq.s32.totalorder %v299, 1
      %v303 = vsel %vm300, %v282, 0.0
      %v304 = vsel %vm301, %v283, 0.0
      %v305 = vsel %vm302, %v284, 0.0
      %v306 = vld [vmem:[%s1] sm:$0xff]
      %s307 = scalar_lea.vmem %s1, 8
      %v308 = vld [vmem:[%s307] sm:$0xff]
      %312 = vrot.lane.b32.xlu0 %v303, 127
      %v313 = vpop.permute.xlu0 %312
      %314 = vrot.lane.b32.xlu0 %v304, 127
      %v315 = vpop.permute.xlu0 %314
      %316 = vrot.lane.b32.xlu0 %v305, 127
      %v317 = vpop.permute.xlu0 %316
      %vm318 = vcmask 1039360
      %v319 = vsel %vm318, %v313, %v315
      %v320 = vsel %vm318, %v315, %v317
      %vm324 = vcmask 64512
      %v326 = vsel %vm324, %v308, 0
      %328 = vmatprep.subr.mxu0 %v320
      %329 = vmatpush1.msra.mxu0 %v319
      %330 = vmatprep.subr.mxu0 0.0
      %331 = vmatpush1.msra.mxu0 0.0
      %332 = vmatprep.subr.mxu0 0.0
      %333 = vmatpush1.msra.mxu0 0.0
      %334 = vmatprep.subr.mxu0 0.0
      %335 = vmatpush1.msra.mxu0 0.0
      %336 = vmatprep.subr.mxu0 0.0
      %337 = vmatpush1.msra.mxu0 0.0
      %338 = vmatprep.subr.mxu0 0.0
      %339 = vmatpush1.msra.mxu0 0.0
      %340 = vmatprep.subr.mxu0 0.0
      %341 = vmatpush1.msra.mxu0 0.0
      %342 = vmatprep.subr.mxu0 0.0
      %343 = vmatpush1.msra.mxu0 0.0
      %344 = vmatprep.subr.mxu0 0.0
      %345 = vmatpush1.msra.mxu0 0.0
      %346 = vmatprep.subr.mxu0 0.0
      %347 = vmatpush1.msra.mxu0 0.0
      %348 = vmatprep.subr.mxu0 0.0
      %349 = vmatpush1.msra.mxu0 0.0
      %350 = vmatprep.subr.mxu0 0.0
      %351 = vmatpush1.msra.mxu0 0.0
      %352 = vmatprep.subr.mxu0 0.0
      %353 = vmatpush1.msra.mxu0 0.0
      %354 = vmatprep.subr.mxu0 0.0
      %355 = vmatpush1.msra.mxu0 0.0
      %356 = vmatprep.subr.mxu0 0.0
      %357 = vmatpush1.msra.mxu0 0.0
      %358 = vmatprep.subr.mxu0 0.0
      %359 = vmatpush1.msra.mxu0 0.0
      %360 = vmatprep.subr.mxu0 0.0
      %361 = vmatpush1.msra.mxu0 0.0
      %362 = vmatprep.subr.mxu0 0.0
      %363 = vmatpush1.msra.mxu0 0.0
      %364 = vmatprep.subr.mxu0 0.0
      %365 = vmatpush1.msra.mxu0 0.0
      %366 = vmatprep.subr.mxu0 0.0
      %367 = vmatpush1.msra.mxu0 0.0
      %368 = vmatprep.subr.mxu0 0.0
      %369 = vmatpush1.msra.mxu0 0.0
      %370 = vmatprep.subr.mxu0 0.0
      %371 = vmatpush1.msra.mxu0 0.0
      %372 = vmatprep.subr.mxu0 0.0
      %373 = vmatpush1.msra.mxu0 0.0
      %374 = vmatprep.subr.mxu0 0.0
      %375 = vmatpush1.msra.mxu0 0.0
      %376 = vmatprep.subr.mxu0 0.0
      %377 = vmatpush1.msra.mxu0 0.0
      %378 = vmatprep.subr.mxu0 0.0
      %379 = vmatpush1.msra.mxu0 0.0
      %380 = vmatprep.subr.mxu0 0.0
      %381 = vmatpush1.msra.mxu0 0.0
      %382 = vmatprep.subr.mxu0 0.0
      %383 = vmatpush1.msra.mxu0 0.0
      %384 = vmatprep.subr.mxu0 0.0
      %385 = vmatpush1.msra.mxu0 0.0
      %386 = vmatprep.subr.mxu0 0.0
      %387 = vmatpush1.msra.mxu0 0.0
      %388 = vmatprep.subr.mxu0 0.0
      %389 = vmatpush1.msra.mxu0 0.0
      %390 = vmatprep.subr.mxu0 0.0
      %391 = vmatpush1.msra.mxu0 0.0
      %392 = vmatprep.mubr.f32.mxu0 0.0
      %393 = vmatmul.mubr.f32.gmra.mrb[0].mxu0 %v326
      %v394 = vpop.f32.mrb[0].mxu0
      %v395 = vadd.f32 0.0, %v394
      %v396 = vpop.f32.mrb[0].mxu0
      %v397 = vadd.f32 0.0, %v396
      %398 = vdwg.mxu0
      %399 = vmatprep.subr.mxu0 0.0
      %400 = vmatpush1.msra.mxu0 %v317
      %401 = vmatprep.subr.mxu0 0.0
      %402 = vmatpush1.msra.mxu0 0.0
      %403 = vmatprep.subr.mxu0 0.0
      %404 = vmatpush1.msra.mxu0 0.0
      %405 = vmatprep.subr.mxu0 0.0
      %406 = vmatpush1.msra.mxu0 0.0
      %407 = vmatprep.subr.mxu0 0.0
      %408 = vmatpush1.msra.mxu0 0.0
      %409 = vmatprep.subr.mxu0 0.0
      %410 = vmatpush1.msra.mxu0 0.0
      %411 = vmatprep.subr.mxu0 0.0
      %412 = vmatpush1.msra.mxu0 0.0
      %413 = vmatprep.subr.mxu0 0.0
      %414 = vmatpush1.msra.mxu0 0.0
      %415 = vmatprep.subr.mxu0 0.0
      %416 = vmatpush1.msra.mxu0 0.0
      %417 = vmatprep.subr.mxu0 0.0
      %418 = vmatpush1.msra.mxu0 0.0
      %419 = vmatprep.subr.mxu0 0.0
      %420 = vmatpush1.msra.mxu0 0.0
      %421 = vmatprep.subr.mxu0 0.0
      %422 = vmatpush1.msra.mxu0 0.0
      %423 = vmatprep.subr.mxu0 0.0
      %424 = vmatpush1.msra.mxu0 0.0
      %425 = vmatprep.subr.mxu0 0.0
      %426 = vmatpush1.msra.mxu0 0.0
      %427 = vmatprep.subr.mxu0 0.0
      %428 = vmatpush1.msra.mxu0 0.0
      %429 = vmatprep.subr.mxu0 0.0
      %430 = vmatpush1.msra.mxu0 0.0
      %431 = vmatprep.subr.mxu0 0.0
      %432 = vmatpush1.msra.mxu0 0.0
      %433 = vmatprep.subr.mxu0 0.0
      %434 = vmatpush1.msra.mxu0 0.0
      %435 = vmatprep.subr.mxu0 0.0
      %436 = vmatpush1.msra.mxu0 0.0
      %437 = vmatprep.subr.mxu0 0.0
      %438 = vmatpush1.msra.mxu0 0.0
      %439 = vmatprep.subr.mxu0 0.0
      %440 = vmatpush1.msra.mxu0 0.0
      %441 = vmatprep.subr.mxu0 0.0
      %442 = vmatpush1.msra.mxu0 0.0
      %443 = vmatprep.subr.mxu0 0.0
      %444 = vmatpush1.msra.mxu0 0.0
      %445 = vmatprep.subr.mxu0 0.0
      %446 = vmatpush1.msra.mxu0 0.0
      %447 = vmatprep.subr.mxu0 0.0
      %448 = vmatpush1.msra.mxu0 0.0
      %449 = vmatprep.subr.mxu0 0.0
      %450 = vmatpush1.msra.mxu0 0.0
      %451 = vmatprep.subr.mxu0 0.0
      %452 = vmatpush1.msra.mxu0 0.0
      %453 = vmatprep.subr.mxu0 0.0
      %454 = vmatpush1.msra.mxu0 0.0
      %455 = vmatprep.subr.mxu0 0.0
      %456 = vmatpush1.msra.mxu0 0.0
      %457 = vmatprep.subr.mxu0 0.0
      %458 = vmatpush1.msra.mxu0 0.0
      %459 = vmatprep.subr.mxu0 0.0
      %460 = vmatpush1.msra.mxu0 0.0
      %461 = vmatprep.subr.mxu0 0.0
      %462 = vmatpush1.msra.mxu0 0.0
      %463 = vmatprep.mubr.f32.mxu0 0.0
      %464 = vmatmul.mubr.f32.gmra.mrb[0].mxu0 %v326
      %v465 = vpop.f32.mrb[0].mxu0
      %v466 = vadd.f32 0.0, %v465
      %v467 = vpop.f32.mrb[0].mxu0
      %468 = vdwg.mxu0
      %v470 = vsel %vm324, %v306, 0
      %472 = vmatprep.subr.mxu0 %v304
      %473 = vmatpush1.msra.mxu0 %v303
      %474 = vmatprep.subr.mxu0 0.0
      %475 = vmatpush1.msra.mxu0 0.0
      %476 = vmatprep.subr.mxu0 0.0
      %477 = vmatpush1.msra.mxu0 0.0
      %478 = vmatprep.subr.mxu0 0.0
      %479 = vmatpush1.msra.mxu0 0.0
      %480 = vmatprep.subr.mxu0 0.0
      %481 = vmatpush1.msra.mxu0 0.0
      %482 = vmatprep.subr.mxu0 0.0
      %483 = vmatpush1.msra.mxu0 0.0
      %484 = vmatprep.subr.mxu0 0.0
      %485 = vmatpush1.msra.mxu0 0.0
      %486 = vmatprep.subr.mxu0 0.0
      %487 = vmatpush1.msra.mxu0 0.0
      %488 = vmatprep.subr.mxu0 0.0
      %489 = vmatpush1.msra.mxu0 0.0
      %490 = vmatprep.subr.mxu0 0.0
      %491 = vmatpush1.msra.mxu0 0.0
      %492 = vmatprep.subr.mxu0 0.0
      %493 = vmatpush1.msra.mxu0 0.0
      %494 = vmatprep.subr.mxu0 0.0
      %495 = vmatpush1.msra.mxu0 0.0
      %496 = vmatprep.subr.mxu0 0.0
      %497 = vmatpush1.msra.mxu0 0.0
      %498 = vmatprep.subr.mxu0 0.0
      %499 = vmatpush1.msra.mxu0 0.0
      %500 = vmatprep.subr.mxu0 0.0
      %501 = vmatpush1.msra.mxu0 0.0
      %502 = vmatprep.subr.mxu0 0.0
      %503 = vmatpush1.msra.mxu0 0.0
      %504 = vmatprep.subr.mxu0 0.0
      %505 = vmatpush1.msra.mxu0 0.0
      %506 = vmatprep.subr.mxu0 0.0
      %507 = vmatpush1.msra.mxu0 0.0
      %508 = vmatprep.subr.mxu0 0.0
      %509 = vmatpush1.msra.mxu0 0.0
      %510 = vmatprep.subr.mxu0 0.0
      %511 = vmatpush1.msra.mxu0 0.0
      %512 = vmatprep.subr.mxu0 0.0
      %513 = vmatpush1.msra.mxu0 0.0
      %514 = vmatprep.subr.mxu0 0.0
      %515 = vmatpush1.msra.mxu0 0.0
      %516 = vmatprep.subr.mxu0 0.0
      %517 = vmatpush1.msra.mxu0 0.0
      %518 = vmatprep.subr.mxu0 0.0
      %519 = vmatpush1.msra.mxu0 0.0
      %520 = vmatprep.subr.mxu0 0.0
      %521 = vmatpush1.msra.mxu0 0.0
      %522 = vmatprep.subr.mxu0 0.0
      %523 = vmatpush1.msra.mxu0 0.0
      %524 = vmatprep.subr.mxu0 0.0
      %525 = vmatpush1.msra.mxu0 0.0
      %526 = vmatprep.subr.mxu0 0.0
      %527 = vmatpush1.msra.mxu0 0.0
      %528 = vmatprep.subr.mxu0 0.0
      %529 = vmatpush1.msra.mxu0 0.0
      %530 = vmatprep.subr.mxu0 0.0
      %531 = vmatpush1.msra.mxu0 0.0
      %532 = vmatprep.subr.mxu0 0.0
      %533 = vmatpush1.msra.mxu0 0.0
      %534 = vmatprep.subr.mxu0 0.0
      %535 = vmatpush1.msra.mxu0 0.0
      %536 = vmatprep.mubr.f32.mxu0 0.0
      %537 = vmatmul.mubr.f32.gmra.mrb[0].mxu0 %v470
      %v538 = vpop.f32.mrb[0].mxu0
      %v539 = vadd.f32 %v395, %v538
      %v540 = vpop.f32.mrb[0].mxu0
      %v541 = vadd.f32 %v397, %v540
      %542 = vdwg.mxu0
      %543 = vmatprep.subr.mxu0 0.0
      %544 = vmatpush1.msra.mxu0 %v305
      %545 = vmatprep.subr.mxu0 0.0
      %546 = vmatpush1.msra.mxu0 0.0
      %547 = vmatprep.subr.mxu0 0.0
      %548 = vmatpush1.msra.mxu0 0.0
      %549 = vmatprep.subr.mxu0 0.0
      %550 = vmatpush1.msra.mxu0 0.0
      %551 = vmatprep.subr.mxu0 0.0
      %552 = vmatpush1.msra.mxu0 0.0
      %553 = vmatprep.subr.mxu0 0.0
      %554 = vmatpush1.msra.mxu0 0.0
      %555 = vmatprep.subr.mxu0 0.0
      %556 = vmatpush1.msra.mxu0 0.0
      %557 = vmatprep.subr.mxu0 0.0
      %558 = vmatpush1.msra.mxu0 0.0
      %559 = vmatprep.subr.mxu0 0.0
      %560 = vmatpush1.msra.mxu0 0.0
      %561 = vmatprep.subr.mxu0 0.0
      %562 = vmatpush1.msra.mxu0 0.0
      %563 = vmatprep.subr.mxu0 0.0
      %564 = vmatpush1.msra.mxu0 0.0
      %565 = vmatprep.subr.mxu0 0.0
      %566 = vmatpush1.msra.mxu0 0.0
      %567 = vmatprep.subr.mxu0 0.0
      %568 = vmatpush1.msra.mxu0 0.0
      %569 = vmatprep.subr.mxu0 0.0
      %570 = vmatpush1.msra.mxu0 0.0
      %571 = vmatprep.subr.mxu0 0.0
      %572 = vmatpush1.msra.mxu0 0.0
      %573 = vmatprep.subr.mxu0 0.0
      %574 = vmatpush1.msra.mxu0 0.0
      %575 = vmatprep.subr.mxu0 0.0
      %576 = vmatpush1.msra.mxu0 0.0
      %577 = vmatprep.subr.mxu0 0.0
      %578 = vmatpush1.msra.mxu0 0.0
      %579 = vmatprep.subr.mxu0 0.0
      %580 = vmatpush1.msra.mxu0 0.0
      %581 = vmatprep.subr.mxu0 0.0
      %582 = vmatpush1.msra.mxu0 0.0
      %583 = vmatprep.subr.mxu0 0.0
      %584 = vmatpush1.msra.mxu0 0.0
      %585 = vmatprep.subr.mxu0 0.0
      %586 = vmatpush1.msra.mxu0 0.0
      %587 = vmatprep.subr.mxu0 0.0
      %588 = vmatpush1.msra.mxu0 0.0
      %589 = vmatprep.subr.mxu0 0.0
      %590 = vmatpush1.msra.mxu0 0.0
      %591 = vmatprep.subr.mxu0 0.0
      %592 = vmatpush1.msra.mxu0 0.0
      %593 = vmatprep.subr.mxu0 0.0
      %594 = vmatpush1.msra.mxu0 0.0
      %595 = vmatprep.subr.mxu0 0.0
      %596 = vmatpush1.msra.mxu0 0.0
      %597 = vmatprep.subr.mxu0 0.0
      %598 = vmatpush1.msra.mxu0 0.0
      %599 = vmatprep.subr.mxu0 0.0
      %600 = vmatpush1.msra.mxu0 0.0
      %601 = vmatprep.subr.mxu0 0.0
      %602 = vmatpush1.msra.mxu0 0.0
      %603 = vmatprep.subr.mxu0 0.0
      %604 = vmatpush1.msra.mxu0 0.0
      %605 = vmatprep.subr.mxu0 0.0
      %606 = vmatpush1.msra.mxu0 0.0
      %607 = vmatprep.mubr.f32.mxu0 0.0
      %608 = vmatmul.mubr.f32.gmra.mrb[0].mxu0 %v470
      %v609 = vpop.f32.mrb[0].mxu0
      %v610 = vadd.f32 %v466, %v609
      %v611 = vpop.f32.mrb[0].mxu0
      %612 = vdwg.mxu0
      %s613 = scalar_lea.vmem %s1, 16
      %v614 = vld [vmem:[%s613] sm:$0xff]
      %615 = vrot.lane.b32.xlu0 %v303, 126
      %v616 = vpop.permute.xlu0 %615
      %617 = vrot.lane.b32.xlu0 %v304, 126
      %v618 = vpop.permute.xlu0 %617
      %619 = vrot.lane.b32.xlu0 %v305, 126
      %v620 = vpop.permute.xlu0 %619
      %vm621 = vcmask 1031168
      %v622 = vsel %vm621, %v616, %v618
      %v623 = vsel %vm621, %v618, %v620
      %v628 = vsel %vm324, %v614, 0
      %630 = vmatprep.subr.mxu0 %v623
      %631 = vmatpush1.msra.mxu0 %v622
      %632 = vmatprep.subr.mxu0 0.0
      %633 = vmatpush1.msra.mxu0 0.0
      %634 = vmatprep.subr.mxu0 0.0
      %635 = vmatpush1.msra.mxu0 0.0
      %636 = vmatprep.subr.mxu0 0.0
      %637 = vmatpush1.msra.mxu0 0.0
      %638 = vmatprep.subr.mxu0 0.0
      %639 = vmatpush1.msra.mxu0 0.0
      %640 = vmatprep.subr.mxu0 0.0
      %641 = vmatpush1.msra.mxu0 0.0
      %642 = vmatprep.subr.mxu0 0.0
      %643 = vmatpush1.msra.mxu0 0.0
      %644 = vmatprep.subr.mxu0 0.0
      %645 = vmatpush1.msra.mxu0 0.0
      %646 = vmatprep.subr.mxu0 0.0
      %647 = vmatpush1.msra.mxu0 0.0
      %648 = vmatprep.subr.mxu0 0.0
      %649 = vmatpush1.msra.mxu0 0.0
      %650 = vmatprep.subr.mxu0 0.0
      %651 = vmatpush1.msra.mxu0 0.0
      %652 = vmatprep.subr.mxu0 0.0
      %653 = vmatpush1.msra.mxu0 0.0
      %654 = vmatprep.subr.mxu0 0.0
      %655 = vmatpush1.msra.mxu0 0.0
      %656 = vmatprep.subr.mxu0 0.0
      %657 = vmatpush1.msra.mxu0 0.0
      %658 = vmatprep.subr.mxu0 0.0
      %659 = vmatpush1.msra.mxu0 0.0
      %660 = vmatprep.subr.mxu0 0.0
      %661 = vmatpush1.msra.mxu0 0.0
      %662 = vmatprep.subr.mxu0 0.0
      %663 = vmatpush1.msra.mxu0 0.0
      %664 = vmatprep.subr.mxu0 0.0
      %665 = vmatpush1.msra.mxu0 0.0
      %666 = vmatprep.subr.mxu0 0.0
      %667 = vmatpush1.msra.mxu0 0.0
      %668 = vmatprep.subr.mxu0 0.0
      %669 = vmatpush1.msra.mxu0 0.0
      %670 = vmatprep.subr.mxu0 0.0
      %671 = vmatpush1.msra.mxu0 0.0
      %672 = vmatprep.subr.mxu0 0.0
      %673 = vmatpush1.msra.mxu0 0.0
      %674 = vmatprep.subr.mxu0 0.0
      %675 = vmatpush1.msra.mxu0 0.0
      %676 = vmatprep.subr.mxu0 0.0
      %677 = vmatpush1.msra.mxu0 0.0
      %678 = vmatprep.subr.mxu0 0.0
      %679 = vmatpush1.msra.mxu0 0.0
      %680 = vmatprep.subr.mxu0 0.0
      %681 = vmatpush1.msra.mxu0 0.0
      %682 = vmatprep.subr.mxu0 0.0
      %683 = vmatpush1.msra.mxu0 0.0
      %684 = vmatprep.subr.mxu0 0.0
      %685 = vmatpush1.msra.mxu0 0.0
      %686 = vmatprep.subr.mxu0 0.0
      %687 = vmatpush1.msra.mxu0 0.0
      %688 = vmatprep.subr.mxu0 0.0
      %689 = vmatpush1.msra.mxu0 0.0
      %690 = vmatprep.subr.mxu0 0.0
      %691 = vmatpush1.msra.mxu0 0.0
      %692 = vmatprep.subr.mxu0 0.0
      %693 = vmatpush1.msra.mxu0 0.0
      %694 = vmatprep.mubr.f32.mxu0 0.0
      %695 = vmatmul.mubr.f32.gmra.mrb[0].mxu0 %v628
      %v696 = vpop.f32.mrb[0].mxu0
      %v697 = vadd.f32 0.0, %v696
      %v698 = vpop.f32.mrb[0].mxu0
      %v699 = vadd.f32 0.0, %v698
      %700 = vdwg.mxu0
      %701 = vmatprep.subr.mxu0 0.0
      %702 = vmatpush1.msra.mxu0 %v620
      %703 = vmatprep.subr.mxu0 0.0
      %704 = vmatpush1.msra.mxu0 0.0
      %705 = vmatprep.subr.mxu0 0.0
      %706 = vmatpush1.msra.mxu0 0.0
      %707 = vmatprep.subr.mxu0 0.0
      %708 = vmatpush1.msra.mxu0 0.0
      %709 = vmatprep.subr.mxu0 0.0
      %710 = vmatpush1.msra.mxu0 0.0
      %711 = vmatprep.subr.mxu0 0.0
      %712 = vmatpush1.msra.mxu0 0.0
      %713 = vmatprep.subr.mxu0 0.0
      %714 = vmatpush1.msra.mxu0 0.0
      %715 = vmatprep.subr.mxu0 0.0
      %716 = vmatpush1.msra.mxu0 0.0
      %717 = vmatprep.subr.mxu0 0.0
      %718 = vmatpush1.msra.mxu0 0.0
      %719 = vmatprep.subr.mxu0 0.0
      %720 = vmatpush1.msra.mxu0 0.0
      %721 = vmatprep.subr.mxu0 0.0
      %722 = vmatpush1.msra.mxu0 0.0
      %723 = vmatprep.subr.mxu0 0.0
      %724 = vmatpush1.msra.mxu0 0.0
      %725 = vmatprep.subr.mxu0 0.0
      %726 = vmatpush1.msra.mxu0 0.0
      %727 = vmatprep.subr.mxu0 0.0
      %728 = vmatpush1.msra.mxu0 0.0
      %729 = vmatprep.subr.mxu0 0.0
      %730 = vmatpush1.msra.mxu0 0.0
      %731 = vmatprep.subr.mxu0 0.0
      %732 = vmatpush1.msra.mxu0 0.0
      %733 = vmatprep.subr.mxu0 0.0
      %734 = vmatpush1.msra.mxu0 0.0
      %735 = vmatprep.subr.mxu0 0.0
      %736 = vmatpush1.msra.mxu0 0.0
      %737 = vmatprep.subr.mxu0 0.0
      %738 = vmatpush1.msra.mxu0 0.0
      %739 = vmatprep.subr.mxu0 0.0
      %740 = vmatpush1.msra.mxu0 0.0
      %741 = vmatprep.subr.mxu0 0.0
      %742 = vmatpush1.msra.mxu0 0.0
      %743 = vmatprep.subr.mxu0 0.0
      %744 = vmatpush1.msra.mxu0 0.0
      %745 = vmatprep.subr.mxu0 0.0
      %746 = vmatpush1.msra.mxu0 0.0
      %747 = vmatprep.subr.mxu0 0.0
      %748 = vmatpush1.msra.mxu0 0.0
      %749 = vmatprep.subr.mxu0 0.0
      %750 = vmatpush1.msra.mxu0 0.0
      %751 = vmatprep.subr.mxu0 0.0
      %752 = vmatpush1.msra.mxu0 0.0
      %753 = vmatprep.subr.mxu0 0.0
      %754 = vmatpush1.msra.mxu0 0.0
      %755 = vmatprep.subr.mxu0 0.0
      %756 = vmatpush1.msra.mxu0 0.0
      %757 = vmatprep.subr.mxu0 0.0
      %758 = vmatpush1.msra.mxu0 0.0
      %759 = vmatprep.subr.mxu0 0.0
      %760 = vmatpush1.msra.mxu0 0.0
      %761 = vmatprep.subr.mxu0 0.0
      %762 = vmatpush1.msra.mxu0 0.0
      %763 = vmatprep.subr.mxu0 0.0
      %764 = vmatpush1.msra.mxu0 0.0
      %765 = vmatprep.mubr.f32.mxu0 0.0
      %766 = vmatmul.mubr.f32.gmra.mrb[0].mxu0 %v628
      %v767 = vpop.f32.mrb[0].mxu0
      %v768 = vadd.f32 0.0, %v767
      %v769 = vpop.f32.mrb[0].mxu0
      %770 = vdwg.mxu0
      %v771 = vadd.f32 %v539, %v697
      %v772 = vadd.f32 %v541, %v699
      %v773 = vadd.f32 %v610, %v768
      %s774 = scalar_lea.vmem %s1, 24
      %v775 = vld [vmem:[%s774] sm:$0xff]
      %776 = vrot.lane.b32.xlu0 %v303, 110
      %v777 = vpop.permute.xlu0 %776
      %778 = vrot.lane.b32.xlu0 %v304, 110
      %v779 = vpop.permute.xlu0 %778
      %780 = vrot.lane.b32.xlu0 %v305, 110
      %v781 = vpop.permute.xlu0 %780
      %vm782 = vcmask 900096
      %v783 = vsel %vm782, %v777, %v779
      %v784 = vsel %vm782, %v779, %v781
      %v789 = vsel %vm324, %v775, 0
      %791 = vmatprep.subr.mxu0 %v784
      %792 = vmatpush1.msra.mxu0 %v783
      %793 = vmatprep.subr.mxu0 0.0
      %794 = vmatpush1.msra.mxu0 0.0
      %795 = vmatprep.subr.mxu0 0.0
      %796 = vmatpush1.msra.mxu0 0.0
      %797 = vmatprep.subr.mxu0 0.0
      %798 = vmatpush1.msra.mxu0 0.0
      %799 = vmatprep.subr.mxu0 0.0
      %800 = vmatpush1.msra.mxu0 0.0
      %801 = vmatprep.subr.mxu0 0.0
      %802 = vmatpush1.msra.mxu0 0.0
      %803 = vmatprep.subr.mxu0 0.0
      %804 = vmatpush1.msra.mxu0 0.0
      %805 = vmatprep.subr.mxu0 0.0
      %806 = vmatpush1.msra.mxu0 0.0
      %807 = vmatprep.subr.mxu0 0.0
      %808 = vmatpush1.msra.mxu0 0.0
      %809 = vmatprep.subr.mxu0 0.0
      %810 = vmatpush1.msra.mxu0 0.0
      %811 = vmatprep.subr.mxu0 0.0
      %812 = vmatpush1.msra.mxu0 0.0
      %813 = vmatprep.subr.mxu0 0.0
      %814 = vmatpush1.msra.mxu0 0.0
      %815 = vmatprep.subr.mxu0 0.0
      %816 = vmatpush1.msra.mxu0 0.0
      %817 = vmatprep.subr.mxu0 0.0
      %818 = vmatpush1.msra.mxu0 0.0
      %819 = vmatprep.subr.mxu0 0.0
      %820 = vmatpush1.msra.mxu0 0.0
      %821 = vmatprep.subr.mxu0 0.0
      %822 = vmatpush1.msra.mxu0 0.0
      %823 = vmatprep.subr.mxu0 0.0
      %824 = vmatpush1.msra.mxu0 0.0
      %825 = vmatprep.subr.mxu0 0.0
      %826 = vmatpush1.msra.mxu0 0.0
      %827 = vmatprep.subr.mxu0 0.0
      %828 = vmatpush1.msra.mxu0 0.0
      %829 = vmatprep.subr.mxu0 0.0
      %830 = vmatpush1.msra.mxu0 0.0
      %831 = vmatprep.subr.mxu0 0.0
      %832 = vmatpush1.msra.mxu0 0.0
      %833 = vmatprep.subr.mxu0 0.0
      %834 = vmatpush1.msra.mxu0 0.0
      %835 = vmatprep.subr.mxu0 0.0
      %836 = vmatpush1.msra.mxu0 0.0
      %837 = vmatprep.subr.mxu0 0.0
      %838 = vmatpush1.msra.mxu0 0.0
      %839 = vmatprep.subr.mxu0 0.0
      %840 = vmatpush1.msra.mxu0 0.0
      %841 = vmatprep.subr.mxu0 0.0
      %842 = vmatpush1.msra.mxu0 0.0
      %843 = vmatprep.subr.mxu0 0.0
      %844 = vmatpush1.msra.mxu0 0.0
      %845 = vmatprep.subr.mxu0 0.0
      %846 = vmatpush1.msra.mxu0 0.0
      %847 = vmatprep.subr.mxu0 0.0
      %848 = vmatpush1.msra.mxu0 0.0
      %849 = vmatprep.subr.mxu0 0.0
      %850 = vmatpush1.msra.mxu0 0.0
      %851 = vmatprep.subr.mxu0 0.0
      %852 = vmatpush1.msra.mxu0 0.0
      %853 = vmatprep.subr.mxu0 0.0
      %854 = vmatpush1.msra.mxu0 0.0
      %855 = vmatprep.mubr.f32.mxu0 0.0
      %856 = vmatmul.mubr.f32.gmra.mrb[0].mxu0 %v789
      %v857 = vpop.f32.mrb[0].mxu0
      %v858 = vadd.f32 0.0, %v857
      %v859 = vpop.f32.mrb[0].mxu0
      %v860 = vadd.f32 0.0, %v859
      %861 = vdwg.mxu0
      %862 = vmatprep.subr.mxu0 0.0
      %863 = vmatpush1.msra.mxu0 %v781
      %864 = vmatprep.subr.mxu0 0.0
      %865 = vmatpush1.msra.mxu0 0.0
      %866 = vmatprep.subr.mxu0 0.0
      %867 = vmatpush1.msra.mxu0 0.0
      %868 = vmatprep.subr.mxu0 0.0
      %869 = vmatpush1.msra.mxu0 0.0
      %870 = vmatprep.subr.mxu0 0.0
      %871 = vmatpush1.msra.mxu0 0.0
      %872 = vmatprep.subr.mxu0 0.0
      %873 = vmatpush1.msra.mxu0 0.0
      %874 = vmatprep.subr.mxu0 0.0
      %875 = vmatpush1.msra.mxu0 0.0
      %876 = vmatprep.subr.mxu0 0.0
      %877 = vmatpush1.msra.mxu0 0.0
      %878 = vmatprep.subr.mxu0 0.0
      %879 = vmatpush1.msra.mxu0 0.0
      %880 = vmatprep.subr.mxu0 0.0
      %881 = vmatpush1.msra.mxu0 0.0
      %882 = vmatprep.subr.mxu0 0.0
      %883 = vmatpush1.msra.mxu0 0.0
      %884 = vmatprep.subr.mxu0 0.0
      %885 = vmatpush1.msra.mxu0 0.0
      %886 = vmatprep.subr.mxu0 0.0
      %887 = vmatpush1.msra.mxu0 0.0
      %888 = vmatprep.subr.mxu0 0.0
      %889 = vmatpush1.msra.mxu0 0.0
      %890 = vmatprep.subr.mxu0 0.0
      %891 = vmatpush1.msra.mxu0 0.0
      %892 = vmatprep.subr.mxu0 0.0
      %893 = vmatpush1.msra.mxu0 0.0
      %894 = vmatprep.subr.mxu0 0.0
      %895 = vmatpush1.msra.mxu0 0.0
      %896 = vmatprep.subr.mxu0 0.0
      %897 = vmatpush1.msra.mxu0 0.0
      %898 = vmatprep.subr.mxu0 0.0
      %899 = vmatpush1.msra.mxu0 0.0
      %900 = vmatprep.subr.mxu0 0.0
      %901 = vmatpush1.msra.mxu0 0.0
      %902 = vmatprep.subr.mxu0 0.0
      %903 = vmatpush1.msra.mxu0 0.0
      %904 = vmatprep.subr.mxu0 0.0
      %905 = vmatpush1.msra.mxu0 0.0
      %906 = vmatprep.subr.mxu0 0.0
      %907 = vmatpush1.msra.mxu0 0.0
      %908 = vmatprep.subr.mxu0 0.0
      %909 = vmatpush1.msra.mxu0 0.0
      %910 = vmatprep.subr.mxu0 0.0
      %911 = vmatpush1.msra.mxu0 0.0
      %912 = vmatprep.subr.mxu0 0.0
      %913 = vmatpush1.msra.mxu0 0.0
      %914 = vmatprep.subr.mxu0 0.0
      %915 = vmatpush1.msra.mxu0 0.0
      %916 = vmatprep.subr.mxu0 0.0
      %917 = vmatpush1.msra.mxu0 0.0
      %918 = vmatprep.subr.mxu0 0.0
      %919 = vmatpush1.msra.mxu0 0.0
      %920 = vmatprep.subr.mxu0 0.0
      %921 = vmatpush1.msra.mxu0 0.0
      %922 = vmatprep.subr.mxu0 0.0
      %923 = vmatpush1.msra.mxu0 0.0
      %924 = vmatprep.subr.mxu0 0.0
      %925 = vmatpush1.msra.mxu0 0.0
      %926 = vmatprep.mubr.f32.mxu0 0.0
      %927 = vmatmul.mubr.f32.gmra.mrb[0].mxu0 %v789
      %v928 = vpop.f32.mrb[0].mxu0
      %v929 = vadd.f32 0.0, %v928
      %v930 = vpop.f32.mrb[0].mxu0
      %931 = vdwg.mxu0
      %v932 = vadd.f32 %v771, %v858
      %v933 = vadd.f32 %v772, %v860
      %v934 = vadd.f32 %v773, %v929
      %s935 = scalar_lea.vmem %s1, 32
      %v936 = vld [vmem:[%s935] sm:$0xff]
      %937 = vrot.lane.b32.xlu0 %v303, 109
      %v938 = vpop.permute.xlu0 %937
      %939 = vrot.lane.b32.xlu0 %v304, 109
      %v940 = vpop.permute.xlu0 %939
      %941 = vrot.lane.b32.xlu0 %v305, 109
      %v942 = vpop.permute.xlu0 %941
      %vm943 = vcmask 891904
      %v944 = vsel %vm943, %v938, %v940
      %v945 = vsel %vm943, %v940, %v942
      %v950 = vsel %vm324, %v936, 0
      %952 = vmatprep.subr.mxu0 %v945
      %953 = vmatpush1.msra.mxu0 %v944
      %954 = vmatprep.subr.mxu0 0.0
      %955 = vmatpush1.msra.mxu0 0.0
      %956 = vmatprep.subr.mxu0 0.0
      %957 = vmatpush1.msra.mxu0 0.0
      %958 = vmatprep.subr.mxu0 0.0
      %959 = vmatpush1.msra.mxu0 0.0
      %960 = vmatprep.subr.mxu0 0.0
      %961 = vmatpush1.msra.mxu0 0.0
      %962 = vmatprep.subr.mxu0 0.0
      %963 = vmatpush1.msra.mxu0 0.0
      %964 = vmatprep.subr.mxu0 0.0
      %965 = vmatpush1.msra.mxu0 0.0
      %966 = vmatprep.subr.mxu0 0.0
      %967 = vmatpush1.msra.mxu0 0.0
      %968 = vmatprep.subr.mxu0 0.0
      %969 = vmatpush1.msra.mxu0 0.0
      %970 = vmatprep.subr.mxu0 0.0
      %971 = vmatpush1.msra.mxu0 0.0
      %972 = vmatprep.subr.mxu0 0.0
      %973 = vmatpush1.msra.mxu0 0.0
      %974 = vmatprep.subr.mxu0 0.0
      %975 = vmatpush1.msra.mxu0 0.0
      %976 = vmatprep.subr.mxu0 0.0
      %977 = vmatpush1.msra.mxu0 0.0
      %978 = vmatprep.subr.mxu0 0.0
      %979 = vmatpush1.msra.mxu0 0.0
      %980 = vmatprep.subr.mxu0 0.0
      %981 = vmatpush1.msra.mxu0 0.0
      %982 = vmatprep.subr.mxu0 0.0
      %983 = vmatpush1.msra.mxu0 0.0
      %984 = vmatprep.subr.mxu0 0.0
      %985 = vmatpush1.msra.mxu0 0.0
      %986 = vmatprep.subr.mxu0 0.0
      %987 = vmatpush1.msra.mxu0 0.0
      %988 = vmatprep.subr.mxu0 0.0
      %989 = vmatpush1.msra.mxu0 0.0
      %990 = vmatprep.subr.mxu0 0.0
      %991 = vmatpush1.msra.mxu0 0.0
      %992 = vmatprep.subr.mxu0 0.0
      %993 = vmatpush1.msra.mxu0 0.0
      %994 = vmatprep.subr.mxu0 0.0
      %995 = vmatpush1.msra.mxu0 0.0
      %996 = vmatprep.subr.mxu0 0.0
      %997 = vmatpush1.msra.mxu0 0.0
      %998 = vmatprep.subr.mxu0 0.0
      %999 = vmatpush1.msra.mxu0 0.0
      %1000 = vmatprep.subr.mxu0 0.0
      %1001 = vmatpush1.msra.mxu0 0.0
      %1002 = vmatprep.subr.mxu0 0.0
      %1003 = vmatpush1.msra.mxu0 0.0
      %1004 = vmatprep.subr.mxu0 0.0
      %1005 = vmatpush1.msra.mxu0 0.0
      %1006 = vmatprep.subr.mxu0 0.0
      %1007 = vmatpush1.msra.mxu0 0.0
      %1008 = vmatprep.subr.mxu0 0.0
      %1009 = vmatpush1.msra.mxu0 0.0
      %1010 = vmatprep.subr.mxu0 0.0
      %1011 = vmatpush1.msra.mxu0 0.0
      %1012 = vmatprep.subr.mxu0 0.0
      %1013 = vmatpush1.msra.mxu0 0.0
      %1014 = vmatprep.subr.mxu0 0.0
      %1015 = vmatpush1.msra.mxu0 0.0
      %1016 = vmatprep.mubr.f32.mxu0 0.0
      %1017 = vmatmul.mubr.f32.gmra.mrb[0].mxu0 %v950
      %v1018 = vpop.f32.mrb[0].mxu0
      %v1019 = vadd.f32 0.0, %v1018
      %v1020 = vpop.f32.mrb[0].mxu0
      %v1021 = vadd.f32 0.0, %v1020
      %1022 = vdwg.mxu0
      %1023 = vmatprep.subr.mxu0 0.0
      %1024 = vmatpush1.msra.mxu0 %v942
      %1025 = vmatprep.subr.mxu0 0.0
      %1026 = vmatpush1.msra.mxu0 0.0
      %1027 = vmatprep.subr.mxu0 0.0
      %1028 = vmatpush1.msra.mxu0 0.0
      %1029 = vmatprep.subr.mxu0 0.0
      %1030 = vmatpush1.msra.mxu0 0.0
      %1031 = vmatprep.subr.mxu0 0.0
      %1032 = vmatpush1.msra.mxu0 0.0
      %1033 = vmatprep.subr.mxu0 0.0
      %1034 = vmatpush1.msra.mxu0 0.0
      %1035 = vmatprep.subr.mxu0 0.0
      %1036 = vmatpush1.msra.mxu0 0.0
      %1037 = vmatprep.subr.mxu0 0.0
      %1038 = vmatpush1.msra.mxu0 0.0
      %1039 = vmatprep.subr.mxu0 0.0
      %1040 = vmatpush1.msra.mxu0 0.0
      %1041 = vmatprep.subr.mxu0 0.0
      %1042 = vmatpush1.msra.mxu0 0.0
      %1043 = vmatprep.subr.mxu0 0.0
      %1044 = vmatpush1.msra.mxu0 0.0
      %1045 = vmatprep.subr.mxu0 0.0
      %1046 = vmatpush1.msra.mxu0 0.0
      %1047 = vmatprep.subr.mxu0 0.0
      %1048 = vmatpush1.msra.mxu0 0.0
      %1049 = vmatprep.subr.mxu0 0.0
      %1050 = vmatpush1.msra.mxu0 0.0
      %1051 = vmatprep.subr.mxu0 0.0
      %1052 = vmatpush1.msra.mxu0 0.0
      %1053 = vmatprep.subr.mxu0 0.0
      %1054 = vmatpush1.msra.mxu0 0.0
      %1055 = vmatprep.subr.mxu0 0.0
      %1056 = vmatpush1.msra.mxu0 0.0
      %1057 = vmatprep.subr.mxu0 0.0
      %1058 = vmatpush1.msra.mxu0 0.0
      %1059 = vmatprep.subr.mxu0 0.0
      %1060 = vmatpush1.msra.mxu0 0.0
      %1061 = vmatprep.subr.mxu0 0.0
      %1062 = vmatpush1.msra.mxu0 0.0
      %1063 = vmatprep.subr.mxu0 0.0
      %1064 = vmatpush1.msra.mxu0 0.0
      %1065 = vmatprep.subr.mxu0 0.0
      %1066 = vmatpush1.msra.mxu0 0.0
      %1067 = vmatprep.subr.mxu0 0.0
      %1068 = vmatpush1.msra.mxu0 0.0
      %1069 = vmatprep.subr.mxu0 0.0
      %1070 = vmatpush1.msra.mxu0 0.0
      %1071 = vmatprep.subr.mxu0 0.0
      %1072 = vmatpush1.msra.mxu0 0.0
      %1073 = vmatprep.subr.mxu0 0.0
      %1074 = vmatpush1.msra.mxu0 0.0
      %1075 = vmatprep.subr.mxu0 0.0
      %1076 = vmatpush1.msra.mxu0 0.0
      %1077 = vmatprep.subr.mxu0 0.0
      %1078 = vmatpush1.msra.mxu0 0.0
      %1079 = vmatprep.subr.mxu0 0.0
      %1080 = vmatpush1.msra.mxu0 0.0
      %1081 = vmatprep.subr.mxu0 0.0
      %1082 = vmatpush1.msra.mxu0 0.0
      %1083 = vmatprep.subr.mxu0 0.0
      %1084 = vmatpush1.msra.mxu0 0.0
      %1085 = vmatprep.subr.mxu0 0.0
      %1086 = vmatpush1.msra.mxu0 0.0
      %1087 = vmatprep.mubr.f32.mxu0 0.0
      %1088 = vmatmul.mubr.f32.gmra.mrb[0].mxu0 %v950
      %v1089 = vpop.f32.mrb[0].mxu0
      %v1090 = vadd.f32 0.0, %v1089
      %v1091 = vpop.f32.mrb[0].mxu0
      %1092 = vdwg.mxu0
      %v1093 = vadd.f32 %v932, %v1019
      %v1094 = vadd.f32 %v933, %v1021
      %v1095 = vadd.f32 %v934, %v1090
      %s1096 = scalar_lea.vmem %s1, 40
      %v1097 = vld [vmem:[%s1096] sm:$0xff]
      %1098 = vrot.lane.b32.xlu0 %v303, 108
      %v1099 = vpop.permute.xlu0 %1098
      %1100 = vrot.lane.b32.xlu0 %v304, 108
      %v1101 = vpop.permute.xlu0 %1100
      %1102 = vrot.lane.b32.xlu0 %v305, 108
      %v1103 = vpop.permute.xlu0 %1102
      %vm1104 = vcmask 883712
      %v1105 = vsel %vm1104, %v1099, %v1101
      %v1106 = vsel %vm1104, %v1101, %v1103
      %v1111 = vsel %vm324, %v1097, 0
      %1113 = vmatprep.subr.mxu0 %v1106
      %1114 = vmatpush1.msra.mxu0 %v1105
      %1115 = vmatprep.subr.mxu0 0.0
      %1116 = vmatpush1.msra.mxu0 0.0
      %1117 = vmatprep.subr.mxu0 0.0
      %1118 = vmatpush1.msra.mxu0 0.0
      %1119 = vmatprep.subr.mxu0 0.0
      %1120 = vmatpush1.msra.mxu0 0.0
      %1121 = vmatprep.subr.mxu0 0.0
      %1122 = vmatpush1.msra.mxu0 0.0
      %1123 = vmatprep.subr.mxu0 0.0
      %1124 = vmatpush1.msra.mxu0 0.0
      %1125 = vmatprep.subr.mxu0 0.0
      %1126 = vmatpush1.msra.mxu0 0.0
      %1127 = vmatprep.subr.mxu0 0.0
      %1128 = vmatpush1.msra.mxu0 0.0
      %1129 = vmatprep.subr.mxu0 0.0
      %1130 = vmatpush1.msra.mxu0 0.0
      %1131 = vmatprep.subr.mxu0 0.0
      %1132 = vmatpush1.msra.mxu0 0.0
      %1133 = vmatprep.subr.mxu0 0.0
      %1134 = vmatpush1.msra.mxu0 0.0
      %1135 = vmatprep.subr.mxu0 0.0
      %1136 = vmatpush1.msra.mxu0 0.0
      %1137 = vmatprep.subr.mxu0 0.0
      %1138 = vmatpush1.msra.mxu0 0.0
      %1139 = vmatprep.subr.mxu0 0.0
      %1140 = vmatpush1.msra.mxu0 0.0
      %1141 = vmatprep.subr.mxu0 0.0
      %1142 = vmatpush1.msra.mxu0 0.0
      %1143 = vmatprep.subr.mxu0 0.0
      %1144 = vmatpush1.msra.mxu0 0.0
      %1145 = vmatprep.subr.mxu0 0.0
      %1146 = vmatpush1.msra.mxu0 0.0
      %1147 = vmatprep.subr.mxu0 0.0
      %1148 = vmatpush1.msra.mxu0 0.0
      %1149 = vmatprep.subr.mxu0 0.0
      %1150 = vmatpush1.msra.mxu0 0.0
      %1151 = vmatprep.subr.mxu0 0.0
      %1152 = vmatpush1.msra.mxu0 0.0
      %1153 = vmatprep.subr.mxu0 0.0
      %1154 = vmatpush1.msra.mxu0 0.0
      %1155 = vmatprep.subr.mxu0 0.0
      %1156 = vmatpush1.msra.mxu0 0.0
      %1157 = vmatprep.subr.mxu0 0.0
      %1158 = vmatpush1.msra.mxu0 0.0
      %1159 = vmatprep.subr.mxu0 0.0
      %1160 = vmatpush1.msra.mxu0 0.0
      %1161 = vmatprep.subr.mxu0 0.0
      %1162 = vmatpush1.msra.mxu0 0.0
      %1163 = vmatprep.subr.mxu0 0.0
      %1164 = vmatpush1.msra.mxu0 0.0
      %1165 = vmatprep.subr.mxu0 0.0
      %1166 = vmatpush1.msra.mxu0 0.0
      %1167 = vmatprep.subr.mxu0 0.0
      %1168 = vmatpush1.msra.mxu0 0.0
      %1169 = vmatprep.subr.mxu0 0.0
      %1170 = vmatpush1.msra.mxu0 0.0
      %1171 = vmatprep.subr.mxu0 0.0
      %1172 = vmatpush1.msra.mxu0 0.0
      %1173 = vmatprep.subr.mxu0 0.0
      %1174 = vmatpush1.msra.mxu0 0.0
      %1175 = vmatprep.subr.mxu0 0.0
      %1176 = vmatpush1.msra.mxu0 0.0
      %1177 = vmatprep.mubr.f32.mxu0 0.0
      %1178 = vmatmul.mubr.f32.gmra.mrb[0].mxu0 %v1111
      %v1179 = vpop.f32.mrb[0].mxu0
      %v1180 = vadd.f32 0.0, %v1179
      %v1181 = vpop.f32.mrb[0].mxu0
      %v1182 = vadd.f32 0.0, %v1181
      %1183 = vdwg.mxu0
      %1184 = vmatprep.subr.mxu0 0.0
      %1185 = vmatpush1.msra.mxu0 %v1103
      %1186 = vmatprep.subr.mxu0 0.0
      %1187 = vmatpush1.msra.mxu0 0.0
      %1188 = vmatprep.subr.mxu0 0.0
      %1189 = vmatpush1.msra.mxu0 0.0
      %1190 = vmatprep.subr.mxu0 0.0
      %1191 = vmatpush1.msra.mxu0 0.0
      %1192 = vmatprep.subr.mxu0 0.0
      %1193 = vmatpush1.msra.mxu0 0.0
      %1194 = vmatprep.subr.mxu0 0.0
      %1195 = vmatpush1.msra.mxu0 0.0
      %1196 = vmatprep.subr.mxu0 0.0
      %1197 = vmatpush1.msra.mxu0 0.0
      %1198 = vmatprep.subr.mxu0 0.0
      %1199 = vmatpush1.msra.mxu0 0.0
      %1200 = vmatprep.subr.mxu0 0.0
      %1201 = vmatpush1.msra.mxu0 0.0
      %1202 = vmatprep.subr.mxu0 0.0
      %1203 = vmatpush1.msra.mxu0 0.0
      %1204 = vmatprep.subr.mxu0 0.0
      %1205 = vmatpush1.msra.mxu0 0.0
      %1206 = vmatprep.subr.mxu0 0.0
      %1207 = vmatpush1.msra.mxu0 0.0
      %1208 = vmatprep.subr.mxu0 0.0
      %1209 = vmatpush1.msra.mxu0 0.0
      %1210 = vmatprep.subr.mxu0 0.0
      %1211 = vmatpush1.msra.mxu0 0.0
      %1212 = vmatprep.subr.mxu0 0.0
      %1213 = vmatpush1.msra.mxu0 0.0
      %1214 = vmatprep.subr.mxu0 0.0
      %1215 = vmatpush1.msra.mxu0 0.0
      %1216 = vmatprep.subr.mxu0 0.0
      %1217 = vmatpush1.msra.mxu0 0.0
      %1218 = vmatprep.subr.mxu0 0.0
      %1219 = vmatpush1.msra.mxu0 0.0
      %1220 = vmatprep.subr.mxu0 0.0
      %1221 = vmatpush1.msra.mxu0 0.0
      %1222 = vmatprep.subr.mxu0 0.0
      %1223 = vmatpush1.msra.mxu0 0.0
      %1224 = vmatprep.subr.mxu0 0.0
      %1225 = vmatpush1.msra.mxu0 0.0
      %1226 = vmatprep.subr.mxu0 0.0
      %1227 = vmatpush1.msra.mxu0 0.0
      %1228 = vmatprep.subr.mxu0 0.0
      %1229 = vmatpush1.msra.mxu0 0.0
      %1230 = vmatprep.subr.mxu0 0.0
      %1231 = vmatpush1.msra.mxu0 0.0
      %1232 = vmatprep.subr.mxu0 0.0
      %1233 = vmatpush1.msra.mxu0 0.0
      %1234 = vmatprep.subr.mxu0 0.0
      %1235 = vmatpush1.msra.mxu0 0.0
      %1236 = vmatprep.subr.mxu0 0.0
      %1237 = vmatpush1.msra.mxu0 0.0
      %1238 = vmatprep.subr.mxu0 0.0
      %1239 = vmatpush1.msra.mxu0 0.0
      %1240 = vmatprep.subr.mxu0 0.0
      %1241 = vmatpush1.msra.mxu0 0.0
      %1242 = vmatprep.subr.mxu0 0.0
      %1243 = vmatpush1.msra.mxu0 0.0
      %1244 = vmatprep.subr.mxu0 0.0
      %1245 = vmatpush1.msra.mxu0 0.0
      %1246 = vmatprep.subr.mxu0 0.0
      %1247 = vmatpush1.msra.mxu0 0.0
      %1248 = vmatprep.mubr.f32.mxu0 0.0
      %1249 = vmatmul.mubr.f32.gmra.mrb[0].mxu0 %v1111
      %v1250 = vpop.f32.mrb[0].mxu0
      %v1251 = vadd.f32 0.0, %v1250
      %v1252 = vpop.f32.mrb[0].mxu0
      %1253 = vdwg.mxu0
      %v1254 = vadd.f32 %v1093, %v1180
      %v1255 = vadd.f32 %v1094, %v1182
      %v1256 = vadd.f32 %v1095, %v1251
      %s1257 = scalar_lea.vmem %s1, 48
      %v1258 = vld [vmem:[%s1257] sm:$0xff]
      %1259 = vrot.lane.b32.xlu0 %v303, 92
      %v1260 = vpop.permute.xlu0 %1259
      %1261 = vrot.lane.b32.xlu0 %v304, 92
      %v1262 = vpop.permute.xlu0 %1261
      %1263 = vrot.lane.b32.xlu0 %v305, 92
      %v1264 = vpop.permute.xlu0 %1263
      %vm1265 = vcmask 752640
      %v1266 = vsel %vm1265, %v1260, %v1262
      %v1267 = vsel %vm1265, %v1262, %v1264
      %v1272 = vsel %vm324, %v1258, 0
      %1274 = vmatprep.subr.mxu0 %v1267
      %1275 = vmatpush1.msra.mxu0 %v1266
      %1276 = vmatprep.subr.mxu0 0.0
      %1277 = vmatpush1.msra.mxu0 0.0
      %1278 = vmatprep.subr.mxu0 0.0
      %1279 = vmatpush1.msra.mxu0 0.0
      %1280 = vmatprep.subr.mxu0 0.0
      %1281 = vmatpush1.msra.mxu0 0.0
      %1282 = vmatprep.subr.mxu0 0.0
      %1283 = vmatpush1.msra.mxu0 0.0
      %1284 = vmatprep.subr.mxu0 0.0
      %1285 = vmatpush1.msra.mxu0 0.0
      %1286 = vmatprep.subr.mxu0 0.0
      %1287 = vmatpush1.msra.mxu0 0.0
      %1288 = vmatprep.subr.mxu0 0.0
      %1289 = vmatpush1.msra.mxu0 0.0
      %1290 = vmatprep.subr.mxu0 0.0
      %1291 = vmatpush1.msra.mxu0 0.0
      %1292 = vmatprep.subr.mxu0 0.0
      %1293 = vmatpush1.msra.mxu0 0.0
      %1294 = vmatprep.subr.mxu0 0.0
      %1295 = vmatpush1.msra.mxu0 0.0
      %1296 = vmatprep.subr.mxu0 0.0
      %1297 = vmatpush1.msra.mxu0 0.0
      %1298 = vmatprep.subr.mxu0 0.0
      %1299 = vmatpush1.msra.mxu0 0.0
      %1300 = vmatprep.subr.mxu0 0.0
      %1301 = vmatpush1.msra.mxu0 0.0
      %1302 = vmatprep.subr.mxu0 0.0
      %1303 = vmatpush1.msra.mxu0 0.0
      %1304 = vmatprep.subr.mxu0 0.0
      %1305 = vmatpush1.msra.mxu0 0.0
      %1306 = vmatprep.subr.mxu0 0.0
      %1307 = vmatpush1.msra.mxu0 0.0
      %1308 = vmatprep.subr.mxu0 0.0
      %1309 = vmatpush1.msra.mxu0 0.0
      %1310 = vmatprep.subr.mxu0 0.0
      %1311 = vmatpush1.msra.mxu0 0.0
      %1312 = vmatprep.subr.mxu0 0.0
      %1313 = vmatpush1.msra.mxu0 0.0
      %1314 = vmatprep.subr.mxu0 0.0
      %1315 = vmatpush1.msra.mxu0 0.0
      %1316 = vmatprep.subr.mxu0 0.0
      %1317 = vmatpush1.msra.mxu0 0.0
      %1318 = vmatprep.subr.mxu0 0.0
      %1319 = vmatpush1.msra.mxu0 0.0
      %1320 = vmatprep.subr.mxu0 0.0
      %1321 = vmatpush1.msra.mxu0 0.0
      %1322 = vmatprep.subr.mxu0 0.0
      %1323 = vmatpush1.msra.mxu0 0.0
      %1324 = vmatprep.subr.mxu0 0.0
      %1325 = vmatpush1.msra.mxu0 0.0
      %1326 = vmatprep.subr.mxu0 0.0
      %1327 = vmatpush1.msra.mxu0 0.0
      %1328 = vmatprep.subr.mxu0 0.0
      %1329 = vmatpush1.msra.mxu0 0.0
      %1330 = vmatprep.subr.mxu0 0.0
      %1331 = vmatpush1.msra.mxu0 0.0
      %1332 = vmatprep.subr.mxu0 0.0
      %1333 = vmatpush1.msra.mxu0 0.0
      %1334 = vmatprep.subr.mxu0 0.0
      %1335 = vmatpush1.msra.mxu0 0.0
      %1336 = vmatprep.subr.mxu0 0.0
      %1337 = vmatpush1.msra.mxu0 0.0
      %1338 = vmatprep.mubr.f32.mxu0 0.0
      %1339 = vmatmul.mubr.f32.gmra.mrb[0].mxu0 %v1272
      %v1340 = vpop.f32.mrb[0].mxu0
      %v1341 = vadd.f32 0.0, %v1340
      %v1342 = vpop.f32.mrb[0].mxu0
      %v1343 = vadd.f32 0.0, %v1342
      %1344 = vdwg.mxu0
      %1345 = vmatprep.subr.mxu0 0.0
      %1346 = vmatpush1.msra.mxu0 %v1264
      %1347 = vmatprep.subr.mxu0 0.0
      %1348 = vmatpush1.msra.mxu0 0.0
      %1349 = vmatprep.subr.mxu0 0.0
      %1350 = vmatpush1.msra.mxu0 0.0
      %1351 = vmatprep.subr.mxu0 0.0
      %1352 = vmatpush1.msra.mxu0 0.0
      %1353 = vmatprep.subr.mxu0 0.0
      %1354 = vmatpush1.msra.mxu0 0.0
      %1355 = vmatprep.subr.mxu0 0.0
      %1356 = vmatpush1.msra.mxu0 0.0
      %1357 = vmatprep.subr.mxu0 0.0
      %1358 = vmatpush1.msra.mxu0 0.0
      %1359 = vmatprep.subr.mxu0 0.0
      %1360 = vmatpush1.msra.mxu0 0.0
      %1361 = vmatprep.subr.mxu0 0.0
      %1362 = vmatpush1.msra.mxu0 0.0
      %1363 = vmatprep.subr.mxu0 0.0
      %1364 = vmatpush1.msra.mxu0 0.0
      %1365 = vmatprep.subr.mxu0 0.0
      %1366 = vmatpush1.msra.mxu0 0.0
      %1367 = vmatprep.subr.mxu0 0.0
      %1368 = vmatpush1.msra.mxu0 0.0
      %1369 = vmatprep.subr.mxu0 0.0
      %1370 = vmatpush1.msra.mxu0 0.0
      %1371 = vmatprep.subr.mxu0 0.0
      %1372 = vmatpush1.msra.mxu0 0.0
      %1373 = vmatprep.subr.mxu0 0.0
      %1374 = vmatpush1.msra.mxu0 0.0
      %1375 = vmatprep.subr.mxu0 0.0
      %1376 = vmatpush1.msra.mxu0 0.0
      %1377 = vmatprep.subr.mxu0 0.0
      %1378 = vmatpush1.msra.mxu0 0.0
      %1379 = vmatprep.subr.mxu0 0.0
      %1380 = vmatpush1.msra.mxu0 0.0
      %1381 = vmatprep.subr.mxu0 0.0
      %1382 = vmatpush1.msra.mxu0 0.0
      %1383 = vmatprep.subr.mxu0 0.0
      %1384 = vmatpush1.msra.mxu0 0.0
      %1385 = vmatprep.subr.mxu0 0.0
      %1386 = vmatpush1.msra.mxu0 0.0
      %1387 = vmatprep.subr.mxu0 0.0
      %1388 = vmatpush1.msra.mxu0 0.0
      %1389 = vmatprep.subr.mxu0 0.0
      %1390 = vmatpush1.msra.mxu0 0.0
      %1391 = vmatprep.subr.mxu0 0.0
      %1392 = vmatpush1.msra.mxu0 0.0
      %1393 = vmatprep.subr.mxu0 0.0
      %1394 = vmatpush1.msra.mxu0 0.0
      %1395 = vmatprep.subr.mxu0 0.0
      %1396 = vmatpush1.msra.mxu0 0.0
      %1397 = vmatprep.subr.mxu0 0.0
      %1398 = vmatpush1.msra.mxu0 0.0
      %1399 = vmatprep.subr.mxu0 0.0
      %1400 = vmatpush1.msra.mxu0 0.0
      %1401 = vmatprep.subr.mxu0 0.0
      %1402 = vmatpush1.msra.mxu0 0.0
      %1403 = vmatprep.subr.mxu0 0.0
      %1404 = vmatpush1.msra.mxu0 0.0
      %1405 = vmatprep.subr.mxu0 0.0
      %1406 = vmatpush1.msra.mxu0 0.0
      %1407 = vmatprep.subr.mxu0 0.0
      %1408 = vmatpush1.msra.mxu0 0.0
      %1409 = vmatprep.mubr.f32.mxu0 0.0
      %1410 = vmatmul.mubr.f32.gmra.mrb[0].mxu0 %v1272
      %v1411 = vpop.f32.mrb[0].mxu0
      %v1412 = vadd.f32 0.0, %v1411
      %v1413 = vpop.f32.mrb[0].mxu0
      %1414 = vdwg.mxu0
      %v1415 = vadd.f32 %v1254, %v1341
      %v1416 = vadd.f32 %v1255, %v1343
      %v1417 = vadd.f32 %v1256, %v1412
      %s1418 = scalar_lea.vmem %s1, 56
      %v1419 = vld [vmem:[%s1418] sm:$0xff]
      %1420 = vrot.lane.b32.xlu0 %v303, 91
      %v1421 = vpop.permute.xlu0 %1420
      %1422 = vrot.lane.b32.xlu0 %v304, 91
      %v1423 = vpop.permute.xlu0 %1422
      %1424 = vrot.lane.b32.xlu0 %v305, 91
      %v1425 = vpop.permute.xlu0 %1424
      %vm1426 = vcmask 744448
      %v1427 = vsel %vm1426, %v1421, %v1423
      %v1428 = vsel %vm1426, %v1423, %v1425
      %v1433 = vsel %vm324, %v1419, 0
      %1435 = vmatprep.subr.mxu0 %v1428
      %1436 = vmatpush1.msra.mxu0 %v1427
      %1437 = vmatprep.subr.mxu0 0.0
      %1438 = vmatpush1.msra.mxu0 0.0
      %1439 = vmatprep.subr.mxu0 0.0
      %1440 = vmatpush1.msra.mxu0 0.0
      %1441 = vmatprep.subr.mxu0 0.0
      %1442 = vmatpush1.msra.mxu0 0.0
      %1443 = vmatprep.subr.mxu0 0.0
      %1444 = vmatpush1.msra.mxu0 0.0
      %1445 = vmatprep.subr.mxu0 0.0
      %1446 = vmatpush1.msra.mxu0 0.0
      %1447 = vmatprep.subr.mxu0 0.0
      %1448 = vmatpush1.msra.mxu0 0.0
      %1449 = vmatprep.subr.mxu0 0.0
      %1450 = vmatpush1.msra.mxu0 0.0
      %1451 = vmatprep.subr.mxu0 0.0
      %1452 = vmatpush1.msra.mxu0 0.0
      %1453 = vmatprep.subr.mxu0 0.0
      %1454 = vmatpush1.msra.mxu0 0.0
      %1455 = vmatprep.subr.mxu0 0.0
      %1456 = vmatpush1.msra.mxu0 0.0
      %1457 = vmatprep.subr.mxu0 0.0
      %1458 = vmatpush1.msra.mxu0 0.0
      %1459 = vmatprep.subr.mxu0 0.0
      %1460 = vmatpush1.msra.mxu0 0.0
      %1461 = vmatprep.subr.mxu0 0.0
      %1462 = vmatpush1.msra.mxu0 0.0
      %1463 = vmatprep.subr.mxu0 0.0
      %1464 = vmatpush1.msra.mxu0 0.0
      %1465 = vmatprep.subr.mxu0 0.0
      %1466 = vmatpush1.msra.mxu0 0.0
      %1467 = vmatprep.subr.mxu0 0.0
      %1468 = vmatpush1.msra.mxu0 0.0
      %1469 = vmatprep.subr.mxu0 0.0
      %1470 = vmatpush1.msra.mxu0 0.0
      %1471 = vmatprep.subr.mxu0 0.0
      %1472 = vmatpush1.msra.mxu0 0.0
      %1473 = vmatprep.subr.mxu0 0.0
      %1474 = vmatpush1.msra.mxu0 0.0
      %1475 = vmatprep.subr.mxu0 0.0
      %1476 = vmatpush1.msra.mxu0 0.0
      %1477 = vmatprep.subr.mxu0 0.0
      %1478 = vmatpush1.msra.mxu0 0.0
      %1479 = vmatprep.subr.mxu0 0.0
      %1480 = vmatpush1.msra.mxu0 0.0
      %1481 = vmatprep.subr.mxu0 0.0
      %1482 = vmatpush1.msra.mxu0 0.0
      %1483 = vmatprep.subr.mxu0 0.0
      %1484 = vmatpush1.msra.mxu0 0.0
      %1485 = vmatprep.subr.mxu0 0.0
      %1486 = vmatpush1.msra.mxu0 0.0
      %1487 = vmatprep.subr.mxu0 0.0
      %1488 = vmatpush1.msra.mxu0 0.0
      %1489 = vmatprep.subr.mxu0 0.0
      %1490 = vmatpush1.msra.mxu0 0.0
      %1491 = vmatprep.subr.mxu0 0.0
      %1492 = vmatpush1.msra.mxu0 0.0
      %1493 = vmatprep.subr.mxu0 0.0
      %1494 = vmatpush1.msra.mxu0 0.0
      %1495 = vmatprep.subr.mxu0 0.0
      %1496 = vmatpush1.msra.mxu0 0.0
      %1497 = vmatprep.subr.mxu0 0.0
      %1498 = vmatpush1.msra.mxu0 0.0
      %1499 = vmatprep.mubr.f32.mxu0 0.0
      %1500 = vmatmul.mubr.f32.gmra.mrb[0].mxu0 %v1433
      %v1501 = vpop.f32.mrb[0].mxu0
      %v1502 = vadd.f32 0.0, %v1501
      %v1503 = vpop.f32.mrb[0].mxu0
      %v1504 = vadd.f32 0.0, %v1503
      %1505 = vdwg.mxu0
      %1506 = vmatprep.subr.mxu0 0.0
      %1507 = vmatpush1.msra.mxu0 %v1425
      %1508 = vmatprep.subr.mxu0 0.0
      %1509 = vmatpush1.msra.mxu0 0.0
      %1510 = vmatprep.subr.mxu0 0.0
      %1511 = vmatpush1.msra.mxu0 0.0
      %1512 = vmatprep.subr.mxu0 0.0
      %1513 = vmatpush1.msra.mxu0 0.0
      %1514 = vmatprep.subr.mxu0 0.0
      %1515 = vmatpush1.msra.mxu0 0.0
      %1516 = vmatprep.subr.mxu0 0.0
      %1517 = vmatpush1.msra.mxu0 0.0
      %1518 = vmatprep.subr.mxu0 0.0
      %1519 = vmatpush1.msra.mxu0 0.0
      %1520 = vmatprep.subr.mxu0 0.0
      %1521 = vmatpush1.msra.mxu0 0.0
      %1522 = vmatprep.subr.mxu0 0.0
      %1523 = vmatpush1.msra.mxu0 0.0
      %1524 = vmatprep.subr.mxu0 0.0
      %1525 = vmatpush1.msra.mxu0 0.0
      %1526 = vmatprep.subr.mxu0 0.0
      %1527 = vmatpush1.msra.mxu0 0.0
      %1528 = vmatprep.subr.mxu0 0.0
      %1529 = vmatpush1.msra.mxu0 0.0
      %1530 = vmatprep.subr.mxu0 0.0
      %1531 = vmatpush1.msra.mxu0 0.0
      %1532 = vmatprep.subr.mxu0 0.0
      %1533 = vmatpush1.msra.mxu0 0.0
      %1534 = vmatprep.subr.mxu0 0.0
      %1535 = vmatpush1.msra.mxu0 0.0
      %1536 = vmatprep.subr.mxu0 0.0
      %1537 = vmatpush1.msra.mxu0 0.0
      %1538 = vmatprep.subr.mxu0 0.0
      %1539 = vmatpush1.msra.mxu0 0.0
      %1540 = vmatprep.subr.mxu0 0.0
      %1541 = vmatpush1.msra.mxu0 0.0
      %1542 = vmatprep.subr.mxu0 0.0
      %1543 = vmatpush1.msra.mxu0 0.0
      %1544 = vmatprep.subr.mxu0 0.0
      %1545 = vmatpush1.msra.mxu0 0.0
      %1546 = vmatprep.subr.mxu0 0.0
      %1547 = vmatpush1.msra.mxu0 0.0
      %1548 = vmatprep.subr.mxu0 0.0
      %1549 = vmatpush1.msra.mxu0 0.0
      %1550 = vmatprep.subr.mxu0 0.0
      %1551 = vmatpush1.msra.mxu0 0.0
      %1552 = vmatprep.subr.mxu0 0.0
      %1553 = vmatpush1.msra.mxu0 0.0
      %1554 = vmatprep.subr.mxu0 0.0
      %1555 = vmatpush1.msra.mxu0 0.0
      %1556 = vmatprep.subr.mxu0 0.0
      %1557 = vmatpush1.msra.mxu0 0.0
      %1558 = vmatprep.subr.mxu0 0.0
      %1559 = vmatpush1.msra.mxu0 0.0
      %1560 = vmatprep.subr.mxu0 0.0
      %1561 = vmatpush1.msra.mxu0 0.0
      %1562 = vmatprep.subr.mxu0 0.0
      %1563 = vmatpush1.msra.mxu0 0.0
      %1564 = vmatprep.subr.mxu0 0.0
      %1565 = vmatpush1.msra.mxu0 0.0
      %1566 = vmatprep.subr.mxu0 0.0
      %1567 = vmatpush1.msra.mxu0 0.0
      %1568 = vmatprep.subr.mxu0 0.0
      %1569 = vmatpush1.msra.mxu0 0.0
      %1570 = vmatprep.mubr.f32.mxu0 0.0
      %1571 = vmatmul.mubr.f32.gmra.mrb[0].mxu0 %v1433
      %v1572 = vpop.f32.mrb[0].mxu0
      %v1573 = vadd.f32 0.0, %v1572
      %v1574 = vpop.f32.mrb[0].mxu0
      %1575 = vdwg.mxu0
      %v1576 = vadd.f32 %v1415, %v1502
      %v1577 = vadd.f32 %v1416, %v1504
      %v1578 = vadd.f32 %v1417, %v1573
      %s1579 = scalar_lea.vmem %s1, 64
      %v1580 = vld [vmem:[%s1579] sm:$0xff]
      %1581 = vrot.lane.b32.xlu0 %v303, 90
      %v1582 = vpop.permute.xlu0 %1581
      %1583 = vrot.lane.b32.xlu0 %v304, 90
      %v1584 = vpop.permute.xlu0 %1583
      %1585 = vrot.lane.b32.xlu0 %v305, 90
      %v1586 = vpop.permute.xlu0 %1585
      %vm1587 = vcmask 736256
      %v1588 = vsel %vm1587, %v1582, %v1584
      %v1589 = vsel %vm1587, %v1584, %v1586
      %v1594 = vsel %vm324, %v1580, 0
      %1596 = vmatprep.subr.mxu0 %v1589
      %1597 = vmatpush1.msra.mxu0 %v1588
      %1598 = vmatprep.subr.mxu0 0.0
      %1599 = vmatpush1.msra.mxu0 0.0
      %1600 = vmatprep.subr.mxu0 0.0
      %1601 = vmatpush1.msra.mxu0 0.0
      %1602 = vmatprep.subr.mxu0 0.0
      %1603 = vmatpush1.msra.mxu0 0.0
      %1604 = vmatprep.subr.mxu0 0.0
      %1605 = vmatpush1.msra.mxu0 0.0
      %1606 = vmatprep.subr.mxu0 0.0
      %1607 = vmatpush1.msra.mxu0 0.0
      %1608 = vmatprep.subr.mxu0 0.0
      %1609 = vmatpush1.msra.mxu0 0.0
      %1610 = vmatprep.subr.mxu0 0.0
      %1611 = vmatpush1.msra.mxu0 0.0
      %1612 = vmatprep.subr.mxu0 0.0
      %1613 = vmatpush1.msra.mxu0 0.0
      %1614 = vmatprep.subr.mxu0 0.0
      %1615 = vmatpush1.msra.mxu0 0.0
      %1616 = vmatprep.subr.mxu0 0.0
      %1617 = vmatpush1.msra.mxu0 0.0
      %1618 = vmatprep.subr.mxu0 0.0
      %1619 = vmatpush1.msra.mxu0 0.0
      %1620 = vmatprep.subr.mxu0 0.0
      %1621 = vmatpush1.msra.mxu0 0.0
      %1622 = vmatprep.subr.mxu0 0.0
      %1623 = vmatpush1.msra.mxu0 0.0
      %1624 = vmatprep.subr.mxu0 0.0
      %1625 = vmatpush1.msra.mxu0 0.0
      %1626 = vmatprep.subr.mxu0 0.0
      %1627 = vmatpush1.msra.mxu0 0.0
      %1628 = vmatprep.subr.mxu0 0.0
      %1629 = vmatpush1.msra.mxu0 0.0
      %1630 = vmatprep.subr.mxu0 0.0
      %1631 = vmatpush1.msra.mxu0 0.0
      %1632 = vmatprep.subr.mxu0 0.0
      %1633 = vmatpush1.msra.mxu0 0.0
      %1634 = vmatprep.subr.mxu0 0.0
      %1635 = vmatpush1.msra.mxu0 0.0
      %1636 = vmatprep.subr.mxu0 0.0
      %1637 = vmatpush1.msra.mxu0 0.0
      %1638 = vmatprep.subr.mxu0 0.0
      %1639 = vmatpush1.msra.mxu0 0.0
      %1640 = vmatprep.subr.mxu0 0.0
      %1641 = vmatpush1.msra.mxu0 0.0
      %1642 = vmatprep.subr.mxu0 0.0
      %1643 = vmatpush1.msra.mxu0 0.0
      %1644 = vmatprep.subr.mxu0 0.0
      %1645 = vmatpush1.msra.mxu0 0.0
      %1646 = vmatprep.subr.mxu0 0.0
      %1647 = vmatpush1.msra.mxu0 0.0
      %1648 = vmatprep.subr.mxu0 0.0
      %1649 = vmatpush1.msra.mxu0 0.0
      %1650 = vmatprep.subr.mxu0 0.0
      %1651 = vmatpush1.msra.mxu0 0.0
      %1652 = vmatprep.subr.mxu0 0.0
      %1653 = vmatpush1.msra.mxu0 0.0
      %1654 = vmatprep.subr.mxu0 0.0
      %1655 = vmatpush1.msra.mxu0 0.0
      %1656 = vmatprep.subr.mxu0 0.0
      %1657 = vmatpush1.msra.mxu0 0.0
      %1658 = vmatprep.subr.mxu0 0.0
      %1659 = vmatpush1.msra.mxu0 0.0
      %1660 = vmatprep.mubr.f32.mxu0 0.0
      %1661 = vmatmul.mubr.f32.gmra.mrb[0].mxu0 %v1594
      %v1662 = vpop.f32.mrb[0].mxu0
      %v1663 = vadd.f32 0.0, %v1662
      %v1664 = vpop.f32.mrb[0].mxu0
      %v1665 = vadd.f32 0.0, %v1664
      %1666 = vdwg.mxu0
      %1667 = vmatprep.subr.mxu0 0.0
      %1668 = vmatpush1.msra.mxu0 %v1586
      %1669 = vmatprep.subr.mxu0 0.0
      %1670 = vmatpush1.msra.mxu0 0.0
      %1671 = vmatprep.subr.mxu0 0.0
      %1672 = vmatpush1.msra.mxu0 0.0
      %1673 = vmatprep.subr.mxu0 0.0
      %1674 = vmatpush1.msra.mxu0 0.0
      %1675 = vmatprep.subr.mxu0 0.0
      %1676 = vmatpush1.msra.mxu0 0.0
      %1677 = vmatprep.subr.mxu0 0.0
      %1678 = vmatpush1.msra.mxu0 0.0
      %1679 = vmatprep.subr.mxu0 0.0
      %1680 = vmatpush1.msra.mxu0 0.0
      %1681 = vmatprep.subr.mxu0 0.0
      %1682 = vmatpush1.msra.mxu0 0.0
      %1683 = vmatprep.subr.mxu0 0.0
      %1684 = vmatpush1.msra.mxu0 0.0
      %1685 = vmatprep.subr.mxu0 0.0
      %1686 = vmatpush1.msra.mxu0 0.0
      %1687 = vmatprep.subr.mxu0 0.0
      %1688 = vmatpush1.msra.mxu0 0.0
      %1689 = vmatprep.subr.mxu0 0.0
      %1690 = vmatpush1.msra.mxu0 0.0
      %1691 = vmatprep.subr.mxu0 0.0
      %1692 = vmatpush1.msra.mxu0 0.0
      %1693 = vmatprep.subr.mxu0 0.0
      %1694 = vmatpush1.msra.mxu0 0.0
      %1695 = vmatprep.subr.mxu0 0.0
      %1696 = vmatpush1.msra.mxu0 0.0
      %1697 = vmatprep.subr.mxu0 0.0
      %1698 = vmatpush1.msra.mxu0 0.0
      %1699 = vmatprep.subr.mxu0 0.0
      %1700 = vmatpush1.msra.mxu0 0.0
      %1701 = vmatprep.subr.mxu0 0.0
      %1702 = vmatpush1.msra.mxu0 0.0
      %1703 = vmatprep.subr.mxu0 0.0
      %1704 = vmatpush1.msra.mxu0 0.0
      %1705 = vmatprep.subr.mxu0 0.0
      %1706 = vmatpush1.msra.mxu0 0.0
      %1707 = vmatprep.subr.mxu0 0.0
      %1708 = vmatpush1.msra.mxu0 0.0
      %1709 = vmatprep.subr.mxu0 0.0
      %1710 = vmatpush1.msra.mxu0 0.0
      %1711 = vmatprep.subr.mxu0 0.0
      %1712 = vmatpush1.msra.mxu0 0.0
      %1713 = vmatprep.subr.mxu0 0.0
      %1714 = vmatpush1.msra.mxu0 0.0
      %1715 = vmatprep.subr.mxu0 0.0
      %1716 = vmatpush1.msra.mxu0 0.0
      %1717 = vmatprep.subr.mxu0 0.0
      %1718 = vmatpush1.msra.mxu0 0.0
      %1719 = vmatprep.subr.mxu0 0.0
      %1720 = vmatpush1.msra.mxu0 0.0
      %1721 = vmatprep.subr.mxu0 0.0
      %1722 = vmatpush1.msra.mxu0 0.0
      %1723 = vmatprep.subr.mxu0 0.0
      %1724 = vmatpush1.msra.mxu0 0.0
      %1725 = vmatprep.subr.mxu0 0.0
      %1726 = vmatpush1.msra.mxu0 0.0
      %1727 = vmatprep.subr.mxu0 0.0
      %1728 = vmatpush1.msra.mxu0 0.0
      %1729 = vmatprep.subr.mxu0 0.0
      %1730 = vmatpush1.msra.mxu0 0.0
      %1731 = vmatprep.mubr.f32.mxu0 0.0
      %1732 = vmatmul.mubr.f32.gmra.mrb[0].mxu0 %v1594
      %v1733 = vpop.f32.mrb[0].mxu0
      %v1734 = vadd.f32 0.0, %v1733
      %v1735 = vpop.f32.mrb[0].mxu0
      %1736 = vdwg.mxu0
      %v1737 = vadd.f32 %v1576, %v1663
      %v1738 = vadd.f32 %v1577, %v1665
      %v1739 = vadd.f32 %v1578, %v1734
      %v1740 = vld [vmem:[%s2] sm:$0x7]
      %v1742 = vlaneseq
      %v1743 = vshrl.u32 %v1742, 7
      %v1744 = vsub.s32 0, %v1743
      %v1745 = vrot.slane %v1740, %v1744
      %v1746 = vlaneseq
      %v1747 = vshrl.u32 %v1746, 7
      %v1748 = vsub.s32 1, %v1747
      %v1749 = vrot.slane %v1740, %v1748
      %v1750 = vlaneseq
      %v1751 = vshrl.u32 %v1750, 7
      %v1752 = vsub.s32 2, %v1751
      %v1753 = vrot.slane %v1740, %v1752
      %v1757 = vmul.f32 %v1737, %v1745
      %v1758 = vmul.f32 %v1738, %v1749
      %v1759 = vmul.f32 %v1739, %v1753
      %v1760 = vadd.f32 %v1757, %v1758
      %vm1761 = vcmask 261120
      %v1762 = vsel %vm1761, %v1759, 0.0
      %v1763 = vadd.f32 %v1760, %v1762
      %1764 = vadd.xlane.f32.xlu0 %v1763
      %v1765 = vpop.xlane.xlu0 %1764
      %v1766 = vmul.f32 %v1737, %v1737
      %v1767 = vmul.f32 %v1738, %v1738
      %v1768 = vmul.f32 %v1739, %v1739
      %v1769 = vmul.f32 %v1766, %v1745
      %v1770 = vmul.f32 %v1767, %v1749
      %v1771 = vmul.f32 %v1768, %v1753
      %v1772 = vadd.f32 %v1769, %v1770
      %v1773 = vsel %vm1761, %v1771, 0.0
      %v1774 = vadd.f32 %v1772, %v1773
      %1775 = vadd.xlane.f32.xlu0 %v1774
      %v1776 = vpop.xlane.xlu0 %1775
      %vm1777 = vcmask 7168
      %v1778 = vsel %vm1777, %v1765, %v1776
      %vm1779 = vcmask 15360
      %1780 = vst.msk [vmem:[%s262] sm:$0xff] %vm1779, %v1778
      %1784 = vrot.lane.b32.xlu0 %v1737, 19
      %v1785 = vpop.permute.xlu0 %1784
      %1786 = vrot.lane.b32.xlu0 %v1738, 19
      %v1787 = vpop.permute.xlu0 %1786
      %1788 = vrot.lane.b32.xlu0 %v1739, 19
      %v1789 = vpop.permute.xlu0 %1788
      %vm1790 = vcmask 154624
      %v1791 = vsel %vm1790, %v1785, %v1787
      %v1792 = vsel %vm1790, %v1787, %v1789
      %v1796 = vsel %vm1790, 0.0, %v1785
      %vm1797 = vcmask 416768
      %v1798 = vsel %vm1797, %v1792, 0.0
      %1799 = vst [vmem:[%s258] sm:$0xff] %v1796
      %1800 = vst [vmem:[%s258 + $0x8] sm:$0xff] %v1791
      %vm1801 = vcmask 572416
      %1802 = vst.msk [vmem:[%s258 + $0x10] sm:$0xff] %vm1801, %v1798
      %p1803 = scmp.lt.s32.totalorder %s18, 1
      %s1804 = scalar_select %p1803, %s18, 1
      %s1805 = smul.addr %s1804, 3
      %s1806 = smul.addr %s1805, 8
      %s1807 = scalar_lea.vmem %s5, %s1806
      %p1808 = scmp.lt.s32.totalorder %s18, 1
      %s1809 = scalar_select %p1808, %s18, 1
      %s1810 = smul.addr %s1809, 8
      %s1811 = scalar_lea.vmem %s6, %s1810
      // Predicated region
      $region41: #{double_conv.4} parent=39 // pred_check
        %p1812 = pneg %p146
      $region42: #{double_conv.4} parent=39 // pred_check_branch
        %1814 = sbr.rel (%p1812) target = $region44
      $region43: #{double_conv.4} parent=39 // pred_region
        _
      $region44: #{double_conv.4} parent=39 // pred_fallthru
        _
      // Predicated region
      $region45: #{double_conv.4} parent=39 // pred_check
        %p1815 = pneg %p172
      $region46: #{double_conv.4} parent=39 // pred_check_branch
        %1817 = sbr.rel (%p1815) target = $region48
      $region47: #{double_conv.4} parent=39 // pred_region
        _
      $region48: #{double_conv.4} parent=39 // pred_fallthru
        _
    $region40: #{double_conv.4} parent=5 // pred_fallthru
      _
    %p1818 = scmp.le.s32.totalorder 2, %s13
    // Predicated region
    $region49: #{double_conv.4} parent=5 // pred_check
      %p1819 = pneg %p1818
    $region50: #{double_conv.4} parent=5 // pred_check_branch
      %1821 = sbr.rel (%p1819) target = $region52
    $region51: #{double_conv.4} parent=5 // pred_region
      %s1822 = ssub.s32 %s13, 2
      // Predicated region
      $region53: #{double_conv.4} parent=51 // pred_check
        %p1823 = pneg %p152
      $region54: #{double_conv.4} parent=51 // pred_check_branch
        %1825 = sbr.rel (%p1823) target = $region56
      $region55: #{double_conv.4} parent=51 // pred_region
        %p1826 = scmp.lt.s32.totalorder %s19, 1
        %s1827 = scalar_select %p1826, %s19, 1
        %s1828 = smul.addr %s1827, 3
        %s1829 = smul.addr %s1828, 8
        %s1830 = scalar_lea.vmem %s5, %s1829
      $region56: #{double_conv.4} parent=51 // pred_fallthru
        _
      // Predicated region
      $region57: #{double_conv.4} parent=51 // pred_check
        %p1831 = pneg %p178
      $region58: #{double_conv.4} parent=51 // pred_check_branch
        %1833 = sbr.rel (%p1831) target = $region60
      $region59: #{double_conv.4} parent=51 // pred_region
        %p1834 = scmp.lt.s32.totalorder %s19, 1
        %s1835 = scalar_select %p1834, %s19, 1
        %s1836 = smul.addr %s1835, 8
        %s1837 = scalar_lea.vmem %s6, %s1836
      $region60: #{double_conv.4} parent=51 // pred_fallthru
        _
    $region52: #{double_conv.4} parent=5 // pred_fallthru
      _
  $region6: #{double_conv.4} parent=0 // loop_footer
    %s17 = sadd.s32 1, %s13
  $region7: #{double_conv.4} parent=0 // loop_footer_branch
    %12 = sbr.rel target = $region3
  $region8: #{double_conv.4} parent=0 // loop_exit
    _

</llo_original>
